<compile_context>
chip_gen: v5e
topology: v5e:2x2
jax: 0.10.0
libtpu: 0.0.40
codegen_flags: <defaults>
</compile_context>

<pallas_src>
import functools

import jax
import jax.numpy as jnp
from jax.experimental import pallas as pl
from jax.experimental.pallas import tpu as pltpu


def _round_up(x: int, m: int) -> int:
    return ((x + m - 1) // m) * m


_TILE_CANDIDATES = (1024, 512, 256, 128)


def _pick_tile(dim: int) -> int:
    """Largest candidate tile that evenly divides `dim` (dim is a mult of 128)."""
    for c in _TILE_CANDIDATES:
        if dim % c == 0:
            return c
    return dim


def _pick_row_tile(m: int) -> int:
    """Row tile; prefer >=2 row tiles so the 'parallel' axis can use 2 TCs (v7x)."""
    for c in _TILE_CANDIDATES:
        if m % c == 0 and m // c >= 2:
            return c
    return _pick_tile(m)


def _vmem_budget_bytes() -> int:
    """Per-generation VMEM budget (~70% of physical: ~45 MiB v7x, ~90 MiB v6e)."""
    try:
        cap = pltpu.get_tpu_info().vmem_capacity_bytes
    except Exception:  # pragma: no cover - conservative fallback
        cap = 64 * 1024 * 1024
    return int(cap * 0.7)


# ---------------------------------------------------------------------------
# Tiled matmul kernel (large-graph path):  O = A @ B (+ bias), f32 accumulation
# ---------------------------------------------------------------------------
def _mm_kernel(*refs, tk, resident_b, add_bias):
    if add_bias:
        a_ref, b_ref, bias_ref, o_ref, acc_ref = refs
    else:
        a_ref, b_ref, o_ref, acc_ref = refs
        bias_ref = None

    kk = pl.program_id(1)

    @pl.when(kk == 0)
    def _init():
        acc_ref[...] = jnp.zeros_like(acc_ref)

    if resident_b:
        # B is fully VMEM-resident for the whole hop; slice the current K tile.
        start = pl.multiple_of(kk * tk, tk)
        b_tile = b_ref[pl.ds(start, tk), :]
    else:
        b_tile = b_ref[...]

    acc_ref[...] += jnp.dot(a_ref[...], b_tile,
                            preferred_element_type=jnp.float32)

    @pl.when(kk == pl.num_programs(1) - 1)
    def _finalize():
        r = acc_ref[...]
        if add_bias:
            r = r + bias_ref[...]
        o_ref[...] = r.astype(o_ref.dtype)


def _tiled_matmul(a, b, bias=None, *, out_dtype, vmem_budget):
    """Tiled O = A @ B (+ bias).  A: [M, K], B: [K, Np], bias: [1, Np] or None."""
    m, k = a.shape
    k2, np_ = b.shape
    assert k == k2
    tm = _pick_row_tile(m)
    tk = _pick_tile(k)
    grid = (m // tm, k // tk)

    a_isz = jnp.dtype(a.dtype).itemsize
    b_isz = jnp.dtype(b.dtype).itemsize
    o_isz = jnp.dtype(out_dtype).itemsize
    # VMEM needed if B is fully resident: B once + double-buffered A tile +
    # f32 accumulator + double-buffered output tile (+ small bias).
    resident_bytes = (k * np_ * b_isz
                      + 2 * tm * tk * a_isz
                      + tm * np_ * 4
                      + 2 * tm * np_ * o_isz)
    resident_b = resident_bytes <= vmem_budget

    if resident_b:
        b_spec = pl.BlockSpec((k, np_), lambda i, kk: (0, 0))   # DMA once / hop
    else:
        b_spec = pl.BlockSpec((tk, np_), lambda i, kk: (kk, 0))  # blocked stripe

    add_bias = bias is not None
    in_specs = [pl.BlockSpec((tm, tk), lambda i, kk: (i, kk)), b_spec]
    operands = [a, b]
    if add_bias:
        in_specs.append(pl.BlockSpec((1, np_), lambda i, kk: (0, 0)))
        operands.append(bias)

    kernel = functools.partial(_mm_kernel, tk=tk, resident_b=resident_b,
                               add_bias=add_bias)
    return pl.pallas_call(
        kernel,
        out_shape=jax.ShapeDtypeStruct((m, np_), out_dtype),
        grid_spec=pltpu.PrefetchScalarGridSpec(
            num_scalar_prefetch=0,
            grid=grid,
            in_specs=in_specs,
            out_specs=pl.BlockSpec((tm, np_), lambda i, kk: (i, 0)),
            scratch_shapes=[pltpu.VMEM((tm, np_), jnp.float32)],
        ),
        compiler_params=pltpu.CompilerParams(
            dimension_semantics=("parallel", "arbitrary"),
            vmem_limit_bytes=vmem_budget,
        ),
    )(*operands)


# ---------------------------------------------------------------------------
# Fused small-graph kernel: projection + k hops in a single pallas_call
# ---------------------------------------------------------------------------
def _fused_sgcn_kernel(a_ref, x_ref, w_ref, bias_ref, o_ref, h_ref, *, k):
    # Project first (N*F*H), then k propagation hops (N*N*H each), h in f32.
    h_ref[...] = jnp.dot(x_ref[...], w_ref[...],
                         preferred_element_type=jnp.float32)
    for _ in range(k):
        h_ref[...] = jnp.dot(a_ref[...], h_ref[...],
                             preferred_element_type=jnp.float32)
    o_ref[...] = h_ref[...] + bias_ref[...]


def _fused_sgcn(a_p, x_p, w_p, b_p, *, k, vmem_budget):
    n_pad = a_p.shape[0]
    f_pad = x_p.shape[1]
    h_pad = w_p.shape[1]
    return pl.pallas_call(
        functools.partial(_fused_sgcn_kernel, k=k),
        out_shape=jax.ShapeDtypeStruct((n_pad, h_pad), jnp.float32),
        grid=(1,),
        in_specs=[
            pl.BlockSpec((n_pad, n_pad), lambda i: (0, 0)),
            pl.BlockSpec((n_pad, f_pad), lambda i: (0, 0)),
            pl.BlockSpec((f_pad, h_pad), lambda i: (0, 0)),
            pl.BlockSpec((1, h_pad), lambda i: (0, 0)),
        ],
        out_specs=pl.BlockSpec((n_pad, h_pad), lambda i: (0, 0)),
        scratch_shapes=[pltpu.VMEM((n_pad, h_pad), jnp.float32)],
        compiler_params=pltpu.CompilerParams(
            dimension_semantics=("arbitrary",),
            vmem_limit_bytes=vmem_budget,
        ),
    )(a_p, x_p, w_p, b_p)


# ---------------------------------------------------------------------------
# SGCN forward
# ---------------------------------------------------------------------------
def prepare_adjacency(a_norm, n_pad):
    """Pad + cast A_hat to bf16.  Cache this per graph across forward calls."""
    n = a_norm.shape[0]
    return jnp.zeros((n_pad, n_pad), jnp.bfloat16).at[:n, :n].set(
        a_norm.astype(jnp.bfloat16))


def sgcn_pallas(a_norm, x, w, b, *, k, force_tiled=False):
    """Fused SGConv: out = A_hat^k (X @ W) + b  (== (A_hat^k X) W + b)."""
    n, f = x.shape
    h_dim = w.shape[1]

    n_pad = _round_up(max(n, 1), 512)
    f_pad = _round_up(max(f, 1), 128)
    h_pad = _round_up(max(h_dim, 1), 128)
    vmem_budget = _vmem_budget_bytes()

    # MXU operands in bf16; h stays f32 across hops (f32 accumulation in-kernel).
    a_p = prepare_adjacency(a_norm, n_pad)  # cache per graph in production
    x_p = jnp.zeros((n_pad, f_pad), jnp.bfloat16).at[:n, :f].set(
        x.astype(jnp.bfloat16))
    w_p = jnp.zeros((f_pad, h_pad), jnp.bfloat16).at[:f, :h_dim].set(
        w.astype(jnp.bfloat16))
    b_p = jnp.zeros((1, h_pad), jnp.float32).at[0, :h_dim].set(
        b.astype(jnp.float32))

    # Whole-problem VMEM footprint for the fused single-call path.
    fused_bytes = (n_pad * n_pad * 2 + n_pad * f_pad * 2 + f_pad * h_pad * 2
                   + h_pad * 4 + 2 * n_pad * h_pad * 4)
    if not force_tiled and fused_bytes <= vmem_budget:
        h_out = _fused_sgcn(a_p, x_p, w_p, b_p, k=k, vmem_budget=vmem_budget)
        return h_out[:n, :h_dim]

    # Large-graph path: project first (bias deferred to the last op).
    h = _tiled_matmul(x_p, w_p, b_p if k == 0 else None,
                      out_dtype=jnp.float32, vmem_budget=vmem_budget)
    for step in range(k):
        last = step == k - 1
        h = _tiled_matmul(a_p, h, b_p if last else None,
                          out_dtype=jnp.float32, vmem_budget=vmem_budget)
    return h[:n, :h_dim]


def sgcn_forward(in_sample, w, b, *, n_layers):
    """Mirror of SGCN.forward: returns (node embeddings, dst_node_ids)."""
    # TODO(synk): DGLGraph/BatchedSnapshot handling and error logging are
    # host-side glue with no Pallas equivalent; dense normalized adjacency is
    # taken as the snapshot observation.
    (a_norm, node_features), dst_node_ids = in_sample
    h_out = sgcn_pallas(a_norm, node_features.astype(jnp.float32), w, b,
                        k=n_layers)
    return h_out, dst_node_ids


if __name__ == "__main__":
    # Small deterministic synthetic graph + parameters.
    N_NODES = 64
    IN_FEATS = 32
    N_HIDDEN = 32
    N_LAYERS = 2  # SGConv k

    key = jax.random.PRNGKey(0)
    k_adj, k_x, k_w = jax.random.split(key, 3)

    # Random undirected graph with self-loops, symmetric normalization.
    a = (jax.random.uniform(k_adj, (N_NODES, N_NODES)) < 0.1).astype(jnp.float32)
    a = jnp.minimum(jnp.maximum(a, a.T) + jnp.eye(N_NODES, dtype=jnp.float32), 1.0)
    deg = a.sum(axis=1)
    d_inv_sqrt = 1.0 / jnp.sqrt(deg)
    a_norm = a * d_inv_sqrt[:, None] * d_inv_sqrt[None, :]

    # Node features and deterministic Linear(in_feats, n_hidden) parameters.
    x = jax.random.normal(k_x, (N_NODES, IN_FEATS), dtype=jnp.float32)
    w = jax.random.normal(k_w, (IN_FEATS, N_HIDDEN), dtype=jnp.float32) * (
        1.0 / jnp.sqrt(IN_FEATS)
    )
    b = jnp.zeros((N_HIDDEN,), dtype=jnp.float32)

    dst_node_ids = list(range(8))

    # Default path (fused small-graph kernel for this size).
    h_out, ids = sgcn_forward(((a_norm, x), dst_node_ids), w, b,
                              n_layers=N_LAYERS)
    jax.block_until_ready(h_out)

    # Also exercise the large-graph tiled path (resident-B multi-call variant).
    h_tiled = sgcn_pallas(a_norm, x, w, b, k=N_LAYERS, force_tiled=True)
    jax.block_until_ready(h_tiled)

    # Reference (pure f32 JAX, original propagate-then-project order).
    h_ref = x
    for _ in range(N_LAYERS):
        h_ref = a_norm @ h_ref
    h_ref = h_ref @ w + b

    assert h_out.shape == (N_NODES, N_HIDDEN)
    # bf16 MXU inputs + reassociation -> loosened tolerance (f32 accumulation,
    # h kept in f32 between hops).
    assert jnp.allclose(h_out, h_ref, rtol=5e-2, atol=5e-2), (
        float(jnp.max(jnp.abs(h_out - h_ref))))
    assert jnp.allclose(h_tiled, h_ref, rtol=5e-2, atol=5e-2), (
        float(jnp.max(jnp.abs(h_tiled - h_ref))))
    assert ids == dst_node_ids

    print("KERNEL_OK")
</pallas_src>

<mosaic_0001>
module attributes {stable_mosaic.version = 11 : i64} {
  func.func @_fused_sgcn_kernel(%arg0: i32, %arg1: memref<512x512xbf16, #tpu.memory_space<vmem>>, %arg2: memref<512x128xbf16, #tpu.memory_space<vmem>>, %arg3: memref<128x128xbf16, #tpu.memory_space<vmem>>, %arg4: memref<1x128xf32, #tpu.memory_space<vmem>>, %arg5: memref<512x128xf32, #tpu.memory_space<vmem>>, %arg6: memref<512x128xf32, #tpu.memory_space<vmem>>) attributes {dimension_semantics = [#tpu.dimension_semantics<arbitrary>], iteration_bounds = array<i64: 1>, scalar_prefetch = 0 : i64, scratch_operands = 1 : i64, tpu.core_type = #tpu.core_type<tc>, window_params = [{pipeline_mode = #tpu.pipeline_mode<synchronous>, transform_indices = @transform_0, window_bounds = array<i64: 512, 512>}, {pipeline_mode = #tpu.pipeline_mode<synchronous>, transform_indices = @transform_1, window_bounds = array<i64: 512, 128>}, {pipeline_mode = #tpu.pipeline_mode<synchronous>, transform_indices = @transform_2, window_bounds = array<i64: 128, 128>}, {pipeline_mode = #tpu.pipeline_mode<synchronous>, transform_indices = @transform_3, window_bounds = array<i64: 1, 128>}, {pipeline_mode = #tpu.pipeline_mode<synchronous>, transform_indices = @transform_4, window_bounds = array<i64: 512, 128>}]} {
    %c0 = arith.constant 0 : index
    %c0_0 = arith.constant 0 : index
    %0 = vector.load %arg2[%c0, %c0_0] : memref<512x128xbf16, #tpu.memory_space<vmem>>, vector<512x128xbf16>
    %c0_1 = arith.constant 0 : index
    %c0_2 = arith.constant 0 : index
    %1 = vector.load %arg3[%c0_1, %c0_2] : memref<128x128xbf16, #tpu.memory_space<vmem>>, vector<128x128xbf16>
    %cst = arith.constant dense<0.000000e+00> : vector<512x128xf32>
    %2 = tpu.matmul %0, %1, %cst {dimension_numbers = #tpu.dot_dimension_numbers<[1], [0], [0], [1], [0, 0, 1, 1], [], []>} : vector<512x128xbf16>, vector<128x128xbf16>, vector<512x128xf32> -> vector<512x128xf32>
    %c0_3 = arith.constant 0 : index
    %c0_4 = arith.constant 0 : index
    %3 = vector.load %arg6[%c0_3, %c0_4] : memref<512x128xf32, #tpu.memory_space<vmem>>, vector<512x128xf32>
    tpu.vector_store %arg6[%c0_3, %c0_4], %2 {strides = array<i32>} : memref<512x128xf32, #tpu.memory_space<vmem>>, vector<512x128xf32>,
    %c0_5 = arith.constant 0 : index
    %c0_6 = arith.constant 0 : index
    %4 = vector.load %arg1[%c0_5, %c0_6] : memref<512x512xbf16, #tpu.memory_space<vmem>>, vector<512x512xbf16>
    %c0_7 = arith.constant 0 : index
    %c0_8 = arith.constant 0 : index
    %5 = vector.load %arg6[%c0_7, %c0_8] : memref<512x128xf32, #tpu.memory_space<vmem>>, vector<512x128xf32>
    %cst_9 = arith.constant dense<0.000000e+00> : vector<512x128xf32>
    %6 = tpu.matmul %4, %5, %cst_9 {dimension_numbers = #tpu.dot_dimension_numbers<[1], [0], [0], [1], [0, 0, 1, 1], [], []>} : vector<512x512xbf16>, vector<512x128xf32>, vector<512x128xf32> -> vector<512x128xf32>
    %c0_10 = arith.constant 0 : index
    %c0_11 = arith.constant 0 : index
    %7 = vector.load %arg6[%c0_10, %c0_11] : memref<512x128xf32, #tpu.memory_space<vmem>>, vector<512x128xf32>
    tpu.vector_store %arg6[%c0_10, %c0_11], %6 {strides = array<i32>} : memref<512x128xf32, #tpu.memory_space<vmem>>, vector<512x128xf32>,
    %c0_12 = arith.constant 0 : index
    %c0_13 = arith.constant 0 : index
    %8 = vector.load %arg1[%c0_12, %c0_13] : memref<512x512xbf16, #tpu.memory_space<vmem>>, vector<512x512xbf16>
    %c0_14 = arith.constant 0 : index
    %c0_15 = arith.constant 0 : index
    %9 = vector.load %arg6[%c0_14, %c0_15] : memref<512x128xf32, #tpu.memory_space<vmem>>, vector<512x128xf32>
    %cst_16 = arith.constant dense<0.000000e+00> : vector<512x128xf32>
    %10 = tpu.matmul %8, %9, %cst_16 {dimension_numbers = #tpu.dot_dimension_numbers<[1], [0], [0], [1], [0, 0, 1, 1], [], []>} : vector<512x512xbf16>, vector<512x128xf32>, vector<512x128xf32> -> vector<512x128xf32>
    %c0_17 = arith.constant 0 : index
    %c0_18 = arith.constant 0 : index
    %11 = vector.load %arg6[%c0_17, %c0_18] : memref<512x128xf32, #tpu.memory_space<vmem>>, vector<512x128xf32>
    tpu.vector_store %arg6[%c0_17, %c0_18], %10 {strides = array<i32>} : memref<512x128xf32, #tpu.memory_space<vmem>>, vector<512x128xf32>,
    %c0_19 = arith.constant 0 : index
    %c0_20 = arith.constant 0 : index
    %12 = vector.load %arg6[%c0_19, %c0_20] : memref<512x128xf32, #tpu.memory_space<vmem>>, vector<512x128xf32>
    %c0_21 = arith.constant 0 : index
    %c0_22 = arith.constant 0 : index
    %13 = vector.load %arg4[%c0_21, %c0_22] : memref<1x128xf32, #tpu.memory_space<vmem>>, vector<1x128xf32>
    %14 = vector.broadcast %13 : vector<1x128xf32> to vector<512x128xf32>
    %15 = arith.addf %12, %14 : vector<512x128xf32>
    %c0_23 = arith.constant 0 : index
    %c0_24 = arith.constant 0 : index
    %16 = vector.load %arg5[%c0_23, %c0_24] : memref<512x128xf32, #tpu.memory_space<vmem>>, vector<512x128xf32>
    tpu.vector_store %arg5[%c0_23, %c0_24], %15 {strides = array<i32>} : memref<512x128xf32, #tpu.memory_space<vmem>>, vector<512x128xf32>,
    return
  }
  func.func @transform_0(%arg0: i32) -> (i32, i32) {
    %c0_i32 = arith.constant 0 : i32
    %c0_i32_0 = arith.constant 0 : i32
    %c0_i32_1 = arith.constant 0 : i32
    return %c0_i32, %c0_i32_0 : i32, i32
  }
  func.func @transform_1(%arg0: i32) -> (i32, i32) {
    %c0_i32 = arith.constant 0 : i32
    %c0_i32_0 = arith.constant 0 : i32
    %c0_i32_1 = arith.constant 0 : i32
    return %c0_i32, %c0_i32_0 : i32, i32
  }
  func.func @transform_2(%arg0: i32) -> (i32, i32) {
    %c0_i32 = arith.constant 0 : i32
    %c0_i32_0 = arith.constant 0 : i32
    %c0_i32_1 = arith.constant 0 : i32
    return %c0_i32, %c0_i32_0 : i32, i32
  }
  func.func @transform_3(%arg0: i32) -> (i32, i32) {
    %c0_i32 = arith.constant 0 : i32
    %c0_i32_0 = arith.constant 0 : i32
    %c0_i32_1 = arith.constant 0 : i32
    return %c0_i32, %c0_i32_0 : i32, i32
  }
  func.func @transform_4(%arg0: i32) -> (i32, i32) {
    %c0_i32 = arith.constant 0 : i32
    %c0_i32_0 = arith.constant 0 : i32
    %c0_i32_1 = arith.constant 0 : i32
    return %c0_i32, %c0_i32_0 : i32, i32
  }
}

</mosaic_0001>

<llo_original>
// kernel: tpu_custom_call.1
$region0: #{tpu_custom_call.1}
  #allocation0 [shape = 'u32[]', space=smem, size = 0x4, offset = 0x4, fixed_abs, tag = 'smem constant byte address 0x4 - core index']
  #allocation1 [shape = 'u32[72,128]{1,0:T(1,128)}', space=vmem, size = 0x9000, scoped, tag = 'internal scratch']
  #allocation2 [shape = 'f32[512,128]{1,0:T(8,128)}', space=vmem, size = 0x40000, scoped, tag = 'scratch operand']
  %s0 = inlined_call_operand.hbm [shape: bf16[512,512], index: 0, kind: input, shape index: {}]
  %s1 = inlined_call_operand.hbm [shape: bf16[512,128], index: 1, kind: input, shape index: {}]
  %s2 = inlined_call_operand.hbm [shape: bf16[128,128], index: 2, kind: input, shape index: {}]
  %s3 = inlined_call_operand.vmem [shape: f32[1,128], index: 3, kind: input, shape index: {}]
  %s4 = inlined_call_operand.hbm [shape: f32[512,128], index: 4, kind: output, shape index: {}]
  %s5 = sld [smem:[#allocation0]]
  $region38: #{tpu_custom_call.1} parent=0
    _
  %s7 = ssub.s32 1, %s5
  %s8 = scalar_select 0, %s7, %s5
  $region1: #{tpu_custom_call.1} parent=0
    #allocation3 [shape = 'u8[524288]{0}', space=vmem, size = 0x80000, scoped, tag = 'input window, operand 0, single buffered']
    #allocation4 [shape = 's32[1]{0}', space=sflag, size = 0x4, scoped, tag = 'scoped memory for tpu_custom_call.1']
    #allocation5 [shape = 's32[1]{0}', space=sflag, size = 0x4, scoped, tag = 'scoped memory for tpu_custom_call.1']
    #allocation6 [shape = 'u8[131072]{0}', space=vmem, size = 0x20000, scoped, tag = 'input window, operand 1, single buffered']
    #allocation7 [shape = 's32[1]{0}', space=sflag, size = 0x4, scoped, tag = 'scoped memory for tpu_custom_call.1']
    #allocation8 [shape = 'u8[32768]{0}', space=vmem, size = 0x8000, scoped, tag = 'input window, operand 2, single buffered']
    #allocation9 [shape = 'u8[262144]{0}', space=vmem, size = 0x40000, scoped, tag = 'output window, operand 0, single buffered']
    %9 = vsyncpa [#allocation4], 0
    %10 = vsyncpa [#allocation7], 0
    %11 = vsyncpa [#allocation5], 0
    // Predicated region
    $region2: #{tpu_custom_call.1} parent=1 // pred_check
      _
    $region3: #{tpu_custom_call.1} parent=1 // pred_check_branch
      %13 = sbr.rel (0) target = $region5
    $region4: #{tpu_custom_call.1} parent=1 // pred_region
      %15 = vsyncadd [#allocation4], 0
      %s16 = sshll.u32 %s0, 4
      %s17 = int_to_ptr.hbm [resolvable:$true] %s16
      %s18 = sshll.u32 [#allocation3], 4
      %s19 = int_to_ptr.vmem [resolvable:$true] %s18
      %24 = dma.hbm_to_vmem [thread:$0]  %s17, 16384, %s19, [#allocation4], 256, 256, 16
    $region5: #{tpu_custom_call.1} parent=1 // pred_fallthru
      _
    // Predicated region
    $region6: #{tpu_custom_call.1} parent=1 // pred_check
      _
    $region7: #{tpu_custom_call.1} parent=1 // pred_check_branch
      %26 = sbr.rel (0) target = $region9
    $region8: #{tpu_custom_call.1} parent=1 // pred_region
      %28 = vsyncadd [#allocation7], 0
      %s29 = sshll.u32 %s1, 4
      %s30 = int_to_ptr.hbm [resolvable:$true] %s29
      %s31 = sshll.u32 [#allocation6], 4
      %s32 = int_to_ptr.vmem [resolvable:$true] %s31
      %37 = dma.hbm_to_vmem [thread:$0]  %s30, 4096, %s32, [#allocation7], 64, 64, 4
    $region9: #{tpu_custom_call.1} parent=1 // pred_fallthru
      _
    // Predicated region
    $region10: #{tpu_custom_call.1} parent=1 // pred_check
      _
    $region11: #{tpu_custom_call.1} parent=1 // pred_check_branch
      %39 = sbr.rel (0) target = $region13
    $region12: #{tpu_custom_call.1} parent=1 // pred_region
      %41 = vsyncadd [#allocation7], 0
      %s42 = sshll.u32 %s2, 4
      %s43 = int_to_ptr.hbm [resolvable:$true] %s42
      %s44 = sshll.u32 [#allocation8], 4
      %s45 = int_to_ptr.vmem [resolvable:$true] %s44
      %50 = dma.hbm_to_vmem [thread:$0]  %s43, 1024, %s45, [#allocation7], 64, 64, 4
    $region13: #{tpu_custom_call.1} parent=1 // pred_fallthru
      _
    // Predicated region
    $region14: #{tpu_custom_call.1} parent=1 // pred_check
      _
    $region15: #{tpu_custom_call.1} parent=1 // pred_check_branch
      %52 = sbr.rel (0) target = $region17
    $region16: #{tpu_custom_call.1} parent=1 // pred_region
      _
    $region17: #{tpu_custom_call.1} parent=1 // pred_fallthru
      _
    // Predicated region
    $region18: #{tpu_custom_call.1} parent=1 // pred_check
      _
    $region19: #{tpu_custom_call.1} parent=1 // pred_check_branch
      %54 = sbr.rel (0) target = $region21
    $region20: #{tpu_custom_call.1} parent=1 // pred_region
      %56 = dma.done [#allocation4], 16384
    $region21: #{tpu_custom_call.1} parent=1 // pred_fallthru
      _
    // Predicated region
    $region22: #{tpu_custom_call.1} parent=1 // pred_check
      _
    $region23: #{tpu_custom_call.1} parent=1 // pred_check_branch
      %58 = sbr.rel (0) target = $region25
    $region24: #{tpu_custom_call.1} parent=1 // pred_region
      %60 = dma.done [#allocation7], 4096
    $region25: #{tpu_custom_call.1} parent=1 // pred_fallthru
      _
    // Predicated region
    $region26: #{tpu_custom_call.1} parent=1 // pred_check
      _
    $region27: #{tpu_custom_call.1} parent=1 // pred_check_branch
      %62 = sbr.rel (0) target = $region29
    $region28: #{tpu_custom_call.1} parent=1 // pred_region
      %64 = dma.done [#allocation7], 1024
    $region29: #{tpu_custom_call.1} parent=1 // pred_fallthru
      _
    %v65 = vld [vmem:[#allocation6] sm:$0xf]
    %v66 = vld [vmem:[#allocation6 + $0x4] sm:$0xf]
    %v67 = vld [vmem:[#allocation6 + $0x8] sm:$0xf]
    %v68 = vld [vmem:[#allocation6 + $0xc] sm:$0xf]
    %v69 = vld [vmem:[#allocation6 + $0x10] sm:$0xf]
    %v70 = vld [vmem:[#allocation6 + $0x14] sm:$0xf]
    %v71 = vld [vmem:[#allocation6 + $0x18] sm:$0xf]
    %v72 = vld [vmem:[#allocation6 + $0x1c] sm:$0xf]
    %v73 = vld [vmem:[#allocation6 + $0x20] sm:$0xf]
    %v74 = vld [vmem:[#allocation6 + $0x24] sm:$0xf]
    %v75 = vld [vmem:[#allocation6 + $0x28] sm:$0xf]
    %v76 = vld [vmem:[#allocation6 + $0x2c] sm:$0xf]
    %v77 = vld [vmem:[#allocation6 + $0x30] sm:$0xf]
    %v78 = vld [vmem:[#allocation6 + $0x34] sm:$0xf]
    %v79 = vld [vmem:[#allocation6 + $0x38] sm:$0xf]
    %v80 = vld [vmem:[#allocation6 + $0x3c] sm:$0xf]
    %v81 = vld [vmem:[#allocation6 + $0x40] sm:$0xf]
    %v82 = vld [vmem:[#allocation6 + $0x44] sm:$0xf]
    %v83 = vld [vmem:[#allocation6 + $0x48] sm:$0xf]
    %v84 = vld [vmem:[#allocation6 + $0x4c] sm:$0xf]
    %v85 = vld [vmem:[#allocation6 + $0x50] sm:$0xf]
    %v86 = vld [vmem:[#allocation6 + $0x54] sm:$0xf]
    %v87 = vld [vmem:[#allocation6 + $0x58] sm:$0xf]
    %v88 = vld [vmem:[#allocation6 + $0x5c] sm:$0xf]
    %v89 = vld [vmem:[#allocation6 + $0x60] sm:$0xf]
    %v90 = vld [vmem:[#allocation6 + $0x64] sm:$0xf]
    %v91 = vld [vmem:[#allocation6 + $0x68] sm:$0xf]
    %v92 = vld [vmem:[#allocation6 + $0x6c] sm:$0xf]
    %v93 = vld [vmem:[#allocation6 + $0x70] sm:$0xf]
    %v94 = vld [vmem:[#allocation6 + $0x74] sm:$0xf]
    %v95 = vld [vmem:[#allocation6 + $0x78] sm:$0xf]
    %v96 = vld [vmem:[#allocation6 + $0x7c] sm:$0xf]
    %v97 = vld [vmem:[#allocation6 + $0x80] sm:$0xf]
    %v98 = vld [vmem:[#allocation6 + $0x84] sm:$0xf]
    %v99 = vld [vmem:[#allocation6 + $0x88] sm:$0xf]
    %v100 = vld [vmem:[#allocation6 + $0x8c] sm:$0xf]
    %v101 = vld [vmem:[#allocation6 + $0x90] sm:$0xf]
    %v102 = vld [vmem:[#allocation6 + $0x94] sm:$0xf]
    %v103 = vld [vmem:[#allocation6 + $0x98] sm:$0xf]
    %v104 = vld [vmem:[#allocation6 + $0x9c] sm:$0xf]
    %v105 = vld [vmem:[#allocation6 + $0xa0] sm:$0xf]
    %v106 = vld [vmem:[#allocation6 + $0xa4] sm:$0xf]
    %v107 = vld [vmem:[#allocation6 + $0xa8] sm:$0xf]
    %v108 = vld [vmem:[#allocation6 + $0xac] sm:$0xf]
    %v109 = vld [vmem:[#allocation6 + $0xb0] sm:$0xf]
    %v110 = vld [vmem:[#allocation6 + $0xb4] sm:$0xf]
    %v111 = vld [vmem:[#allocation6 + $0xb8] sm:$0xf]
    %v112 = vld [vmem:[#allocation6 + $0xbc] sm:$0xf]
    %v113 = vld [vmem:[#allocation6 + $0xc0] sm:$0xf]
    %v114 = vld [vmem:[#allocation6 + $0xc4] sm:$0xf]
    %v115 = vld [vmem:[#allocation6 + $0xc8] sm:$0xf]
    %v116 = vld [vmem:[#allocation6 + $0xcc] sm:$0xf]
    %v117 = vld [vmem:[#allocation6 + $0xd0] sm:$0xf]
    %v118 = vld [vmem:[#allocation6 + $0xd4] sm:$0xf]
    %v119 = vld [vmem:[#allocation6 + $0xd8] sm:$0xf]
    %v120 = vld [vmem:[#allocation6 + $0xdc] sm:$0xf]
    %v121 = vld [vmem:[#allocation6 + $0xe0] sm:$0xf]
    %v122 = vld [vmem:[#allocation6 + $0xe4] sm:$0xf]
    %v123 = vld [vmem:[#allocation6 + $0xe8] sm:$0xf]
    %v124 = vld [vmem:[#allocation6 + $0xec] sm:$0xf]
    %v125 = vld [vmem:[#allocation6 + $0xf0] sm:$0xf]
    %v126 = vld [vmem:[#allocation6 + $0xf4] sm:$0xf]
    %v127 = vld [vmem:[#allocation6 + $0xf8] sm:$0xf]
    %v128 = vld [vmem:[#allocation6 + $0xfc] sm:$0xf]
    %v129 = vld [vmem:[#allocation8] sm:$0xf]
    %v130 = vld [vmem:[#allocation8 + $0x4] sm:$0xf]
    %v131 = vld [vmem:[#allocation8 + $0x8] sm:$0xf]
    %v132 = vld [vmem:[#allocation8 + $0xc] sm:$0xf]
    %v133 = vld [vmem:[#allocation8 + $0x10] sm:$0xf]
    %v134 = vld [vmem:[#allocation8 + $0x14] sm:$0xf]
    %v135 = vld [vmem:[#allocation8 + $0x18] sm:$0xf]
    %v136 = vld [vmem:[#allocation8 + $0x1c] sm:$0xf]
    %v137 = vld [vmem:[#allocation8 + $0x20] sm:$0xf]
    %v138 = vld [vmem:[#allocation8 + $0x24] sm:$0xf]
    %v139 = vld [vmem:[#allocation8 + $0x28] sm:$0xf]
    %v140 = vld [vmem:[#allocation8 + $0x2c] sm:$0xf]
    %v141 = vld [vmem:[#allocation8 + $0x30] sm:$0xf]
    %v142 = vld [vmem:[#allocation8 + $0x34] sm:$0xf]
    %v143 = vld [vmem:[#allocation8 + $0x38] sm:$0xf]
    %v144 = vld [vmem:[#allocation8 + $0x3c] sm:$0xf]
    %v209 = vunpack.c.l.b16 %v65
    %v210 = vunpack.c.l.b16 %v66
    %v211 = vunpack.c.l.b16 %v67
    %v212 = vunpack.c.l.b16 %v68
    %v213 = vunpack.c.l.b16 %v69
    %v214 = vunpack.c.l.b16 %v70
    %v215 = vunpack.c.l.b16 %v71
    %v216 = vunpack.c.l.b16 %v72
    %v217 = vunpack.c.l.b16 %v73
    %v218 = vunpack.c.l.b16 %v74
    %v219 = vunpack.c.l.b16 %v75
    %v220 = vunpack.c.l.b16 %v76
    %v221 = vunpack.c.l.b16 %v77
    %v222 = vunpack.c.l.b16 %v78
    %v223 = vunpack.c.l.b16 %v79
    %v224 = vunpack.c.l.b16 %v80
    %v225 = vunpack.c.l.b16 %v81
    %v226 = vunpack.c.l.b16 %v82
    %v227 = vunpack.c.l.b16 %v83
    %v228 = vunpack.c.l.b16 %v84
    %v229 = vunpack.c.l.b16 %v85
    %v230 = vunpack.c.l.b16 %v86
    %v231 = vunpack.c.l.b16 %v87
    %v232 = vunpack.c.l.b16 %v88
    %v233 = vunpack.c.l.b16 %v89
    %v234 = vunpack.c.l.b16 %v90
    %v235 = vunpack.c.l.b16 %v91
    %v236 = vunpack.c.l.b16 %v92
    %v237 = vunpack.c.l.b16 %v93
    %v238 = vunpack.c.l.b16 %v94
    %v239 = vunpack.c.l.b16 %v95
    %v240 = vunpack.c.l.b16 %v96
    %v241 = vunpack.c.l.b16 %v97
    %v242 = vunpack.c.l.b16 %v98
    %v243 = vunpack.c.l.b16 %v99
    %v244 = vunpack.c.l.b16 %v100
    %v245 = vunpack.c.l.b16 %v101
    %v246 = vunpack.c.l.b16 %v102
    %v247 = vunpack.c.l.b16 %v103
    %v248 = vunpack.c.l.b16 %v104
    %v249 = vunpack.c.l.b16 %v105
    %v250 = vunpack.c.l.b16 %v106
    %v251 = vunpack.c.l.b16 %v107
    %v252 = vunpack.c.l.b16 %v108
    %v253 = vunpack.c.l.b16 %v109
    %v254 = vunpack.c.l.b16 %v110
    %v255 = vunpack.c.l.b16 %v111
    %v256 = vunpack.c.l.b16 %v112
    %v257 = vunpack.c.l.b16 %v113
    %v258 = vunpack.c.l.b16 %v114
    %v259 = vunpack.c.l.b16 %v115
    %v260 = vunpack.c.l.b16 %v116
    %v261 = vunpack.c.l.b16 %v117
    %v262 = vunpack.c.l.b16 %v118
    %v263 = vunpack.c.l.b16 %v119
    %v264 = vunpack.c.l.b16 %v120
    %v265 = vunpack.c.l.b16 %v121
    %v266 = vunpack.c.l.b16 %v122
    %v267 = vunpack.c.l.b16 %v123
    %v268 = vunpack.c.l.b16 %v124
    %v269 = vunpack.c.l.b16 %v125
    %v270 = vunpack.c.l.b16 %v126
    %v271 = vunpack.c.l.b16 %v127
    %v272 = vunpack.c.l.b16 %v128
    %v273 = vpack.c.b16 %v210, %v209
    %v274 = vpack.c.b16 %v212, %v211
    %v275 = vpack.c.b16 %v214, %v213
    %v276 = vpack.c.b16 %v216, %v215
    %v277 = vpack.c.b16 %v218, %v217
    %v278 = vpack.c.b16 %v220, %v219
    %v279 = vpack.c.b16 %v222, %v221
    %v280 = vpack.c.b16 %v224, %v223
    %v281 = vpack.c.b16 %v226, %v225
    %v282 = vpack.c.b16 %v228, %v227
    %v283 = vpack.c.b16 %v230, %v229
    %v284 = vpack.c.b16 %v232, %v231
    %v285 = vpack.c.b16 %v234, %v233
    %v286 = vpack.c.b16 %v236, %v235
    %v287 = vpack.c.b16 %v238, %v237
    %v288 = vpack.c.b16 %v240, %v239
    %v289 = vpack.c.b16 %v242, %v241
    %v290 = vpack.c.b16 %v244, %v243
    %v291 = vpack.c.b16 %v246, %v245
    %v292 = vpack.c.b16 %v248, %v247
    %v293 = vpack.c.b16 %v250, %v249
    %v294 = vpack.c.b16 %v252, %v251
    %v295 = vpack.c.b16 %v254, %v253
    %v296 = vpack.c.b16 %v256, %v255
    %v297 = vpack.c.b16 %v258, %v257
    %v298 = vpack.c.b16 %v260, %v259
    %v299 = vpack.c.b16 %v262, %v261
    %v300 = vpack.c.b16 %v264, %v263
    %v301 = vpack.c.b16 %v266, %v265
    %v302 = vpack.c.b16 %v268, %v267
    %v303 = vpack.c.b16 %v270, %v269
    %v304 = vpack.c.b16 %v272, %v271
    %v353 = vunpack.c.l.b16 %v129
    %v354 = vunpack.c.l.b16 %v130
    %v355 = vunpack.c.l.b16 %v131
    %v356 = vunpack.c.l.b16 %v132
    %v357 = vunpack.c.l.b16 %v133
    %v358 = vunpack.c.l.b16 %v134
    %v359 = vunpack.c.l.b16 %v135
    %v360 = vunpack.c.l.b16 %v136
    %v361 = vunpack.c.l.b16 %v137
    %v362 = vunpack.c.l.b16 %v138
    %v363 = vunpack.c.l.b16 %v139
    %v364 = vunpack.c.l.b16 %v140
    %v365 = vunpack.c.l.b16 %v141
    %v366 = vunpack.c.l.b16 %v142
    %v367 = vunpack.c.l.b16 %v143
    %v368 = vunpack.c.l.b16 %v144
    %v369 = vpack.c.b16 %v354, %v353
    %v370 = vpack.c.b16 %v356, %v355
    %v371 = vpack.c.b16 %v358, %v357
    %v372 = vpack.c.b16 %v360, %v359
    %v373 = vpack.c.b16 %v362, %v361
    %v374 = vpack.c.b16 %v364, %v363
    %v375 = vpack.c.b16 %v366, %v365
    %v376 = vpack.c.b16 %v368, %v367
    %385 = vmatpush.bf16.msra.mxu0 %v376
    %386 = vmatpush.bf16.msra.mxu0 %v375
    %387 = vmatpush.bf16.msra.mxu0 %v374
    %388 = vmatpush.bf16.msra.mxu0 %v373
    %389 = vmatpush.bf16.msra.mxu0 %v372
    %390 = vmatpush.bf16.msra.mxu0 %v371
    %391 = vmatpush.bf16.msra.mxu0 %v370
    %392 = vmatpush.bf16.msra.mxu0 %v369
    %393 = vmatmul.bf16.gmra.mxu0 %v273
    %v394 = vpop.f32.mrf.mxu0
    %v395 = vadd.f32 0.0, %v394
    %v396 = vpop.f32.mrf.mxu0
    %v397 = vadd.f32 0.0, %v396
    %398 = vmatmul.bf16.gmra.mxu0 %v274
    %v399 = vpop.f32.mrf.mxu0
    %v400 = vadd.f32 0.0, %v399
    %v401 = vpop.f32.mrf.mxu0
    %v402 = vadd.f32 0.0, %v401
    %403 = vmatmul.bf16.gmra.mxu0 %v275
    %v404 = vpop.f32.mrf.mxu0
    %v405 = vadd.f32 0.0, %v404
    %v406 = vpop.f32.mrf.mxu0
    %v407 = vadd.f32 0.0, %v406
    %408 = vmatmul.bf16.gmra.mxu0 %v276
    %v409 = vpop.f32.mrf.mxu0
    %v410 = vadd.f32 0.0, %v409
    %v411 = vpop.f32.mrf.mxu0
    %v412 = vadd.f32 0.0, %v411
    %413 = vmatmul.bf16.gmra.mxu0 %v277
    %v414 = vpop.f32.mrf.mxu0
    %v415 = vadd.f32 0.0, %v414
    %v416 = vpop.f32.mrf.mxu0
    %v417 = vadd.f32 0.0, %v416
    %418 = vmatmul.bf16.gmra.mxu0 %v278
    %v419 = vpop.f32.mrf.mxu0
    %v420 = vadd.f32 0.0, %v419
    %v421 = vpop.f32.mrf.mxu0
    %v422 = vadd.f32 0.0, %v421
    %423 = vmatmul.bf16.gmra.mxu0 %v279
    %v424 = vpop.f32.mrf.mxu0
    %v425 = vadd.f32 0.0, %v424
    %v426 = vpop.f32.mrf.mxu0
    %v427 = vadd.f32 0.0, %v426
    %428 = vmatmul.bf16.gmra.mxu0 %v280
    %v429 = vpop.f32.mrf.mxu0
    %v430 = vadd.f32 0.0, %v429
    %v431 = vpop.f32.mrf.mxu0
    %v432 = vadd.f32 0.0, %v431
    %433 = vmatmul.bf16.gmra.mxu0 %v281
    %v434 = vpop.f32.mrf.mxu0
    %v435 = vadd.f32 0.0, %v434
    %v436 = vpop.f32.mrf.mxu0
    %v437 = vadd.f32 0.0, %v436
    %438 = vmatmul.bf16.gmra.mxu0 %v282
    %v439 = vpop.f32.mrf.mxu0
    %v440 = vadd.f32 0.0, %v439
    %v441 = vpop.f32.mrf.mxu0
    %v442 = vadd.f32 0.0, %v441
    %443 = vmatmul.bf16.gmra.mxu0 %v283
    %v444 = vpop.f32.mrf.mxu0
    %v445 = vadd.f32 0.0, %v444
    %v446 = vpop.f32.mrf.mxu0
    %v447 = vadd.f32 0.0, %v446
    %448 = vmatmul.bf16.gmra.mxu0 %v284
    %v449 = vpop.f32.mrf.mxu0
    %v450 = vadd.f32 0.0, %v449
    %v451 = vpop.f32.mrf.mxu0
    %v452 = vadd.f32 0.0, %v451
    %453 = vmatmul.bf16.gmra.mxu0 %v285
    %v454 = vpop.f32.mrf.mxu0
    %v455 = vadd.f32 0.0, %v454
    %v456 = vpop.f32.mrf.mxu0
    %v457 = vadd.f32 0.0, %v456
    %458 = vmatmul.bf16.gmra.mxu0 %v286
    %v459 = vpop.f32.mrf.mxu0
    %v460 = vadd.f32 0.0, %v459
    %v461 = vpop.f32.mrf.mxu0
    %v462 = vadd.f32 0.0, %v461
    %463 = vmatmul.bf16.gmra.mxu0 %v287
    %v464 = vpop.f32.mrf.mxu0
    %v465 = vadd.f32 0.0, %v464
    %v466 = vpop.f32.mrf.mxu0
    %v467 = vadd.f32 0.0, %v466
    %468 = vmatmul.bf16.gmra.mxu0 %v288
    %v469 = vpop.f32.mrf.mxu0
    %v470 = vadd.f32 0.0, %v469
    %v471 = vpop.f32.mrf.mxu0
    %v472 = vadd.f32 0.0, %v471
    %473 = vmatmul.bf16.gmra.mxu0 %v289
    %v474 = vpop.f32.mrf.mxu0
    %v475 = vadd.f32 0.0, %v474
    %v476 = vpop.f32.mrf.mxu0
    %v477 = vadd.f32 0.0, %v476
    %478 = vmatmul.bf16.gmra.mxu0 %v290
    %v479 = vpop.f32.mrf.mxu0
    %v480 = vadd.f32 0.0, %v479
    %v481 = vpop.f32.mrf.mxu0
    %v482 = vadd.f32 0.0, %v481
    %483 = vmatmul.bf16.gmra.mxu0 %v291
    %v484 = vpop.f32.mrf.mxu0
    %v485 = vadd.f32 0.0, %v484
    %v486 = vpop.f32.mrf.mxu0
    %v487 = vadd.f32 0.0, %v486
    %488 = vmatmul.bf16.gmra.mxu0 %v292
    %v489 = vpop.f32.mrf.mxu0
    %v490 = vadd.f32 0.0, %v489
    %v491 = vpop.f32.mrf.mxu0
    %v492 = vadd.f32 0.0, %v491
    %493 = vmatmul.bf16.gmra.mxu0 %v293
    %v494 = vpop.f32.mrf.mxu0
    %v495 = vadd.f32 0.0, %v494
    %v496 = vpop.f32.mrf.mxu0
    %v497 = vadd.f32 0.0, %v496
    %498 = vmatmul.bf16.gmra.mxu0 %v294
    %v499 = vpop.f32.mrf.mxu0
    %v500 = vadd.f32 0.0, %v499
    %v501 = vpop.f32.mrf.mxu0
    %v502 = vadd.f32 0.0, %v501
    %503 = vmatmul.bf16.gmra.mxu0 %v295
    %v504 = vpop.f32.mrf.mxu0
    %v505 = vadd.f32 0.0, %v504
    %v506 = vpop.f32.mrf.mxu0
    %v507 = vadd.f32 0.0, %v506
    %508 = vmatmul.bf16.gmra.mxu0 %v296
    %v509 = vpop.f32.mrf.mxu0
    %v510 = vadd.f32 0.0, %v509
    %v511 = vpop.f32.mrf.mxu0
    %v512 = vadd.f32 0.0, %v511
    %513 = vmatmul.bf16.gmra.mxu0 %v297
    %v514 = vpop.f32.mrf.mxu0
    %v515 = vadd.f32 0.0, %v514
    %v516 = vpop.f32.mrf.mxu0
    %v517 = vadd.f32 0.0, %v516
    %518 = vmatmul.bf16.gmra.mxu0 %v298
    %v519 = vpop.f32.mrf.mxu0
    %v520 = vadd.f32 0.0, %v519
    %v521 = vpop.f32.mrf.mxu0
    %v522 = vadd.f32 0.0, %v521
    %523 = vmatmul.bf16.gmra.mxu0 %v299
    %v524 = vpop.f32.mrf.mxu0
    %v525 = vadd.f32 0.0, %v524
    %v526 = vpop.f32.mrf.mxu0
    %v527 = vadd.f32 0.0, %v526
    %528 = vmatmul.bf16.gmra.mxu0 %v300
    %v529 = vpop.f32.mrf.mxu0
    %v530 = vadd.f32 0.0, %v529
    %v531 = vpop.f32.mrf.mxu0
    %v532 = vadd.f32 0.0, %v531
    %533 = vmatmul.bf16.gmra.mxu0 %v301
    %v534 = vpop.f32.mrf.mxu0
    %v535 = vadd.f32 0.0, %v534
    %v536 = vpop.f32.mrf.mxu0
    %v537 = vadd.f32 0.0, %v536
    %538 = vmatmul.bf16.gmra.mxu0 %v302
    %v539 = vpop.f32.mrf.mxu0
    %v540 = vadd.f32 0.0, %v539
    %v541 = vpop.f32.mrf.mxu0
    %v542 = vadd.f32 0.0, %v541
    %543 = vmatmul.bf16.gmra.mxu0 %v303
    %v544 = vpop.f32.mrf.mxu0
    %v545 = vadd.f32 0.0, %v544
    %v546 = vpop.f32.mrf.mxu0
    %v547 = vadd.f32 0.0, %v546
    %548 = vmatmul.bf16.gmra.mxu0 %v304
    %v549 = vpop.f32.mrf.mxu0
    %v550 = vadd.f32 0.0, %v549
    %v551 = vpop.f32.mrf.mxu0
    %v552 = vadd.f32 0.0, %v551
    %553 = vdwg.mxu0
    %554 = vst [vmem:[#allocation2] sm:$0xff] %v395
    %555 = vst [vmem:[#allocation2 + $0x8] sm:$0xff] %v397
    %556 = vst [vmem:[#allocation2 + $0x10] sm:$0xff] %v400
    %557 = vst [vmem:[#allocation2 + $0x18] sm:$0xff] %v402
    %558 = vst [vmem:[#allocation2 + $0x20] sm:$0xff] %v405
    %559 = vst [vmem:[#allocation2 + $0x28] sm:$0xff] %v407
    %560 = vst [vmem:[#allocation2 + $0x30] sm:$0xff] %v410
    %561 = vst [vmem:[#allocation2 + $0x38] sm:$0xff] %v412
    %562 = vst [vmem:[#allocation2 + $0x40] sm:$0xff] %v415
    %563 = vst [vmem:[#allocation2 + $0x48] sm:$0xff] %v417
    %564 = vst [vmem:[#allocation2 + $0x50] sm:$0xff] %v420
    %565 = vst [vmem:[#allocation2 + $0x58] sm:$0xff] %v422
    %566 = vst [vmem:[#allocation2 + $0x60] sm:$0xff] %v425
    %567 = vst [vmem:[#allocation2 + $0x68] sm:$0xff] %v427
    %568 = vst [vmem:[#allocation2 + $0x70] sm:$0xff] %v430
    %569 = vst [vmem:[#allocation2 + $0x78] sm:$0xff] %v432
    %570 = vst [vmem:[#allocation2 + $0x80] sm:$0xff] %v435
    %571 = vst [vmem:[#allocation2 + $0x88] sm:$0xff] %v437
    %572 = vst [vmem:[#allocation2 + $0x90] sm:$0xff] %v440
    %573 = vst [vmem:[#allocation2 + $0x98] sm:$0xff] %v442
    %574 = vst [vmem:[#allocation2 + $0xa0] sm:$0xff] %v445
    %575 = vst [vmem:[#allocation2 + $0xa8] sm:$0xff] %v447
    %576 = vst [vmem:[#allocation2 + $0xb0] sm:$0xff] %v450
    %577 = vst [vmem:[#allocation2 + $0xb8] sm:$0xff] %v452
    %578 = vst [vmem:[#allocation2 + $0xc0] sm:$0xff] %v455
    %579 = vst [vmem:[#allocation2 + $0xc8] sm:$0xff] %v457
    %580 = vst [vmem:[#allocation2 + $0xd0] sm:$0xff] %v460
    %581 = vst [vmem:[#allocation2 + $0xd8] sm:$0xff] %v462
    %582 = vst [vmem:[#allocation2 + $0xe0] sm:$0xff] %v465
    %583 = vst [vmem:[#allocation2 + $0xe8] sm:$0xff] %v467
    %584 = vst [vmem:[#allocation2 + $0xf0] sm:$0xff] %v470
    %585 = vst [vmem:[#allocation2 + $0xf8] sm:$0xff] %v472
    %586 = vst [vmem:[#allocation2 + $0x100] sm:$0xff] %v475
    %587 = vst [vmem:[#allocation2 + $0x108] sm:$0xff] %v477
    %588 = vst [vmem:[#allocation2 + $0x110] sm:$0xff] %v480
    %589 = vst [vmem:[#allocation2 + $0x118] sm:$0xff] %v482
    %590 = vst [vmem:[#allocation2 + $0x120] sm:$0xff] %v485
    %591 = vst [vmem:[#allocation2 + $0x128] sm:$0xff] %v487
    %592 = vst [vmem:[#allocation2 + $0x130] sm:$0xff] %v490
    %593 = vst [vmem:[#allocation2 + $0x138] sm:$0xff] %v492
    %594 = vst [vmem:[#allocation2 + $0x140] sm:$0xff] %v495
    %595 = vst [vmem:[#allocation2 + $0x148] sm:$0xff] %v497
    %596 = vst [vmem:[#allocation2 + $0x150] sm:$0xff] %v500
    %597 = vst [vmem:[#allocation2 + $0x158] sm:$0xff] %v502
    %598 = vst [vmem:[#allocation2 + $0x160] sm:$0xff] %v505
    %599 = vst [vmem:[#allocation2 + $0x168] sm:$0xff] %v507
    %600 = vst [vmem:[#allocation2 + $0x170] sm:$0xff] %v510
    %601 = vst [vmem:[#allocation2 + $0x178] sm:$0xff] %v512
    %602 = vst [vmem:[#allocation2 + $0x180] sm:$0xff] %v515
    %603 = vst [vmem:[#allocation2 + $0x188] sm:$0xff] %v517
    %604 = vst [vmem:[#allocation2 + $0x190] sm:$0xff] %v520
    %605 = vst [vmem:[#allocation2 + $0x198] sm:$0xff] %v522
    %606 = vst [vmem:[#allocation2 + $0x1a0] sm:$0xff] %v525
    %607 = vst [vmem:[#allocation2 + $0x1a8] sm:$0xff] %v527
    %608 = vst [vmem:[#allocation2 + $0x1b0] sm:$0xff] %v530
    %609 = vst [vmem:[#allocation2 + $0x1b8] sm:$0xff] %v532
    %610 = vst [vmem:[#allocation2 + $0x1c0] sm:$0xff] %v535
    %611 = vst [vmem:[#allocation2 + $0x1c8] sm:$0xff] %v537
    %612 = vst [vmem:[#allocation2 + $0x1d0] sm:$0xff] %v540
    %613 = vst [vmem:[#allocation2 + $0x1d8] sm:$0xff] %v542
    %614 = vst [vmem:[#allocation2 + $0x1e0] sm:$0xff] %v545
    %615 = vst [vmem:[#allocation2 + $0x1e8] sm:$0xff] %v547
    %616 = vst [vmem:[#allocation2 + $0x1f0] sm:$0xff] %v550
    %617 = vst [vmem:[#allocation2 + $0x1f8] sm:$0xff] %v552
    %v618 = vld [vmem:[#allocation3] sm:$0xff]
    %v619 = vld [vmem:[#allocation3 + $0x8] sm:$0xff]
    %v620 = vld [vmem:[#allocation3 + $0x10] sm:$0xff]
    %v621 = vld [vmem:[#allocation3 + $0x18] sm:$0xff]
    %v622 = vld [vmem:[#allocation3 + $0x20] sm:$0xff]
    %v623 = vld [vmem:[#allocation3 + $0x28] sm:$0xff]
    %v624 = vld [vmem:[#allocation3 + $0x30] sm:$0xff]
    %v625 = vld [vmem:[#allocation3 + $0x38] sm:$0xff]
    %v626 = vld [vmem:[#allocation3 + $0x40] sm:$0xff]
    %v627 = vld [vmem:[#allocation3 + $0x48] sm:$0xff]
    %v628 = vld [vmem:[#allocation3 + $0x50] sm:$0xff]
    %v629 = vld [vmem:[#allocation3 + $0x58] sm:$0xff]
    %v630 = vld [vmem:[#allocation3 + $0x60] sm:$0xff]
    %v631 = vld [vmem:[#allocation3 + $0x68] sm:$0xff]
    %v632 = vld [vmem:[#allocation3 + $0x70] sm:$0xff]
    %v633 = vld [vmem:[#allocation3 + $0x78] sm:$0xff]
    %v634 = vld [vmem:[#allocation3 + $0x80] sm:$0xff]
    %v635 = vld [vmem:[#allocation3 + $0x88] sm:$0xff]
    %v636 = vld [vmem:[#allocation3 + $0x90] sm:$0xff]
    %v637 = vld [vmem:[#allocation3 + $0x98] sm:$0xff]
    %v638 = vld [vmem:[#allocation3 + $0xa0] sm:$0xff]
    %v639 = vld [vmem:[#allocation3 + $0xa8] sm:$0xff]
    %v640 = vld [vmem:[#allocation3 + $0xb0] sm:$0xff]
    %v641 = vld [vmem:[#allocation3 + $0xb8] sm:$0xff]
    %v642 = vld [vmem:[#allocation3 + $0xc0] sm:$0xff]
    %v643 = vld [vmem:[#allocation3 + $0xc8] sm:$0xff]
    %v644 = vld [vmem:[#allocation3 + $0xd0] sm:$0xff]
    %v645 = vld [vmem:[#allocation3 + $0xd8] sm:$0xff]
    %v646 = vld [vmem:[#allocation3 + $0xe0] sm:$0xff]
    %v647 = vld [vmem:[#allocation3 + $0xe8] sm:$0xff]
    %v648 = vld [vmem:[#allocation3 + $0xf0] sm:$0xff]
    %v649 = vld [vmem:[#allocation3 + $0xf8] sm:$0xff]
    %v650 = vld [vmem:[#allocation3 + $0x100] sm:$0xff]
    %v651 = vld [vmem:[#allocation3 + $0x108] sm:$0xff]
    %v652 = vld [vmem:[#allocation3 + $0x110] sm:$0xff]
    %v653 = vld [vmem:[#allocation3 + $0x118] sm:$0xff]
    %v654 = vld [vmem:[#allocation3 + $0x120] sm:$0xff]
    %v655 = vld [vmem:[#allocation3 + $0x128] sm:$0xff]
    %v656 = vld [vmem:[#allocation3 + $0x130] sm:$0xff]
    %v657 = vld [vmem:[#allocation3 + $0x138] sm:$0xff]
    %v658 = vld [vmem:[#allocation3 + $0x140] sm:$0xff]
    %v659 = vld [vmem:[#allocation3 + $0x148] sm:$0xff]
    %v660 = vld [vmem:[#allocation3 + $0x150] sm:$0xff]
    %v661 = vld [vmem:[#allocation3 + $0x158] sm:$0xff]
    %v662 = vld [vmem:[#allocation3 + $0x160] sm:$0xff]
    %v663 = vld [vmem:[#allocation3 + $0x168] sm:$0xff]
    %v664 = vld [vmem:[#allocation3 + $0x170] sm:$0xff]
    %v665 = vld [vmem:[#allocation3 + $0x178] sm:$0xff]
    %v666 = vld [vmem:[#allocation3 + $0x180] sm:$0xff]
    %v667 = vld [vmem:[#allocation3 + $0x188] sm:$0xff]
    %v668 = vld [vmem:[#allocation3 + $0x190] sm:$0xff]
    %v669 = vld [vmem:[#allocation3 + $0x198] sm:$0xff]
    %v670 = vld [vmem:[#allocation3 + $0x1a0] sm:$0xff]
    %v671 = vld [vmem:[#allocation3 + $0x1a8] sm:$0xff]
    %v672 = vld [vmem:[#allocation3 + $0x1b0] sm:$0xff]
    %v673 = vld [vmem:[#allocation3 + $0x1b8] sm:$0xff]
    %v674 = vld [vmem:[#allocation3 + $0x1c0] sm:$0xff]
    %v675 = vld [vmem:[#allocation3 + $0x1c8] sm:$0xff]
    %v676 = vld [vmem:[#allocation3 + $0x1d0] sm:$0xff]
    %v677 = vld [vmem:[#allocation3 + $0x1d8] sm:$0xff]
    %v678 = vld [vmem:[#allocation3 + $0x1e0] sm:$0xff]
    %v679 = vld [vmem:[#allocation3 + $0x1e8] sm:$0xff]
    %v680 = vld [vmem:[#allocation3 + $0x1f0] sm:$0xff]
    %v681 = vld [vmem:[#allocation3 + $0x1f8] sm:$0xff]
    %v682 = vld [vmem:[#allocation3 + $0x200] sm:$0xff]
    %v683 = vld [vmem:[#allocation3 + $0x208] sm:$0xff]
    %v684 = vld [vmem:[#allocation3 + $0x210] sm:$0xff]
    %v685 = vld [vmem:[#allocation3 + $0x218] sm:$0xff]
    %v686 = vld [vmem:[#allocation3 + $0x220] sm:$0xff]
    %v687 = vld [vmem:[#allocation3 + $0x228] sm:$0xff]
    %v688 = vld [vmem:[#allocation3 + $0x230] sm:$0xff]
    %v689 = vld [vmem:[#allocation3 + $0x238] sm:$0xff]
    %v690 = vld [vmem:[#allocation3 + $0x240] sm:$0xff]
    %v691 = vld [vmem:[#allocation3 + $0x248] sm:$0xff]
    %v692 = vld [vmem:[#allocation3 + $0x250] sm:$0xff]
    %v693 = vld [vmem:[#allocation3 + $0x258] sm:$0xff]
    %v694 = vld [vmem:[#allocation3 + $0x260] sm:$0xff]
    %v695 = vld [vmem:[#allocation3 + $0x268] sm:$0xff]
    %v696 = vld [vmem:[#allocation3 + $0x270] sm:$0xff]
    %v697 = vld [vmem:[#allocation3 + $0x278] sm:$0xff]
    %v698 = vld [vmem:[#allocation3 + $0x280] sm:$0xff]
    %v699 = vld [vmem:[#allocation3 + $0x288] sm:$0xff]
    %v700 = vld [vmem:[#allocation3 + $0x290] sm:$0xff]
    %v701 = vld [vmem:[#allocation3 + $0x298] sm:$0xff]
    %v702 = vld [vmem:[#allocation3 + $0x2a0] sm:$0xff]
    %v703 = vld [vmem:[#allocation3 + $0x2a8] sm:$0xff]
    %v704 = vld [vmem:[#allocation3 + $0x2b0] sm:$0xff]
    %v705 = vld [vmem:[#allocation3 + $0x2b8] sm:$0xff]
    %v706 = vld [vmem:[#allocation3 + $0x2c0] sm:$0xff]
    %v707 = vld [vmem:[#allocation3 + $0x2c8] sm:$0xff]
    %v708 = vld [vmem:[#allocation3 + $0x2d0] sm:$0xff]
    %v709 = vld [vmem:[#allocation3 + $0x2d8] sm:$0xff]
    %v710 = vld [vmem:[#allocation3 + $0x2e0] sm:$0xff]
    %v711 = vld [vmem:[#allocation3 + $0x2e8] sm:$0xff]
    %v712 = vld [vmem:[#allocation3 + $0x2f0] sm:$0xff]
    %v713 = vld [vmem:[#allocation3 + $0x2f8] sm:$0xff]
    %v714 = vld [vmem:[#allocation3 + $0x300] sm:$0xff]
    %v715 = vld [vmem:[#allocation3 + $0x308] sm:$0xff]
    %v716 = vld [vmem:[#allocation3 + $0x310] sm:$0xff]
    %v717 = vld [vmem:[#allocation3 + $0x318] sm:$0xff]
    %v718 = vld [vmem:[#allocation3 + $0x320] sm:$0xff]
    %v719 = vld [vmem:[#allocation3 + $0x328] sm:$0xff]
    %v720 = vld [vmem:[#allocation3 + $0x330] sm:$0xff]
    %v721 = vld [vmem:[#allocation3 + $0x338] sm:$0xff]
    %v722 = vld [vmem:[#allocation3 + $0x340] sm:$0xff]
    %v723 = vld [vmem:[#allocation3 + $0x348] sm:$0xff]
    %v724 = vld [vmem:[#allocation3 + $0x350] sm:$0xff]
    %v725 = vld [vmem:[#allocation3 + $0x358] sm:$0xff]
    %v726 = vld [vmem:[#allocation3 + $0x360] sm:$0xff]
    %v727 = vld [vmem:[#allocation3 + $0x368] sm:$0xff]
    %v728 = vld [vmem:[#allocation3 + $0x370] sm:$0xff]
    %v729 = vld [vmem:[#allocation3 + $0x378] sm:$0xff]
    %v730 = vld [vmem:[#allocation3 + $0x380] sm:$0xff]
    %v731 = vld [vmem:[#allocation3 + $0x388] sm:$0xff]
    %v732 = vld [vmem:[#allocation3 + $0x390] sm:$0xff]
    %v733 = vld [vmem:[#allocation3 + $0x398] sm:$0xff]
    %v734 = vld [vmem:[#allocation3 + $0x3a0] sm:$0xff]
    %v735 = vld [vmem:[#allocation3 + $0x3a8] sm:$0xff]
    %v736 = vld [vmem:[#allocation3 + $0x3b0] sm:$0xff]
    %v737 = vld [vmem:[#allocation3 + $0x3b8] sm:$0xff]
    %v738 = vld [vmem:[#allocation3 + $0x3c0] sm:$0xff]
    %v739 = vld [vmem:[#allocation3 + $0x3c8] sm:$0xff]
    %v740 = vld [vmem:[#allocation3 + $0x3d0] sm:$0xff]
    %v741 = vld [vmem:[#allocation3 + $0x3d8] sm:$0xff]
    %v742 = vld [vmem:[#allocation3 + $0x3e0] sm:$0xff]
    %v743 = vld [vmem:[#allocation3 + $0x3e8] sm:$0xff]
    %v744 = vld [vmem:[#allocation3 + $0x3f0] sm:$0xff]
    %v745 = vld [vmem:[#allocation3 + $0x3f8] sm:$0xff]
    %v746 = vld [vmem:[#allocation2] sm:$0xff]
    %v747 = vld [vmem:[#allocation2 + $0x8] sm:$0xff]
    %v748 = vld [vmem:[#allocation2 + $0x10] sm:$0xff]
    %v749 = vld [vmem:[#allocation2 + $0x18] sm:$0xff]
    %v750 = vld [vmem:[#allocation2 + $0x20] sm:$0xff]
    %v751 = vld [vmem:[#allocation2 + $0x28] sm:$0xff]
    %v752 = vld [vmem:[#allocation2 + $0x30] sm:$0xff]
    %v753 = vld [vmem:[#allocation2 + $0x38] sm:$0xff]
    %v754 = vld [vmem:[#allocation2 + $0x40] sm:$0xff]
    %v755 = vld [vmem:[#allocation2 + $0x48] sm:$0xff]
    %v756 = vld [vmem:[#allocation2 + $0x50] sm:$0xff]
    %v757 = vld [vmem:[#allocation2 + $0x58] sm:$0xff]
    %v758 = vld [vmem:[#allocation2 + $0x60] sm:$0xff]
    %v759 = vld [vmem:[#allocation2 + $0x68] sm:$0xff]
    %v760 = vld [vmem:[#allocation2 + $0x70] sm:$0xff]
    %v761 = vld [vmem:[#allocation2 + $0x78] sm:$0xff]
    %v762 = vld [vmem:[#allocation2 + $0x80] sm:$0xff]
    %v763 = vld [vmem:[#allocation2 + $0x88] sm:$0xff]
    %v764 = vld [vmem:[#allocation2 + $0x90] sm:$0xff]
    %v765 = vld [vmem:[#allocation2 + $0x98] sm:$0xff]
    %v766 = vld [vmem:[#allocation2 + $0xa0] sm:$0xff]
    %v767 = vld [vmem:[#allocation2 + $0xa8] sm:$0xff]
    %v768 = vld [vmem:[#allocation2 + $0xb0] sm:$0xff]
    %v769 = vld [vmem:[#allocation2 + $0xb8] sm:$0xff]
    %v770 = vld [vmem:[#allocation2 + $0xc0] sm:$0xff]
    %v771 = vld [vmem:[#allocation2 + $0xc8] sm:$0xff]
    %v772 = vld [vmem:[#allocation2 + $0xd0] sm:$0xff]
    %v773 = vld [vmem:[#allocation2 + $0xd8] sm:$0xff]
    %v774 = vld [vmem:[#allocation2 + $0xe0] sm:$0xff]
    %v775 = vld [vmem:[#allocation2 + $0xe8] sm:$0xff]
    %v776 = vld [vmem:[#allocation2 + $0xf0] sm:$0xff]
    %v777 = vld [vmem:[#allocation2 + $0xf8] sm:$0xff]
    %v778 = vld [vmem:[#allocation2 + $0x100] sm:$0xff]
    %v779 = vld [vmem:[#allocation2 + $0x108] sm:$0xff]
    %v780 = vld [vmem:[#allocation2 + $0x110] sm:$0xff]
    %v781 = vld [vmem:[#allocation2 + $0x118] sm:$0xff]
    %v782 = vld [vmem:[#allocation2 + $0x120] sm:$0xff]
    %v783 = vld [vmem:[#allocation2 + $0x128] sm:$0xff]
    %v784 = vld [vmem:[#allocation2 + $0x130] sm:$0xff]
    %v785 = vld [vmem:[#allocation2 + $0x138] sm:$0xff]
    %v786 = vld [vmem:[#allocation2 + $0x140] sm:$0xff]
    %v787 = vld [vmem:[#allocation2 + $0x148] sm:$0xff]
    %v788 = vld [vmem:[#allocation2 + $0x150] sm:$0xff]
    %v789 = vld [vmem:[#allocation2 + $0x158] sm:$0xff]
    %v790 = vld [vmem:[#allocation2 + $0x160] sm:$0xff]
    %v791 = vld [vmem:[#allocation2 + $0x168] sm:$0xff]
    %v792 = vld [vmem:[#allocation2 + $0x170] sm:$0xff]
    %v793 = vld [vmem:[#allocation2 + $0x178] sm:$0xff]
    %v794 = vld [vmem:[#allocation2 + $0x180] sm:$0xff]
    %v795 = vld [vmem:[#allocation2 + $0x188] sm:$0xff]
    %v796 = vld [vmem:[#allocation2 + $0x190] sm:$0xff]
    %v797 = vld [vmem:[#allocation2 + $0x198] sm:$0xff]
    %v798 = vld [vmem:[#allocation2 + $0x1a0] sm:$0xff]
    %v799 = vld [vmem:[#allocation2 + $0x1a8] sm:$0xff]
    %v800 = vld [vmem:[#allocation2 + $0x1b0] sm:$0xff]
    %v801 = vld [vmem:[#allocation2 + $0x1b8] sm:$0xff]
    %v802 = vld [vmem:[#allocation2 + $0x1c0] sm:$0xff]
    %v803 = vld [vmem:[#allocation2 + $0x1c8] sm:$0xff]
    %v804 = vld [vmem:[#allocation2 + $0x1d0] sm:$0xff]
    %v805 = vld [vmem:[#allocation2 + $0x1d8] sm:$0xff]
    %v806 = vld [vmem:[#allocation2 + $0x1e0] sm:$0xff]
    %v807 = vld [vmem:[#allocation2 + $0x1e8] sm:$0xff]
    %v808 = vld [vmem:[#allocation2 + $0x1f0] sm:$0xff]
    %v809 = vld [vmem:[#allocation2 + $0x1f8] sm:$0xff]
    %v938 = vunpack.c.l.b16 %v618
    %v939 = vunpack.c.h.b16 %v618
    %v940 = vunpack.c.l.b16 %v619
    %v941 = vunpack.c.h.b16 %v619
    %v942 = vunpack.c.l.b16 %v620
    %v943 = vunpack.c.h.b16 %v620
    %v944 = vunpack.c.l.b16 %v621
    %v945 = vunpack.c.h.b16 %v621
    %v946 = vunpack.c.l.b16 %v622
    %v947 = vunpack.c.h.b16 %v622
    %v948 = vunpack.c.l.b16 %v623
    %v949 = vunpack.c.h.b16 %v623
    %v950 = vunpack.c.l.b16 %v624
    %v951 = vunpack.c.h.b16 %v624
    %v952 = vunpack.c.l.b16 %v625
    %v953 = vunpack.c.h.b16 %v625
    %v954 = vunpack.c.l.b16 %v626
    %v955 = vunpack.c.h.b16 %v626
    %v956 = vunpack.c.l.b16 %v627
    %v957 = vunpack.c.h.b16 %v627
    %v958 = vunpack.c.l.b16 %v628
    %v959 = vunpack.c.h.b16 %v628
    %v960 = vunpack.c.l.b16 %v629
    %v961 = vunpack.c.h.b16 %v629
    %v962 = vunpack.c.l.b16 %v630
    %v963 = vunpack.c.h.b16 %v630
    %v964 = vunpack.c.l.b16 %v631
    %v965 = vunpack.c.h.b16 %v631
    %v966 = vunpack.c.l.b16 %v632
    %v967 = vunpack.c.h.b16 %v632
    %v968 = vunpack.c.l.b16 %v633
    %v969 = vunpack.c.h.b16 %v633
    %v970 = vunpack.c.l.b16 %v634
    %v971 = vunpack.c.h.b16 %v634
    %v972 = vunpack.c.l.b16 %v635
    %v973 = vunpack.c.h.b16 %v635
    %v974 = vunpack.c.l.b16 %v636
    %v975 = vunpack.c.h.b16 %v636
    %v976 = vunpack.c.l.b16 %v637
    %v977 = vunpack.c.h.b16 %v637
    %v978 = vunpack.c.l.b16 %v638
    %v979 = vunpack.c.h.b16 %v638
    %v980 = vunpack.c.l.b16 %v639
    %v981 = vunpack.c.h.b16 %v639
    %v982 = vunpack.c.l.b16 %v640
    %v983 = vunpack.c.h.b16 %v640
    %v984 = vunpack.c.l.b16 %v641
    %v985 = vunpack.c.h.b16 %v641
    %v986 = vunpack.c.l.b16 %v642
    %v987 = vunpack.c.h.b16 %v642
    %v988 = vunpack.c.l.b16 %v643
    %v989 = vunpack.c.h.b16 %v643
    %v990 = vunpack.c.l.b16 %v644
    %v991 = vunpack.c.h.b16 %v644
    %v992 = vunpack.c.l.b16 %v645
    %v993 = vunpack.c.h.b16 %v645
    %v994 = vunpack.c.l.b16 %v646
    %v995 = vunpack.c.h.b16 %v646
    %v996 = vunpack.c.l.b16 %v647
    %v997 = vunpack.c.h.b16 %v647
    %v998 = vunpack.c.l.b16 %v648
    %v999 = vunpack.c.h.b16 %v648
    %v1000 = vunpack.c.l.b16 %v649
    %v1001 = vunpack.c.h.b16 %v649
    %v1002 = vunpack.c.l.b16 %v650
    %v1003 = vunpack.c.h.b16 %v650
    %v1004 = vunpack.c.l.b16 %v651
    %v1005 = vunpack.c.h.b16 %v651
    %v1006 = vunpack.c.l.b16 %v652
    %v1007 = vunpack.c.h.b16 %v652
    %v1008 = vunpack.c.l.b16 %v653
    %v1009 = vunpack.c.h.b16 %v653
    %v1010 = vunpack.c.l.b16 %v654
    %v1011 = vunpack.c.h.b16 %v654
    %v1012 = vunpack.c.l.b16 %v655
    %v1013 = vunpack.c.h.b16 %v655
    %v1014 = vunpack.c.l.b16 %v656
    %v1015 = vunpack.c.h.b16 %v656
    %v1016 = vunpack.c.l.b16 %v657
    %v1017 = vunpack.c.h.b16 %v657
    %v1018 = vunpack.c.l.b16 %v658
    %v1019 = vunpack.c.h.b16 %v658
    %v1020 = vunpack.c.l.b16 %v659
    %v1021 = vunpack.c.h.b16 %v659
    %v1022 = vunpack.c.l.b16 %v660
    %v1023 = vunpack.c.h.b16 %v660
    %v1024 = vunpack.c.l.b16 %v661
    %v1025 = vunpack.c.h.b16 %v661
    %v1026 = vunpack.c.l.b16 %v662
    %v1027 = vunpack.c.h.b16 %v662
    %v1028 = vunpack.c.l.b16 %v663
    %v1029 = vunpack.c.h.b16 %v663
    %v1030 = vunpack.c.l.b16 %v664
    %v1031 = vunpack.c.h.b16 %v664
    %v1032 = vunpack.c.l.b16 %v665
    %v1033 = vunpack.c.h.b16 %v665
    %v1034 = vunpack.c.l.b16 %v666
    %v1035 = vunpack.c.h.b16 %v666
    %v1036 = vunpack.c.l.b16 %v667
    %v1037 = vunpack.c.h.b16 %v667
    %v1038 = vunpack.c.l.b16 %v668
    %v1039 = vunpack.c.h.b16 %v668
    %v1040 = vunpack.c.l.b16 %v669
    %v1041 = vunpack.c.h.b16 %v669
    %v1042 = vunpack.c.l.b16 %v670
    %v1043 = vunpack.c.h.b16 %v670
    %v1044 = vunpack.c.l.b16 %v671
    %v1045 = vunpack.c.h.b16 %v671
    %v1046 = vunpack.c.l.b16 %v672
    %v1047 = vunpack.c.h.b16 %v672
    %v1048 = vunpack.c.l.b16 %v673
    %v1049 = vunpack.c.h.b16 %v673
    %v1050 = vunpack.c.l.b16 %v674
    %v1051 = vunpack.c.h.b16 %v674
    %v1052 = vunpack.c.l.b16 %v675
    %v1053 = vunpack.c.h.b16 %v675
    %v1054 = vunpack.c.l.b16 %v676
    %v1055 = vunpack.c.h.b16 %v676
    %v1056 = vunpack.c.l.b16 %v677
    %v1057 = vunpack.c.h.b16 %v677
    %v1058 = vunpack.c.l.b16 %v678
    %v1059 = vunpack.c.h.b16 %v678
    %v1060 = vunpack.c.l.b16 %v679
    %v1061 = vunpack.c.h.b16 %v679
    %v1062 = vunpack.c.l.b16 %v680
    %v1063 = vunpack.c.h.b16 %v680
    %v1064 = vunpack.c.l.b16 %v681
    %v1065 = vunpack.c.h.b16 %v681
    %v1066 = vunpack.c.l.b16 %v682
    %v1067 = vunpack.c.h.b16 %v682
    %v1068 = vunpack.c.l.b16 %v683
    %v1069 = vunpack.c.h.b16 %v683
    %v1070 = vunpack.c.l.b16 %v684
    %v1071 = vunpack.c.h.b16 %v684
    %v1072 = vunpack.c.l.b16 %v685
    %v1073 = vunpack.c.h.b16 %v685
    %v1074 = vunpack.c.l.b16 %v686
    %v1075 = vunpack.c.h.b16 %v686
    %v1076 = vunpack.c.l.b16 %v687
    %v1077 = vunpack.c.h.b16 %v687
    %v1078 = vunpack.c.l.b16 %v688
    %v1079 = vunpack.c.h.b16 %v688
    %v1080 = vunpack.c.l.b16 %v689
    %v1081 = vunpack.c.h.b16 %v689
    %v1082 = vunpack.c.l.b16 %v690
    %v1083 = vunpack.c.h.b16 %v690
    %v1084 = vunpack.c.l.b16 %v691
    %v1085 = vunpack.c.h.b16 %v691
    %v1086 = vunpack.c.l.b16 %v692
    %v1087 = vunpack.c.h.b16 %v692
    %v1088 = vunpack.c.l.b16 %v693
    %v1089 = vunpack.c.h.b16 %v693
    %v1090 = vunpack.c.l.b16 %v694
    %v1091 = vunpack.c.h.b16 %v694
    %v1092 = vunpack.c.l.b16 %v695
    %v1093 = vunpack.c.h.b16 %v695
    %v1094 = vunpack.c.l.b16 %v696
    %v1095 = vunpack.c.h.b16 %v696
    %v1096 = vunpack.c.l.b16 %v697
    %v1097 = vunpack.c.h.b16 %v697
    %v1098 = vunpack.c.l.b16 %v698
    %v1099 = vunpack.c.h.b16 %v698
    %v1100 = vunpack.c.l.b16 %v699
    %v1101 = vunpack.c.h.b16 %v699
    %v1102 = vunpack.c.l.b16 %v700
    %v1103 = vunpack.c.h.b16 %v700
    %v1104 = vunpack.c.l.b16 %v701
    %v1105 = vunpack.c.h.b16 %v701
    %v1106 = vunpack.c.l.b16 %v702
    %v1107 = vunpack.c.h.b16 %v702
    %v1108 = vunpack.c.l.b16 %v703
    %v1109 = vunpack.c.h.b16 %v703
    %v1110 = vunpack.c.l.b16 %v704
    %v1111 = vunpack.c.h.b16 %v704
    %v1112 = vunpack.c.l.b16 %v705
    %v1113 = vunpack.c.h.b16 %v705
    %v1114 = vunpack.c.l.b16 %v706
    %v1115 = vunpack.c.h.b16 %v706
    %v1116 = vunpack.c.l.b16 %v707
    %v1117 = vunpack.c.h.b16 %v707
    %v1118 = vunpack.c.l.b16 %v708
    %v1119 = vunpack.c.h.b16 %v708
    %v1120 = vunpack.c.l.b16 %v709
    %v1121 = vunpack.c.h.b16 %v709
    %v1122 = vunpack.c.l.b16 %v710
    %v1123 = vunpack.c.h.b16 %v710
    %v1124 = vunpack.c.l.b16 %v711
    %v1125 = vunpack.c.h.b16 %v711
    %v1126 = vunpack.c.l.b16 %v712
    %v1127 = vunpack.c.h.b16 %v712
    %v1128 = vunpack.c.l.b16 %v713
    %v1129 = vunpack.c.h.b16 %v713
    %v1130 = vunpack.c.l.b16 %v714
    %v1131 = vunpack.c.h.b16 %v714
    %v1132 = vunpack.c.l.b16 %v715
    %v1133 = vunpack.c.h.b16 %v715
    %v1134 = vunpack.c.l.b16 %v716
    %v1135 = vunpack.c.h.b16 %v716
    %v1136 = vunpack.c.l.b16 %v717
    %v1137 = vunpack.c.h.b16 %v717
    %v1138 = vunpack.c.l.b16 %v718
    %v1139 = vunpack.c.h.b16 %v718
    %v1140 = vunpack.c.l.b16 %v719
    %v1141 = vunpack.c.h.b16 %v719
    %v1142 = vunpack.c.l.b16 %v720
    %v1143 = vunpack.c.h.b16 %v720
    %v1144 = vunpack.c.l.b16 %v721
    %v1145 = vunpack.c.h.b16 %v721
    %v1146 = vunpack.c.l.b16 %v722
    %v1147 = vunpack.c.h.b16 %v722
    %v1148 = vunpack.c.l.b16 %v723
    %v1149 = vunpack.c.h.b16 %v723
    %v1150 = vunpack.c.l.b16 %v724
    %v1151 = vunpack.c.h.b16 %v724
    %v1152 = vunpack.c.l.b16 %v725
    %v1153 = vunpack.c.h.b16 %v725
    %v1154 = vunpack.c.l.b16 %v726
    %v1155 = vunpack.c.h.b16 %v726
    %v1156 = vunpack.c.l.b16 %v727
    %v1157 = vunpack.c.h.b16 %v727
    %v1158 = vunpack.c.l.b16 %v728
    %v1159 = vunpack.c.h.b16 %v728
    %v1160 = vunpack.c.l.b16 %v729
    %v1161 = vunpack.c.h.b16 %v729
    %v1162 = vunpack.c.l.b16 %v730
    %v1163 = vunpack.c.h.b16 %v730
    %v1164 = vunpack.c.l.b16 %v731
    %v1165 = vunpack.c.h.b16 %v731
    %v1166 = vunpack.c.l.b16 %v732
    %v1167 = vunpack.c.h.b16 %v732
    %v1168 = vunpack.c.l.b16 %v733
    %v1169 = vunpack.c.h.b16 %v733
    %v1170 = vunpack.c.l.b16 %v734
    %v1171 = vunpack.c.h.b16 %v734
    %v1172 = vunpack.c.l.b16 %v735
    %v1173 = vunpack.c.h.b16 %v735
    %v1174 = vunpack.c.l.b16 %v736
    %v1175 = vunpack.c.h.b16 %v736
    %v1176 = vunpack.c.l.b16 %v737
    %v1177 = vunpack.c.h.b16 %v737
    %v1178 = vunpack.c.l.b16 %v738
    %v1179 = vunpack.c.h.b16 %v738
    %v1180 = vunpack.c.l.b16 %v739
    %v1181 = vunpack.c.h.b16 %v739
    %v1182 = vunpack.c.l.b16 %v740
    %v1183 = vunpack.c.h.b16 %v740
    %v1184 = vunpack.c.l.b16 %v741
    %v1185 = vunpack.c.h.b16 %v741
    %v1186 = vunpack.c.l.b16 %v742
    %v1187 = vunpack.c.h.b16 %v742
    %v1188 = vunpack.c.l.b16 %v743
    %v1189 = vunpack.c.h.b16 %v743
    %v1190 = vunpack.c.l.b16 %v744
    %v1191 = vunpack.c.h.b16 %v744
    %v1192 = vunpack.c.l.b16 %v745
    %v1193 = vunpack.c.h.b16 %v745
    %v1194 = vpack.c.b16 %v942, %v938
    %v1195 = vpack.c.b16 %v943, %v939
    %v1196 = vpack.c.b16 %v944, %v940
    %v1197 = vpack.c.b16 %v945, %v941
    %v1198 = vpack.c.b16 %v950, %v946
    %v1199 = vpack.c.b16 %v951, %v947
    %v1200 = vpack.c.b16 %v952, %v948
    %v1201 = vpack.c.b16 %v953, %v949
    %v1202 = vpack.c.b16 %v958, %v954
    %v1203 = vpack.c.b16 %v959, %v955
    %v1204 = vpack.c.b16 %v960, %v956
    %v1205 = vpack.c.b16 %v961, %v957
    %v1206 = vpack.c.b16 %v966, %v962
    %v1207 = vpack.c.b16 %v967, %v963
    %v1208 = vpack.c.b16 %v968, %v964
    %v1209 = vpack.c.b16 %v969, %v965
    %v1210 = vpack.c.b16 %v974, %v970
    %v1211 = vpack.c.b16 %v975, %v971
    %v1212 = vpack.c.b16 %v976, %v972
    %v1213 = vpack.c.b16 %v977, %v973
    %v1214 = vpack.c.b16 %v982, %v978
    %v1215 = vpack.c.b16 %v983, %v979
    %v1216 = vpack.c.b16 %v984, %v980
    %v1217 = vpack.c.b16 %v985, %v981
    %v1218 = vpack.c.b16 %v990, %v986
    %v1219 = vpack.c.b16 %v991, %v987
    %v1220 = vpack.c.b16 %v992, %v988
    %v1221 = vpack.c.b16 %v993, %v989
    %v1222 = vpack.c.b16 %v998, %v994
    %v1223 = vpack.c.b16 %v999, %v995
    %v1224 = vpack.c.b16 %v1000, %v996
    %v1225 = vpack.c.b16 %v1001, %v997
    %v1226 = vpack.c.b16 %v1006, %v1002
    %v1227 = vpack.c.b16 %v1007, %v1003
    %v1228 = vpack.c.b16 %v1008, %v1004
    %v1229 = vpack.c.b16 %v1009, %v1005
    %v1230 = vpack.c.b16 %v1014, %v1010
    %v1231 = vpack.c.b16 %v1015, %v1011
    %v1232 = vpack.c.b16 %v1016, %v1012
    %v1233 = vpack.c.b16 %v1017, %v1013
    %v1234 = vpack.c.b16 %v1022, %v1018
    %v1235 = vpack.c.b16 %v1023, %v1019
    %v1236 = vpack.c.b16 %v1024, %v1020
    %v1237 = vpack.c.b16 %v1025, %v1021
    %v1238 = vpack.c.b16 %v1030, %v1026
    %v1239 = vpack.c.b16 %v1031, %v1027
    %v1240 = vpack.c.b16 %v1032, %v1028
    %v1241 = vpack.c.b16 %v1033, %v1029
    %v1242 = vpack.c.b16 %v1038, %v1034
    %v1243 = vpack.c.b16 %v1039, %v1035
    %v1244 = vpack.c.b16 %v1040, %v1036
    %v1245 = vpack.c.b16 %v1041, %v1037
    %v1246 = vpack.c.b16 %v1046, %v1042
    %v1247 = vpack.c.b16 %v1047, %v1043
    %v1248 = vpack.c.b16 %v1048, %v1044
    %v1249 = vpack.c.b16 %v1049, %v1045
    %v1250 = vpack.c.b16 %v1054, %v1050
    %v1251 = vpack.c.b16 %v1055, %v1051
    %v1252 = vpack.c.b16 %v1056, %v1052
    %v1253 = vpack.c.b16 %v1057, %v1053
    %v1254 = vpack.c.b16 %v1062, %v1058
    %v1255 = vpack.c.b16 %v1063, %v1059
    %v1256 = vpack.c.b16 %v1064, %v1060
    %v1257 = vpack.c.b16 %v1065, %v1061
    %v1258 = vpack.c.b16 %v1070, %v1066
    %v1259 = vpack.c.b16 %v1071, %v1067
    %v1260 = vpack.c.b16 %v1072, %v1068
    %v1261 = vpack.c.b16 %v1073, %v1069
    %v1262 = vpack.c.b16 %v1078, %v1074
    %v1263 = vpack.c.b16 %v1079, %v1075
    %v1264 = vpack.c.b16 %v1080, %v1076
    %v1265 = vpack.c.b16 %v1081, %v1077
    %v1266 = vpack.c.b16 %v1086, %v1082
    %v1267 = vpack.c.b16 %v1087, %v1083
    %v1268 = vpack.c.b16 %v1088, %v1084
    %v1269 = vpack.c.b16 %v1089, %v1085
    %v1270 = vpack.c.b16 %v1094, %v1090
    %v1271 = vpack.c.b16 %v1095, %v1091
    %v1272 = vpack.c.b16 %v1096, %v1092
    %v1273 = vpack.c.b16 %v1097, %v1093
    %v1274 = vpack.c.b16 %v1102, %v1098
    %v1275 = vpack.c.b16 %v1103, %v1099
    %v1276 = vpack.c.b16 %v1104, %v1100
    %v1277 = vpack.c.b16 %v1105, %v1101
    %v1278 = vpack.c.b16 %v1110, %v1106
    %v1279 = vpack.c.b16 %v1111, %v1107
    %v1280 = vpack.c.b16 %v1112, %v1108
    %v1281 = vpack.c.b16 %v1113, %v1109
    %v1282 = vpack.c.b16 %v1118, %v1114
    %v1283 = vpack.c.b16 %v1119, %v1115
    %v1284 = vpack.c.b16 %v1120, %v1116
    %v1285 = vpack.c.b16 %v1121, %v1117
    %v1286 = vpack.c.b16 %v1126, %v1122
    %v1287 = vpack.c.b16 %v1127, %v1123
    %v1288 = vpack.c.b16 %v1128, %v1124
    %v1289 = vpack.c.b16 %v1129, %v1125
    %v1290 = vpack.c.b16 %v1134, %v1130
    %v1291 = vpack.c.b16 %v1135, %v1131
    %v1292 = vpack.c.b16 %v1136, %v1132
    %v1293 = vpack.c.b16 %v1137, %v1133
    %v1294 = vpack.c.b16 %v1142, %v1138
    %v1295 = vpack.c.b16 %v1143, %v1139
    %v1296 = vpack.c.b16 %v1144, %v1140
    %v1297 = vpack.c.b16 %v1145, %v1141
    %v1298 = vpack.c.b16 %v1150, %v1146
    %v1299 = vpack.c.b16 %v1151, %v1147
    %v1300 = vpack.c.b16 %v1152, %v1148
    %v1301 = vpack.c.b16 %v1153, %v1149
    %v1302 = vpack.c.b16 %v1158, %v1154
    %v1303 = vpack.c.b16 %v1159, %v1155
    %v1304 = vpack.c.b16 %v1160, %v1156
    %v1305 = vpack.c.b16 %v1161, %v1157
    %v1306 = vpack.c.b16 %v1166, %v1162
    %v1307 = vpack.c.b16 %v1167, %v1163
    %v1308 = vpack.c.b16 %v1168, %v1164
    %v1309 = vpack.c.b16 %v1169, %v1165
    %v1310 = vpack.c.b16 %v1174, %v1170
    %v1311 = vpack.c.b16 %v1175, %v1171
    %v1312 = vpack.c.b16 %v1176, %v1172
    %v1313 = vpack.c.b16 %v1177, %v1173
    %v1314 = vpack.c.b16 %v1182, %v1178
    %v1315 = vpack.c.b16 %v1183, %v1179
    %v1316 = vpack.c.b16 %v1184, %v1180
    %v1317 = vpack.c.b16 %v1185, %v1181
    %v1318 = vpack.c.b16 %v1190, %v1186
    %v1319 = vpack.c.b16 %v1191, %v1187
    %v1320 = vpack.c.b16 %v1192, %v1188
    %v1321 = vpack.c.b16 %v1193, %v1189
    %1450 = vmatpush.msra.mxu0 %v761
    %1451 = vmatpush.msra.mxu0 %v760
    %1452 = vmatpush.msra.mxu0 %v759
    %1453 = vmatpush.msra.mxu0 %v758
    %1454 = vmatpush.msra.mxu0 %v757
    %1455 = vmatpush.msra.mxu0 %v756
    %1456 = vmatpush.msra.mxu0 %v755
    %1457 = vmatpush.msra.mxu0 %v754
    %1458 = vmatpush.msra.mxu0 %v753
    %1459 = vmatpush.msra.mxu0 %v752
    %1460 = vmatpush.msra.mxu0 %v751
    %1461 = vmatpush.msra.mxu0 %v750
    %1462 = vmatpush.msra.mxu0 %v749
    %1463 = vmatpush.msra.mxu0 %v748
    %1464 = vmatpush.msra.mxu0 %v747
    %1465 = vmatpush.msra.mxu0 %v746
    %1466 = vmatmul.bf16.gmra.mxu0 %v1194
    %v1467 = vpop.f32.mrf.mxu0
    %v1468 = vadd.f32 0.0, %v1467
    %v1469 = vpop.f32.mrf.mxu0
    %v1470 = vadd.f32 0.0, %v1469
    %1471 = vmatmul.bf16.gmra.mxu0 %v1198
    %v1472 = vpop.f32.mrf.mxu0
    %v1473 = vadd.f32 0.0, %v1472
    %v1474 = vpop.f32.mrf.mxu0
    %v1475 = vadd.f32 0.0, %v1474
    %1476 = vmatmul.bf16.gmra.mxu0 %v1202
    %v1477 = vpop.f32.mrf.mxu0
    %v1478 = vadd.f32 0.0, %v1477
    %v1479 = vpop.f32.mrf.mxu0
    %v1480 = vadd.f32 0.0, %v1479
    %1481 = vmatmul.bf16.gmra.mxu0 %v1206
    %v1482 = vpop.f32.mrf.mxu0
    %v1483 = vadd.f32 0.0, %v1482
    %v1484 = vpop.f32.mrf.mxu0
    %v1485 = vadd.f32 0.0, %v1484
    %1486 = vmatmul.bf16.gmra.mxu0 %v1210
    %v1487 = vpop.f32.mrf.mxu0
    %v1488 = vadd.f32 0.0, %v1487
    %v1489 = vpop.f32.mrf.mxu0
    %v1490 = vadd.f32 0.0, %v1489
    %1491 = vmatmul.bf16.gmra.mxu0 %v1214
    %v1492 = vpop.f32.mrf.mxu0
    %v1493 = vadd.f32 0.0, %v1492
    %v1494 = vpop.f32.mrf.mxu0
    %v1495 = vadd.f32 0.0, %v1494
    %1496 = vmatmul.bf16.gmra.mxu0 %v1218
    %v1497 = vpop.f32.mrf.mxu0
    %v1498 = vadd.f32 0.0, %v1497
    %v1499 = vpop.f32.mrf.mxu0
    %v1500 = vadd.f32 0.0, %v1499
    %1501 = vmatmul.bf16.gmra.mxu0 %v1222
    %v1502 = vpop.f32.mrf.mxu0
    %v1503 = vadd.f32 0.0, %v1502
    %v1504 = vpop.f32.mrf.mxu0
    %v1505 = vadd.f32 0.0, %v1504
    %1506 = vmatmul.bf16.gmra.mxu0 %v1226
    %v1507 = vpop.f32.mrf.mxu0
    %v1508 = vadd.f32 0.0, %v1507
    %v1509 = vpop.f32.mrf.mxu0
    %v1510 = vadd.f32 0.0, %v1509
    %1511 = vmatmul.bf16.gmra.mxu0 %v1230
    %v1512 = vpop.f32.mrf.mxu0
    %v1513 = vadd.f32 0.0, %v1512
    %v1514 = vpop.f32.mrf.mxu0
    %v1515 = vadd.f32 0.0, %v1514
    %1516 = vmatmul.bf16.gmra.mxu0 %v1234
    %v1517 = vpop.f32.mrf.mxu0
    %v1518 = vadd.f32 0.0, %v1517
    %v1519 = vpop.f32.mrf.mxu0
    %v1520 = vadd.f32 0.0, %v1519
    %1521 = vmatmul.bf16.gmra.mxu0 %v1238
    %v1522 = vpop.f32.mrf.mxu0
    %v1523 = vadd.f32 0.0, %v1522
    %v1524 = vpop.f32.mrf.mxu0
    %v1525 = vadd.f32 0.0, %v1524
    %1526 = vmatmul.bf16.gmra.mxu0 %v1242
    %v1527 = vpop.f32.mrf.mxu0
    %v1528 = vadd.f32 0.0, %v1527
    %v1529 = vpop.f32.mrf.mxu0
    %v1530 = vadd.f32 0.0, %v1529
    %1531 = vmatmul.bf16.gmra.mxu0 %v1246
    %v1532 = vpop.f32.mrf.mxu0
    %v1533 = vadd.f32 0.0, %v1532
    %v1534 = vpop.f32.mrf.mxu0
    %v1535 = vadd.f32 0.0, %v1534
    %1536 = vmatmul.bf16.gmra.mxu0 %v1250
    %v1537 = vpop.f32.mrf.mxu0
    %v1538 = vadd.f32 0.0, %v1537
    %v1539 = vpop.f32.mrf.mxu0
    %v1540 = vadd.f32 0.0, %v1539
    %1541 = vmatmul.bf16.gmra.mxu0 %v1254
    %v1542 = vpop.f32.mrf.mxu0
    %v1543 = vadd.f32 0.0, %v1542
    %v1544 = vpop.f32.mrf.mxu0
    %v1545 = vadd.f32 0.0, %v1544
    %1546 = vmatmul.bf16.gmra.mxu0 %v1258
    %v1547 = vpop.f32.mrf.mxu0
    %v1548 = vadd.f32 0.0, %v1547
    %v1549 = vpop.f32.mrf.mxu0
    %v1550 = vadd.f32 0.0, %v1549
    %1551 = vmatmul.bf16.gmra.mxu0 %v1262
    %v1552 = vpop.f32.mrf.mxu0
    %v1553 = vadd.f32 0.0, %v1552
    %v1554 = vpop.f32.mrf.mxu0
    %v1555 = vadd.f32 0.0, %v1554
    %1556 = vmatmul.bf16.gmra.mxu0 %v1266
    %v1557 = vpop.f32.mrf.mxu0
    %v1558 = vadd.f32 0.0, %v1557
    %v1559 = vpop.f32.mrf.mxu0
    %v1560 = vadd.f32 0.0, %v1559
    %1561 = vmatmul.bf16.gmra.mxu0 %v1270
    %v1562 = vpop.f32.mrf.mxu0
    %v1563 = vadd.f32 0.0, %v1562
    %v1564 = vpop.f32.mrf.mxu0
    %v1565 = vadd.f32 0.0, %v1564
    %1566 = vmatmul.bf16.gmra.mxu0 %v1274
    %v1567 = vpop.f32.mrf.mxu0
    %v1568 = vadd.f32 0.0, %v1567
    %v1569 = vpop.f32.mrf.mxu0
    %v1570 = vadd.f32 0.0, %v1569
    %1571 = vmatmul.bf16.gmra.mxu0 %v1278
    %v1572 = vpop.f32.mrf.mxu0
    %v1573 = vadd.f32 0.0, %v1572
    %v1574 = vpop.f32.mrf.mxu0
    %v1575 = vadd.f32 0.0, %v1574
    %1576 = vmatmul.bf16.gmra.mxu0 %v1282
    %v1577 = vpop.f32.mrf.mxu0
    %v1578 = vadd.f32 0.0, %v1577
    %v1579 = vpop.f32.mrf.mxu0
    %v1580 = vadd.f32 0.0, %v1579
    %1581 = vmatmul.bf16.gmra.mxu0 %v1286
    %v1582 = vpop.f32.mrf.mxu0
    %v1583 = vadd.f32 0.0, %v1582
    %v1584 = vpop.f32.mrf.mxu0
    %v1585 = vadd.f32 0.0, %v1584
    %1586 = vmatmul.bf16.gmra.mxu0 %v1290
    %v1587 = vpop.f32.mrf.mxu0
    %v1588 = vadd.f32 0.0, %v1587
    %v1589 = vpop.f32.mrf.mxu0
    %v1590 = vadd.f32 0.0, %v1589
    %1591 = vmatmul.bf16.gmra.mxu0 %v1294
    %v1592 = vpop.f32.mrf.mxu0
    %v1593 = vadd.f32 0.0, %v1592
    %v1594 = vpop.f32.mrf.mxu0
    %v1595 = vadd.f32 0.0, %v1594
    %1596 = vmatmul.bf16.gmra.mxu0 %v1298
    %v1597 = vpop.f32.mrf.mxu0
    %v1598 = vadd.f32 0.0, %v1597
    %v1599 = vpop.f32.mrf.mxu0
    %v1600 = vadd.f32 0.0, %v1599
    %1601 = vmatmul.bf16.gmra.mxu0 %v1302
    %v1602 = vpop.f32.mrf.mxu0
    %v1603 = vadd.f32 0.0, %v1602
    %v1604 = vpop.f32.mrf.mxu0
    %v1605 = vadd.f32 0.0, %v1604
    %1606 = vmatmul.bf16.gmra.mxu0 %v1306
    %v1607 = vpop.f32.mrf.mxu0
    %v1608 = vadd.f32 0.0, %v1607
    %v1609 = vpop.f32.mrf.mxu0
    %v1610 = vadd.f32 0.0, %v1609
    %1611 = vmatmul.bf16.gmra.mxu0 %v1310
    %v1612 = vpop.f32.mrf.mxu0
    %v1613 = vadd.f32 0.0, %v1612
    %v1614 = vpop.f32.mrf.mxu0
    %v1615 = vadd.f32 0.0, %v1614
    %1616 = vmatmul.bf16.gmra.mxu0 %v1314
    %v1617 = vpop.f32.mrf.mxu0
    %v1618 = vadd.f32 0.0, %v1617
    %v1619 = vpop.f32.mrf.mxu0
    %v1620 = vadd.f32 0.0, %v1619
    %1621 = vmatmul.bf16.gmra.mxu0 %v1318
    %v1622 = vpop.f32.mrf.mxu0
    %v1623 = vadd.f32 0.0, %v1622
    %v1624 = vpop.f32.mrf.mxu0
    %v1625 = vadd.f32 0.0, %v1624
    %1626 = vdwg.mxu0
    %1627 = vmatpush.msra.mxu0 %v777
    %1628 = vmatpush.msra.mxu0 %v776
    %1629 = vmatpush.msra.mxu0 %v775
    %1630 = vmatpush.msra.mxu0 %v774
    %1631 = vmatpush.msra.mxu0 %v773
    %1632 = vmatpush.msra.mxu0 %v772
    %1633 = vmatpush.msra.mxu0 %v771
    %1634 = vmatpush.msra.mxu0 %v770
    %1635 = vmatpush.msra.mxu0 %v769
    %1636 = vmatpush.msra.mxu0 %v768
    %1637 = vmatpush.msra.mxu0 %v767
    %1638 = vmatpush.msra.mxu0 %v766
    %1639 = vmatpush.msra.mxu0 %v765
    %1640 = vmatpush.msra.mxu0 %v764
    %1641 = vmatpush.msra.mxu0 %v763
    %1642 = vmatpush.msra.mxu0 %v762
    %1643 = vmatmul.bf16.gmra.mxu0 %v1195
    %v1644 = vpop.f32.mrf.mxu0
    %v1645 = vadd.f32 %v1468, %v1644
    %v1646 = vpop.f32.mrf.mxu0
    %v1647 = vadd.f32 %v1470, %v1646
    %1648 = vmatmul.bf16.gmra.mxu0 %v1199
    %v1649 = vpop.f32.mrf.mxu0
    %v1650 = vadd.f32 %v1473, %v1649
    %v1651 = vpop.f32.mrf.mxu0
    %v1652 = vadd.f32 %v1475, %v1651
    %1653 = vmatmul.bf16.gmra.mxu0 %v1203
    %v1654 = vpop.f32.mrf.mxu0
    %v1655 = vadd.f32 %v1478, %v1654
    %v1656 = vpop.f32.mrf.mxu0
    %v1657 = vadd.f32 %v1480, %v1656
    %1658 = vmatmul.bf16.gmra.mxu0 %v1207
    %v1659 = vpop.f32.mrf.mxu0
    %v1660 = vadd.f32 %v1483, %v1659
    %v1661 = vpop.f32.mrf.mxu0
    %v1662 = vadd.f32 %v1485, %v1661
    %1663 = vmatmul.bf16.gmra.mxu0 %v1211
    %v1664 = vpop.f32.mrf.mxu0
    %v1665 = vadd.f32 %v1488, %v1664
    %v1666 = vpop.f32.mrf.mxu0
    %v1667 = vadd.f32 %v1490, %v1666
    %1668 = vmatmul.bf16.gmra.mxu0 %v1215
    %v1669 = vpop.f32.mrf.mxu0
    %v1670 = vadd.f32 %v1493, %v1669
    %v1671 = vpop.f32.mrf.mxu0
    %v1672 = vadd.f32 %v1495, %v1671
    %1673 = vmatmul.bf16.gmra.mxu0 %v1219
    %v1674 = vpop.f32.mrf.mxu0
    %v1675 = vadd.f32 %v1498, %v1674
    %v1676 = vpop.f32.mrf.mxu0
    %v1677 = vadd.f32 %v1500, %v1676
    %1678 = vmatmul.bf16.gmra.mxu0 %v1223
    %v1679 = vpop.f32.mrf.mxu0
    %v1680 = vadd.f32 %v1503, %v1679
    %v1681 = vpop.f32.mrf.mxu0
    %v1682 = vadd.f32 %v1505, %v1681
    %1683 = vmatmul.bf16.gmra.mxu0 %v1227
    %v1684 = vpop.f32.mrf.mxu0
    %v1685 = vadd.f32 %v1508, %v1684
    %v1686 = vpop.f32.mrf.mxu0
    %v1687 = vadd.f32 %v1510, %v1686
    %1688 = vmatmul.bf16.gmra.mxu0 %v1231
    %v1689 = vpop.f32.mrf.mxu0
    %v1690 = vadd.f32 %v1513, %v1689
    %v1691 = vpop.f32.mrf.mxu0
    %v1692 = vadd.f32 %v1515, %v1691
    %1693 = vmatmul.bf16.gmra.mxu0 %v1235
    %v1694 = vpop.f32.mrf.mxu0
    %v1695 = vadd.f32 %v1518, %v1694
    %v1696 = vpop.f32.mrf.mxu0
    %v1697 = vadd.f32 %v1520, %v1696
    %1698 = vmatmul.bf16.gmra.mxu0 %v1239
    %v1699 = vpop.f32.mrf.mxu0
    %v1700 = vadd.f32 %v1523, %v1699
    %v1701 = vpop.f32.mrf.mxu0
    %v1702 = vadd.f32 %v1525, %v1701
    %1703 = vmatmul.bf16.gmra.mxu0 %v1243
    %v1704 = vpop.f32.mrf.mxu0
    %v1705 = vadd.f32 %v1528, %v1704
    %v1706 = vpop.f32.mrf.mxu0
    %v1707 = vadd.f32 %v1530, %v1706
    %1708 = vmatmul.bf16.gmra.mxu0 %v1247
    %v1709 = vpop.f32.mrf.mxu0
    %v1710 = vadd.f32 %v1533, %v1709
    %v1711 = vpop.f32.mrf.mxu0
    %v1712 = vadd.f32 %v1535, %v1711
    %1713 = vmatmul.bf16.gmra.mxu0 %v1251
    %v1714 = vpop.f32.mrf.mxu0
    %v1715 = vadd.f32 %v1538, %v1714
    %v1716 = vpop.f32.mrf.mxu0
    %v1717 = vadd.f32 %v1540, %v1716
    %1718 = vmatmul.bf16.gmra.mxu0 %v1255
    %v1719 = vpop.f32.mrf.mxu0
    %v1720 = vadd.f32 %v1543, %v1719
    %v1721 = vpop.f32.mrf.mxu0
    %v1722 = vadd.f32 %v1545, %v1721
    %1723 = vmatmul.bf16.gmra.mxu0 %v1259
    %v1724 = vpop.f32.mrf.mxu0
    %v1725 = vadd.f32 %v1548, %v1724
    %v1726 = vpop.f32.mrf.mxu0
    %v1727 = vadd.f32 %v1550, %v1726
    %1728 = vmatmul.bf16.gmra.mxu0 %v1263
    %v1729 = vpop.f32.mrf.mxu0
    %v1730 = vadd.f32 %v1553, %v1729
    %v1731 = vpop.f32.mrf.mxu0
    %v1732 = vadd.f32 %v1555, %v1731
    %1733 = vmatmul.bf16.gmra.mxu0 %v1267
    %v1734 = vpop.f32.mrf.mxu0
    %v1735 = vadd.f32 %v1558, %v1734
    %v1736 = vpop.f32.mrf.mxu0
    %v1737 = vadd.f32 %v1560, %v1736
    %1738 = vmatmul.bf16.gmra.mxu0 %v1271
    %v1739 = vpop.f32.mrf.mxu0
    %v1740 = vadd.f32 %v1563, %v1739
    %v1741 = vpop.f32.mrf.mxu0
    %v1742 = vadd.f32 %v1565, %v1741
    %1743 = vmatmul.bf16.gmra.mxu0 %v1275
    %v1744 = vpop.f32.mrf.mxu0
    %v1745 = vadd.f32 %v1568, %v1744
    %v1746 = vpop.f32.mrf.mxu0
    %v1747 = vadd.f32 %v1570, %v1746
    %1748 = vmatmul.bf16.gmra.mxu0 %v1279
    %v1749 = vpop.f32.mrf.mxu0
    %v1750 = vadd.f32 %v1573, %v1749
    %v1751 = vpop.f32.mrf.mxu0
    %v1752 = vadd.f32 %v1575, %v1751
    %1753 = vmatmul.bf16.gmra.mxu0 %v1283
    %v1754 = vpop.f32.mrf.mxu0
    %v1755 = vadd.f32 %v1578, %v1754
    %v1756 = vpop.f32.mrf.mxu0
    %v1757 = vadd.f32 %v1580, %v1756
    %1758 = vmatmul.bf16.gmra.mxu0 %v1287
    %v1759 = vpop.f32.mrf.mxu0
    %v1760 = vadd.f32 %v1583, %v1759
    %v1761 = vpop.f32.mrf.mxu0
    %v1762 = vadd.f32 %v1585, %v1761
    %1763 = vmatmul.bf16.gmra.mxu0 %v1291
    %v1764 = vpop.f32.mrf.mxu0
    %v1765 = vadd.f32 %v1588, %v1764
    %v1766 = vpop.f32.mrf.mxu0
    %v1767 = vadd.f32 %v1590, %v1766
    %1768 = vmatmul.bf16.gmra.mxu0 %v1295
    %v1769 = vpop.f32.mrf.mxu0
    %v1770 = vadd.f32 %v1593, %v1769
    %v1771 = vpop.f32.mrf.mxu0
    %v1772 = vadd.f32 %v1595, %v1771
    %1773 = vmatmul.bf16.gmra.mxu0 %v1299
    %v1774 = vpop.f32.mrf.mxu0
    %v1775 = vadd.f32 %v1598, %v1774
    %v1776 = vpop.f32.mrf.mxu0
    %v1777 = vadd.f32 %v1600, %v1776
    %1778 = vmatmul.bf16.gmra.mxu0 %v1303
    %v1779 = vpop.f32.mrf.mxu0
    %v1780 = vadd.f32 %v1603, %v1779
    %v1781 = vpop.f32.mrf.mxu0
    %v1782 = vadd.f32 %v1605, %v1781
    %1783 = vmatmul.bf16.gmra.mxu0 %v1307
    %v1784 = vpop.f32.mrf.mxu0
    %v1785 = vadd.f32 %v1608, %v1784
    %v1786 = vpop.f32.mrf.mxu0
    %v1787 = vadd.f32 %v1610, %v1786
    %1788 = vmatmul.bf16.gmra.mxu0 %v1311
    %v1789 = vpop.f32.mrf.mxu0
    %v1790 = vadd.f32 %v1613, %v1789
    %v1791 = vpop.f32.mrf.mxu0
    %v1792 = vadd.f32 %v1615, %v1791
    %1793 = vmatmul.bf16.gmra.mxu0 %v1315
    %v1794 = vpop.f32.mrf.mxu0
    %v1795 = vadd.f32 %v1618, %v1794
    %v1796 = vpop.f32.mrf.mxu0
    %v1797 = vadd.f32 %v1620, %v1796
    %1798 = vmatmul.bf16.gmra.mxu0 %v1319
    %v1799 = vpop.f32.mrf.mxu0
    %v1800 = vadd.f32 %v1623, %v1799
    %v1801 = vpop.f32.mrf.mxu0
    %v1802 = vadd.f32 %v1625, %v1801
    %1803 = vdwg.mxu0
    %1804 = vmatpush.msra.mxu0 %v793
    %1805 = vmatpush.msra.mxu0 %v792
    %1806 = vmatpush.msra.mxu0 %v791
    %1807 = vmatpush.msra.mxu0 %v790
    %1808 = vmatpush.msra.mxu0 %v789
    %1809 = vmatpush.msra.mxu0 %v788
    %1810 = vmatpush.msra.mxu0 %v787
    %1811 = vmatpush.msra.mxu0 %v786
    %1812 = vmatpush.msra.mxu0 %v785
    %1813 = vmatpush.msra.mxu0 %v784
    %1814 = vmatpush.msra.mxu0 %v783
    %1815 = vmatpush.msra.mxu0 %v782
    %1816 = vmatpush.msra.mxu0 %v781
    %1817 = vmatpush.msra.mxu0 %v780
    %1818 = vmatpush.msra.mxu0 %v779
    %1819 = vmatpush.msra.mxu0 %v778
    %1820 = vmatmul.bf16.gmra.mxu0 %v1196
    %v1821 = vpop.f32.mrf.mxu0
    %v1822 = vadd.f32 %v1645, %v1821
    %v1823 = vpop.f32.mrf.mxu0
    %v1824 = vadd.f32 %v1647, %v1823
    %1825 = vmatmul.bf16.gmra.mxu0 %v1200
    %v1826 = vpop.f32.mrf.mxu0
    %v1827 = vadd.f32 %v1650, %v1826
    %v1828 = vpop.f32.mrf.mxu0
    %v1829 = vadd.f32 %v1652, %v1828
    %1830 = vmatmul.bf16.gmra.mxu0 %v1204
    %v1831 = vpop.f32.mrf.mxu0
    %v1832 = vadd.f32 %v1655, %v1831
    %v1833 = vpop.f32.mrf.mxu0
    %v1834 = vadd.f32 %v1657, %v1833
    %1835 = vmatmul.bf16.gmra.mxu0 %v1208
    %v1836 = vpop.f32.mrf.mxu0
    %v1837 = vadd.f32 %v1660, %v1836
    %v1838 = vpop.f32.mrf.mxu0
    %v1839 = vadd.f32 %v1662, %v1838
    %1840 = vmatmul.bf16.gmra.mxu0 %v1212
    %v1841 = vpop.f32.mrf.mxu0
    %v1842 = vadd.f32 %v1665, %v1841
    %v1843 = vpop.f32.mrf.mxu0
    %v1844 = vadd.f32 %v1667, %v1843
    %1845 = vmatmul.bf16.gmra.mxu0 %v1216
    %v1846 = vpop.f32.mrf.mxu0
    %v1847 = vadd.f32 %v1670, %v1846
    %v1848 = vpop.f32.mrf.mxu0
    %v1849 = vadd.f32 %v1672, %v1848
    %1850 = vmatmul.bf16.gmra.mxu0 %v1220
    %v1851 = vpop.f32.mrf.mxu0
    %v1852 = vadd.f32 %v1675, %v1851
    %v1853 = vpop.f32.mrf.mxu0
    %v1854 = vadd.f32 %v1677, %v1853
    %1855 = vmatmul.bf16.gmra.mxu0 %v1224
    %v1856 = vpop.f32.mrf.mxu0
    %v1857 = vadd.f32 %v1680, %v1856
    %v1858 = vpop.f32.mrf.mxu0
    %v1859 = vadd.f32 %v1682, %v1858
    %1860 = vmatmul.bf16.gmra.mxu0 %v1228
    %v1861 = vpop.f32.mrf.mxu0
    %v1862 = vadd.f32 %v1685, %v1861
    %v1863 = vpop.f32.mrf.mxu0
    %v1864 = vadd.f32 %v1687, %v1863
    %1865 = vmatmul.bf16.gmra.mxu0 %v1232
    %v1866 = vpop.f32.mrf.mxu0
    %v1867 = vadd.f32 %v1690, %v1866
    %v1868 = vpop.f32.mrf.mxu0
    %v1869 = vadd.f32 %v1692, %v1868
    %1870 = vmatmul.bf16.gmra.mxu0 %v1236
    %v1871 = vpop.f32.mrf.mxu0
    %v1872 = vadd.f32 %v1695, %v1871
    %v1873 = vpop.f32.mrf.mxu0
    %v1874 = vadd.f32 %v1697, %v1873
    %1875 = vmatmul.bf16.gmra.mxu0 %v1240
    %v1876 = vpop.f32.mrf.mxu0
    %v1877 = vadd.f32 %v1700, %v1876
    %v1878 = vpop.f32.mrf.mxu0
    %v1879 = vadd.f32 %v1702, %v1878
    %1880 = vmatmul.bf16.gmra.mxu0 %v1244
    %v1881 = vpop.f32.mrf.mxu0
    %v1882 = vadd.f32 %v1705, %v1881
    %v1883 = vpop.f32.mrf.mxu0
    %v1884 = vadd.f32 %v1707, %v1883
    %1885 = vmatmul.bf16.gmra.mxu0 %v1248
    %v1886 = vpop.f32.mrf.mxu0
    %v1887 = vadd.f32 %v1710, %v1886
    %v1888 = vpop.f32.mrf.mxu0
    %v1889 = vadd.f32 %v1712, %v1888
    %1890 = vmatmul.bf16.gmra.mxu0 %v1252
    %v1891 = vpop.f32.mrf.mxu0
    %v1892 = vadd.f32 %v1715, %v1891
    %v1893 = vpop.f32.mrf.mxu0
    %v1894 = vadd.f32 %v1717, %v1893
    %1895 = vmatmul.bf16.gmra.mxu0 %v1256
    %v1896 = vpop.f32.mrf.mxu0
    %v1897 = vadd.f32 %v1720, %v1896
    %v1898 = vpop.f32.mrf.mxu0
    %v1899 = vadd.f32 %v1722, %v1898
    %1900 = vmatmul.bf16.gmra.mxu0 %v1260
    %v1901 = vpop.f32.mrf.mxu0
    %v1902 = vadd.f32 %v1725, %v1901
    %v1903 = vpop.f32.mrf.mxu0
    %v1904 = vadd.f32 %v1727, %v1903
    %1905 = vmatmul.bf16.gmra.mxu0 %v1264
    %v1906 = vpop.f32.mrf.mxu0
    %v1907 = vadd.f32 %v1730, %v1906
    %v1908 = vpop.f32.mrf.mxu0
    %v1909 = vadd.f32 %v1732, %v1908
    %1910 = vmatmul.bf16.gmra.mxu0 %v1268
    %v1911 = vpop.f32.mrf.mxu0
    %v1912 = vadd.f32 %v1735, %v1911
    %v1913 = vpop.f32.mrf.mxu0
    %v1914 = vadd.f32 %v1737, %v1913
    %1915 = vmatmul.bf16.gmra.mxu0 %v1272
    %v1916 = vpop.f32.mrf.mxu0
    %v1917 = vadd.f32 %v1740, %v1916
    %v1918 = vpop.f32.mrf.mxu0
    %v1919 = vadd.f32 %v1742, %v1918
    %1920 = vmatmul.bf16.gmra.mxu0 %v1276
    %v1921 = vpop.f32.mrf.mxu0
    %v1922 = vadd.f32 %v1745, %v1921
    %v1923 = vpop.f32.mrf.mxu0
    %v1924 = vadd.f32 %v1747, %v1923
    %1925 = vmatmul.bf16.gmra.mxu0 %v1280
    %v1926 = vpop.f32.mrf.mxu0
    %v1927 = vadd.f32 %v1750, %v1926
    %v1928 = vpop.f32.mrf.mxu0
    %v1929 = vadd.f32 %v1752, %v1928
    %1930 = vmatmul.bf16.gmra.mxu0 %v1284
    %v1931 = vpop.f32.mrf.mxu0
    %v1932 = vadd.f32 %v1755, %v1931
    %v1933 = vpop.f32.mrf.mxu0
    %v1934 = vadd.f32 %v1757, %v1933
    %1935 = vmatmul.bf16.gmra.mxu0 %v1288
    %v1936 = vpop.f32.mrf.mxu0
    %v1937 = vadd.f32 %v1760, %v1936
    %v1938 = vpop.f32.mrf.mxu0
    %v1939 = vadd.f32 %v1762, %v1938
    %1940 = vmatmul.bf16.gmra.mxu0 %v1292
    %v1941 = vpop.f32.mrf.mxu0
    %v1942 = vadd.f32 %v1765, %v1941
    %v1943 = vpop.f32.mrf.mxu0
    %v1944 = vadd.f32 %v1767, %v1943
    %1945 = vmatmul.bf16.gmra.mxu0 %v1296
    %v1946 = vpop.f32.mrf.mxu0
    %v1947 = vadd.f32 %v1770, %v1946
    %v1948 = vpop.f32.mrf.mxu0
    %v1949 = vadd.f32 %v1772, %v1948
    %1950 = vmatmul.bf16.gmra.mxu0 %v1300
    %v1951 = vpop.f32.mrf.mxu0
    %v1952 = vadd.f32 %v1775, %v1951
    %v1953 = vpop.f32.mrf.mxu0
    %v1954 = vadd.f32 %v1777, %v1953
    %1955 = vmatmul.bf16.gmra.mxu0 %v1304
    %v1956 = vpop.f32.mrf.mxu0
    %v1957 = vadd.f32 %v1780, %v1956
    %v1958 = vpop.f32.mrf.mxu0
    %v1959 = vadd.f32 %v1782, %v1958
    %1960 = vmatmul.bf16.gmra.mxu0 %v1308
    %v1961 = vpop.f32.mrf.mxu0
    %v1962 = vadd.f32 %v1785, %v1961
    %v1963 = vpop.f32.mrf.mxu0
    %v1964 = vadd.f32 %v1787, %v1963
    %1965 = vmatmul.bf16.gmra.mxu0 %v1312
    %v1966 = vpop.f32.mrf.mxu0
    %v1967 = vadd.f32 %v1790, %v1966
    %v1968 = vpop.f32.mrf.mxu0
    %v1969 = vadd.f32 %v1792, %v1968
    %1970 = vmatmul.bf16.gmra.mxu0 %v1316
    %v1971 = vpop.f32.mrf.mxu0
    %v1972 = vadd.f32 %v1795, %v1971
    %v1973 = vpop.f32.mrf.mxu0
    %v1974 = vadd.f32 %v1797, %v1973
    %1975 = vmatmul.bf16.gmra.mxu0 %v1320
    %v1976 = vpop.f32.mrf.mxu0
    %v1977 = vadd.f32 %v1800, %v1976
    %v1978 = vpop.f32.mrf.mxu0
    %v1979 = vadd.f32 %v1802, %v1978
    %1980 = vdwg.mxu0
    %1981 = vmatpush.msra.mxu0 %v809
    %1982 = vmatpush.msra.mxu0 %v808
    %1983 = vmatpush.msra.mxu0 %v807
    %1984 = vmatpush.msra.mxu0 %v806
    %1985 = vmatpush.msra.mxu0 %v805
    %1986 = vmatpush.msra.mxu0 %v804
    %1987 = vmatpush.msra.mxu0 %v803
    %1988 = vmatpush.msra.mxu0 %v802
    %1989 = vmatpush.msra.mxu0 %v801
    %1990 = vmatpush.msra.mxu0 %v800
    %1991 = vmatpush.msra.mxu0 %v799
    %1992 = vmatpush.msra.mxu0 %v798
    %1993 = vmatpush.msra.mxu0 %v797
    %1994 = vmatpush.msra.mxu0 %v796
    %1995 = vmatpush.msra.mxu0 %v795
    %1996 = vmatpush.msra.mxu0 %v794
    %1997 = vmatmul.bf16.gmra.mxu0 %v1197
    %v1998 = vpop.f32.mrf.mxu0
    %v1999 = vadd.f32 %v1822, %v1998
    %v2000 = vpop.f32.mrf.mxu0
    %v2001 = vadd.f32 %v1824, %v2000
    %2002 = vmatmul.bf16.gmra.mxu0 %v1201
    %v2003 = vpop.f32.mrf.mxu0
    %v2004 = vadd.f32 %v1827, %v2003
    %v2005 = vpop.f32.mrf.mxu0
    %v2006 = vadd.f32 %v1829, %v2005
    %2007 = vmatmul.bf16.gmra.mxu0 %v1205
    %v2008 = vpop.f32.mrf.mxu0
    %v2009 = vadd.f32 %v1832, %v2008
    %v2010 = vpop.f32.mrf.mxu0
    %v2011 = vadd.f32 %v1834, %v2010
    %2012 = vmatmul.bf16.gmra.mxu0 %v1209
    %v2013 = vpop.f32.mrf.mxu0
    %v2014 = vadd.f32 %v1837, %v2013
    %v2015 = vpop.f32.mrf.mxu0
    %v2016 = vadd.f32 %v1839, %v2015
    %2017 = vmatmul.bf16.gmra.mxu0 %v1213
    %v2018 = vpop.f32.mrf.mxu0
    %v2019 = vadd.f32 %v1842, %v2018
    %v2020 = vpop.f32.mrf.mxu0
    %v2021 = vadd.f32 %v1844, %v2020
    %2022 = vmatmul.bf16.gmra.mxu0 %v1217
    %v2023 = vpop.f32.mrf.mxu0
    %v2024 = vadd.f32 %v1847, %v2023
    %v2025 = vpop.f32.mrf.mxu0
    %v2026 = vadd.f32 %v1849, %v2025
    %2027 = vmatmul.bf16.gmra.mxu0 %v1221
    %v2028 = vpop.f32.mrf.mxu0
    %v2029 = vadd.f32 %v1852, %v2028
    %v2030 = vpop.f32.mrf.mxu0
    %v2031 = vadd.f32 %v1854, %v2030
    %2032 = vmatmul.bf16.gmra.mxu0 %v1225
    %v2033 = vpop.f32.mrf.mxu0
    %v2034 = vadd.f32 %v1857, %v2033
    %v2035 = vpop.f32.mrf.mxu0
    %v2036 = vadd.f32 %v1859, %v2035
    %2037 = vmatmul.bf16.gmra.mxu0 %v1229
    %v2038 = vpop.f32.mrf.mxu0
    %v2039 = vadd.f32 %v1862, %v2038
    %v2040 = vpop.f32.mrf.mxu0
    %v2041 = vadd.f32 %v1864, %v2040
    %2042 = vmatmul.bf16.gmra.mxu0 %v1233
    %v2043 = vpop.f32.mrf.mxu0
    %v2044 = vadd.f32 %v1867, %v2043
    %v2045 = vpop.f32.mrf.mxu0
    %v2046 = vadd.f32 %v1869, %v2045
    %2047 = vmatmul.bf16.gmra.mxu0 %v1237
    %v2048 = vpop.f32.mrf.mxu0
    %v2049 = vadd.f32 %v1872, %v2048
    %v2050 = vpop.f32.mrf.mxu0
    %v2051 = vadd.f32 %v1874, %v2050
    %2052 = vmatmul.bf16.gmra.mxu0 %v1241
    %v2053 = vpop.f32.mrf.mxu0
    %v2054 = vadd.f32 %v1877, %v2053
    %v2055 = vpop.f32.mrf.mxu0
    %v2056 = vadd.f32 %v1879, %v2055
    %2057 = vmatmul.bf16.gmra.mxu0 %v1245
    %v2058 = vpop.f32.mrf.mxu0
    %v2059 = vadd.f32 %v1882, %v2058
    %v2060 = vpop.f32.mrf.mxu0
    %v2061 = vadd.f32 %v1884, %v2060
    %2062 = vmatmul.bf16.gmra.mxu0 %v1249
    %v2063 = vpop.f32.mrf.mxu0
    %v2064 = vadd.f32 %v1887, %v2063
    %v2065 = vpop.f32.mrf.mxu0
    %v2066 = vadd.f32 %v1889, %v2065
    %2067 = vmatmul.bf16.gmra.mxu0 %v1253
    %v2068 = vpop.f32.mrf.mxu0
    %v2069 = vadd.f32 %v1892, %v2068
    %v2070 = vpop.f32.mrf.mxu0
    %v2071 = vadd.f32 %v1894, %v2070
    %2072 = vmatmul.bf16.gmra.mxu0 %v1257
    %v2073 = vpop.f32.mrf.mxu0
    %v2074 = vadd.f32 %v1897, %v2073
    %v2075 = vpop.f32.mrf.mxu0
    %v2076 = vadd.f32 %v1899, %v2075
    %2077 = vmatmul.bf16.gmra.mxu0 %v1261
    %v2078 = vpop.f32.mrf.mxu0
    %v2079 = vadd.f32 %v1902, %v2078
    %v2080 = vpop.f32.mrf.mxu0
    %v2081 = vadd.f32 %v1904, %v2080
    %2082 = vmatmul.bf16.gmra.mxu0 %v1265
    %v2083 = vpop.f32.mrf.mxu0
    %v2084 = vadd.f32 %v1907, %v2083
    %v2085 = vpop.f32.mrf.mxu0
    %v2086 = vadd.f32 %v1909, %v2085
    %2087 = vmatmul.bf16.gmra.mxu0 %v1269
    %v2088 = vpop.f32.mrf.mxu0
    %v2089 = vadd.f32 %v1912, %v2088
    %v2090 = vpop.f32.mrf.mxu0
    %v2091 = vadd.f32 %v1914, %v2090
    %2092 = vmatmul.bf16.gmra.mxu0 %v1273
    %v2093 = vpop.f32.mrf.mxu0
    %v2094 = vadd.f32 %v1917, %v2093
    %v2095 = vpop.f32.mrf.mxu0
    %v2096 = vadd.f32 %v1919, %v2095
    %2097 = vmatmul.bf16.gmra.mxu0 %v1277
    %v2098 = vpop.f32.mrf.mxu0
    %v2099 = vadd.f32 %v1922, %v2098
    %v2100 = vpop.f32.mrf.mxu0
    %v2101 = vadd.f32 %v1924, %v2100
    %2102 = vmatmul.bf16.gmra.mxu0 %v1281
    %v2103 = vpop.f32.mrf.mxu0
    %v2104 = vadd.f32 %v1927, %v2103
    %v2105 = vpop.f32.mrf.mxu0
    %v2106 = vadd.f32 %v1929, %v2105
    %2107 = vmatmul.bf16.gmra.mxu0 %v1285
    %v2108 = vpop.f32.mrf.mxu0
    %v2109 = vadd.f32 %v1932, %v2108
    %v2110 = vpop.f32.mrf.mxu0
    %v2111 = vadd.f32 %v1934, %v2110
    %2112 = vmatmul.bf16.gmra.mxu0 %v1289
    %v2113 = vpop.f32.mrf.mxu0
    %v2114 = vadd.f32 %v1937, %v2113
    %v2115 = vpop.f32.mrf.mxu0
    %v2116 = vadd.f32 %v1939, %v2115
    %2117 = vmatmul.bf16.gmra.mxu0 %v1293
    %v2118 = vpop.f32.mrf.mxu0
    %v2119 = vadd.f32 %v1942, %v2118
    %v2120 = vpop.f32.mrf.mxu0
    %v2121 = vadd.f32 %v1944, %v2120
    %2122 = vmatmul.bf16.gmra.mxu0 %v1297
    %v2123 = vpop.f32.mrf.mxu0
    %v2124 = vadd.f32 %v1947, %v2123
    %v2125 = vpop.f32.mrf.mxu0
    %v2126 = vadd.f32 %v1949, %v2125
    %2127 = vmatmul.bf16.gmra.mxu0 %v1301
    %v2128 = vpop.f32.mrf.mxu0
    %v2129 = vadd.f32 %v1952, %v2128
    %v2130 = vpop.f32.mrf.mxu0
    %v2131 = vadd.f32 %v1954, %v2130
    %2132 = vmatmul.bf16.gmra.mxu0 %v1305
    %v2133 = vpop.f32.mrf.mxu0
    %v2134 = vadd.f32 %v1957, %v2133
    %v2135 = vpop.f32.mrf.mxu0
    %v2136 = vadd.f32 %v1959, %v2135
    %2137 = vmatmul.bf16.gmra.mxu0 %v1309
    %v2138 = vpop.f32.mrf.mxu0
    %v2139 = vadd.f32 %v1962, %v2138
    %v2140 = vpop.f32.mrf.mxu0
    %v2141 = vadd.f32 %v1964, %v2140
    %2142 = vmatmul.bf16.gmra.mxu0 %v1313
    %v2143 = vpop.f32.mrf.mxu0
    %v2144 = vadd.f32 %v1967, %v2143
    %v2145 = vpop.f32.mrf.mxu0
    %v2146 = vadd.f32 %v1969, %v2145
    %2147 = vmatmul.bf16.gmra.mxu0 %v1317
    %v2148 = vpop.f32.mrf.mxu0
    %v2149 = vadd.f32 %v1972, %v2148
    %v2150 = vpop.f32.mrf.mxu0
    %v2151 = vadd.f32 %v1974, %v2150
    %2152 = vmatmul.bf16.gmra.mxu0 %v1321
    %v2153 = vpop.f32.mrf.mxu0
    %v2154 = vadd.f32 %v1977, %v2153
    %v2155 = vpop.f32.mrf.mxu0
    %v2156 = vadd.f32 %v1979, %v2155
    %2157 = vdwg.mxu0
    %2158 = vst [vmem:[#allocation2] sm:$0xff] %v1999
    %2159 = vst [vmem:[#allocation2 + $0x8] sm:$0xff] %v2001
    %2160 = vst [vmem:[#allocation2 + $0x10] sm:$0xff] %v2004
    %2161 = vst [vmem:[#allocation2 + $0x18] sm:$0xff] %v2006
    %2162 = vst [vmem:[#allocation2 + $0x20] sm:$0xff] %v2009
    %2163 = vst [vmem:[#allocation2 + $0x28] sm:$0xff] %v2011
    %2164 = vst [vmem:[#allocation2 + $0x30] sm:$0xff] %v2014
    %2165 = vst [vmem:[#allocation2 + $0x38] sm:$0xff] %v2016
    %2166 = vst [vmem:[#allocation2 + $0x40] sm:$0xff] %v2019
    %2167 = vst [vmem:[#allocation2 + $0x48] sm:$0xff] %v2021
    %2168 = vst [vmem:[#allocation2 + $0x50] sm:$0xff] %v2024
    %2169 = vst [vmem:[#allocation2 + $0x58] sm:$0xff] %v2026
    %2170 = vst [vmem:[#allocation2 + $0x60] sm:$0xff] %v2029
    %2171 = vst [vmem:[#allocation2 + $0x68] sm:$0xff] %v2031
    %2172 = vst [vmem:[#allocation2 + $0x70] sm:$0xff] %v2034
    %2173 = vst [vmem:[#allocation2 + $0x78] sm:$0xff] %v2036
    %2174 = vst [vmem:[#allocation2 + $0x80] sm:$0xff] %v2039
    %2175 = vst [vmem:[#allocation2 + $0x88] sm:$0xff] %v2041
    %2176 = vst [vmem:[#allocation2 + $0x90] sm:$0xff] %v2044
    %2177 = vst [vmem:[#allocation2 + $0x98] sm:$0xff] %v2046
    %2178 = vst [vmem:[#allocation2 + $0xa0] sm:$0xff] %v2049
    %2179 = vst [vmem:[#allocation2 + $0xa8] sm:$0xff] %v2051
    %2180 = vst [vmem:[#allocation2 + $0xb0] sm:$0xff] %v2054
    %2181 = vst [vmem:[#allocation2 + $0xb8] sm:$0xff] %v2056
    %2182 = vst [vmem:[#allocation2 + $0xc0] sm:$0xff] %v2059
    %2183 = vst [vmem:[#allocation2 + $0xc8] sm:$0xff] %v2061
    %2184 = vst [vmem:[#allocation2 + $0xd0] sm:$0xff] %v2064
    %2185 = vst [vmem:[#allocation2 + $0xd8] sm:$0xff] %v2066
    %2186 = vst [vmem:[#allocation2 + $0xe0] sm:$0xff] %v2069
    %2187 = vst [vmem:[#allocation2 + $0xe8] sm:$0xff] %v2071
    %2188 = vst [vmem:[#allocation2 + $0xf0] sm:$0xff] %v2074
    %2189 = vst [vmem:[#allocation2 + $0xf8] sm:$0xff] %v2076
    %2190 = vst [vmem:[#allocation2 + $0x100] sm:$0xff] %v2079
    %2191 = vst [vmem:[#allocation2 + $0x108] sm:$0xff] %v2081
    %2192 = vst [vmem:[#allocation2 + $0x110] sm:$0xff] %v2084
    %2193 = vst [vmem:[#allocation2 + $0x118] sm:$0xff] %v2086
    %2194 = vst [vmem:[#allocation2 + $0x120] sm:$0xff] %v2089
    %2195 = vst [vmem:[#allocation2 + $0x128] sm:$0xff] %v2091
    %2196 = vst [vmem:[#allocation2 + $0x130] sm:$0xff] %v2094
    %2197 = vst [vmem:[#allocation2 + $0x138] sm:$0xff] %v2096
    %2198 = vst [vmem:[#allocation2 + $0x140] sm:$0xff] %v2099
    %2199 = vst [vmem:[#allocation2 + $0x148] sm:$0xff] %v2101
    %2200 = vst [vmem:[#allocation2 + $0x150] sm:$0xff] %v2104
    %2201 = vst [vmem:[#allocation2 + $0x158] sm:$0xff] %v2106
    %2202 = vst [vmem:[#allocation2 + $0x160] sm:$0xff] %v2109
    %2203 = vst [vmem:[#allocation2 + $0x168] sm:$0xff] %v2111
    %2204 = vst [vmem:[#allocation2 + $0x170] sm:$0xff] %v2114
    %2205 = vst [vmem:[#allocation2 + $0x178] sm:$0xff] %v2116
    %2206 = vst [vmem:[#allocation2 + $0x180] sm:$0xff] %v2119
    %2207 = vst [vmem:[#allocation2 + $0x188] sm:$0xff] %v2121
    %2208 = vst [vmem:[#allocation2 + $0x190] sm:$0xff] %v2124
    %2209 = vst [vmem:[#allocation2 + $0x198] sm:$0xff] %v2126
    %2210 = vst [vmem:[#allocation2 + $0x1a0] sm:$0xff] %v2129
    %2211 = vst [vmem:[#allocation2 + $0x1a8] sm:$0xff] %v2131
    %2212 = vst [vmem:[#allocation2 + $0x1b0] sm:$0xff] %v2134
    %2213 = vst [vmem:[#allocation2 + $0x1b8] sm:$0xff] %v2136
    %2214 = vst [vmem:[#allocation2 + $0x1c0] sm:$0xff] %v2139
    %2215 = vst [vmem:[#allocation2 + $0x1c8] sm:$0xff] %v2141
    %2216 = vst [vmem:[#allocation2 + $0x1d0] sm:$0xff] %v2144
    %2217 = vst [vmem:[#allocation2 + $0x1d8] sm:$0xff] %v2146
    %2218 = vst [vmem:[#allocation2 + $0x1e0] sm:$0xff] %v2149
    %2219 = vst [vmem:[#allocation2 + $0x1e8] sm:$0xff] %v2151
    %2220 = vst [vmem:[#allocation2 + $0x1f0] sm:$0xff] %v2154
    %2221 = vst [vmem:[#allocation2 + $0x1f8] sm:$0xff] %v2156
    %v2222 = vld [vmem:[#allocation3] sm:$0xff]
    %v2223 = vld [vmem:[#allocation3 + $0x8] sm:$0xff]
    %v2224 = vld [vmem:[#allocation3 + $0x10] sm:$0xff]
    %v2225 = vld [vmem:[#allocation3 + $0x18] sm:$0xff]
    %v2226 = vld [vmem:[#allocation3 + $0x20] sm:$0xff]
    %v2227 = vld [vmem:[#allocation3 + $0x28] sm:$0xff]
    %v2228 = vld [vmem:[#allocation3 + $0x30] sm:$0xff]
    %v2229 = vld [vmem:[#allocation3 + $0x38] sm:$0xff]
    %v2230 = vld [vmem:[#allocation3 + $0x40] sm:$0xff]
    %v2231 = vld [vmem:[#allocation3 + $0x48] sm:$0xff]
    %v2232 = vld [vmem:[#allocation3 + $0x50] sm:$0xff]
    %v2233 = vld [vmem:[#allocation3 + $0x58] sm:$0xff]
    %v2234 = vld [vmem:[#allocation3 + $0x60] sm:$0xff]
    %v2235 = vld [vmem:[#allocation3 + $0x68] sm:$0xff]
    %v2236 = vld [vmem:[#allocation3 + $0x70] sm:$0xff]
    %v2237 = vld [vmem:[#allocation3 + $0x78] sm:$0xff]
    %v2238 = vld [vmem:[#allocation3 + $0x80] sm:$0xff]
    %v2239 = vld [vmem:[#allocation3 + $0x88] sm:$0xff]
    %v2240 = vld [vmem:[#allocation3 + $0x90] sm:$0xff]
    %v2241 = vld [vmem:[#allocation3 + $0x98] sm:$0xff]
    %v2242 = vld [vmem:[#allocation3 + $0xa0] sm:$0xff]
    %v2243 = vld [vmem:[#allocation3 + $0xa8] sm:$0xff]
    %v2244 = vld [vmem:[#allocation3 + $0xb0] sm:$0xff]
    %v2245 = vld [vmem:[#allocation3 + $0xb8] sm:$0xff]
    %v2246 = vld [vmem:[#allocation3 + $0xc0] sm:$0xff]
    %v2247 = vld [vmem:[#allocation3 + $0xc8] sm:$0xff]
    %v2248 = vld [vmem:[#allocation3 + $0xd0] sm:$0xff]
    %v2249 = vld [vmem:[#allocation3 + $0xd8] sm:$0xff]
    %v2250 = vld [vmem:[#allocation3 + $0xe0] sm:$0xff]
    %v2251 = vld [vmem:[#allocation3 + $0xe8] sm:$0xff]
    %v2252 = vld [vmem:[#allocation3 + $0xf0] sm:$0xff]
    %v2253 = vld [vmem:[#allocation3 + $0xf8] sm:$0xff]
    %v2254 = vld [vmem:[#allocation3 + $0x100] sm:$0xff]
    %v2255 = vld [vmem:[#allocation3 + $0x108] sm:$0xff]
    %v2256 = vld [vmem:[#allocation3 + $0x110] sm:$0xff]
    %v2257 = vld [vmem:[#allocation3 + $0x118] sm:$0xff]
    %v2258 = vld [vmem:[#allocation3 + $0x120] sm:$0xff]
    %v2259 = vld [vmem:[#allocation3 + $0x128] sm:$0xff]
    %v2260 = vld [vmem:[#allocation3 + $0x130] sm:$0xff]
    %v2261 = vld [vmem:[#allocation3 + $0x138] sm:$0xff]
    %v2262 = vld [vmem:[#allocation3 + $0x140] sm:$0xff]
    %v2263 = vld [vmem:[#allocation3 + $0x148] sm:$0xff]
    %v2264 = vld [vmem:[#allocation3 + $0x150] sm:$0xff]
    %v2265 = vld [vmem:[#allocation3 + $0x158] sm:$0xff]
    %v2266 = vld [vmem:[#allocation3 + $0x160] sm:$0xff]
    %v2267 = vld [vmem:[#allocation3 + $0x168] sm:$0xff]
    %v2268 = vld [vmem:[#allocation3 + $0x170] sm:$0xff]
    %v2269 = vld [vmem:[#allocation3 + $0x178] sm:$0xff]
    %v2270 = vld [vmem:[#allocation3 + $0x180] sm:$0xff]
    %v2271 = vld [vmem:[#allocation3 + $0x188] sm:$0xff]
    %v2272 = vld [vmem:[#allocation3 + $0x190] sm:$0xff]
    %v2273 = vld [vmem:[#allocation3 + $0x198] sm:$0xff]
    %v2274 = vld [vmem:[#allocation3 + $0x1a0] sm:$0xff]
    %v2275 = vld [vmem:[#allocation3 + $0x1a8] sm:$0xff]
    %v2276 = vld [vmem:[#allocation3 + $0x1b0] sm:$0xff]
    %v2277 = vld [vmem:[#allocation3 + $0x1b8] sm:$0xff]
    %v2278 = vld [vmem:[#allocation3 + $0x1c0] sm:$0xff]
    %v2279 = vld [vmem:[#allocation3 + $0x1c8] sm:$0xff]
    %v2280 = vld [vmem:[#allocation3 + $0x1d0] sm:$0xff]
    %v2281 = vld [vmem:[#allocation3 + $0x1d8] sm:$0xff]
    %v2282 = vld [vmem:[#allocation3 + $0x1e0] sm:$0xff]
    %v2283 = vld [vmem:[#allocation3 + $0x1e8] sm:$0xff]
    %v2284 = vld [vmem:[#allocation3 + $0x1f0] sm:$0xff]
    %v2285 = vld [vmem:[#allocation3 + $0x1f8] sm:$0xff]
    %v2286 = vld [vmem:[#allocation3 + $0x200] sm:$0xff]
    %v2287 = vld [vmem:[#allocation3 + $0x208] sm:$0xff]
    %v2288 = vld [vmem:[#allocation3 + $0x210] sm:$0xff]
    %v2289 = vld [vmem:[#allocation3 + $0x218] sm:$0xff]
    %v2290 = vld [vmem:[#allocation3 + $0x220] sm:$0xff]
    %v2291 = vld [vmem:[#allocation3 + $0x228] sm:$0xff]
    %v2292 = vld [vmem:[#allocation3 + $0x230] sm:$0xff]
    %v2293 = vld [vmem:[#allocation3 + $0x238] sm:$0xff]
    %v2294 = vld [vmem:[#allocation3 + $0x240] sm:$0xff]
    %v2295 = vld [vmem:[#allocation3 + $0x248] sm:$0xff]
    %v2296 = vld [vmem:[#allocation3 + $0x250] sm:$0xff]
    %v2297 = vld [vmem:[#allocation3 + $0x258] sm:$0xff]
    %v2298 = vld [vmem:[#allocation3 + $0x260] sm:$0xff]
    %v2299 = vld [vmem:[#allocation3 + $0x268] sm:$0xff]
    %v2300 = vld [vmem:[#allocation3 + $0x270] sm:$0xff]
    %v2301 = vld [vmem:[#allocation3 + $0x278] sm:$0xff]
    %v2302 = vld [vmem:[#allocation3 + $0x280] sm:$0xff]
    %v2303 = vld [vmem:[#allocation3 + $0x288] sm:$0xff]
    %v2304 = vld [vmem:[#allocation3 + $0x290] sm:$0xff]
    %v2305 = vld [vmem:[#allocation3 + $0x298] sm:$0xff]
    %v2306 = vld [vmem:[#allocation3 + $0x2a0] sm:$0xff]
    %v2307 = vld [vmem:[#allocation3 + $0x2a8] sm:$0xff]
    %v2308 = vld [vmem:[#allocation3 + $0x2b0] sm:$0xff]
    %v2309 = vld [vmem:[#allocation3 + $0x2b8] sm:$0xff]
    %v2310 = vld [vmem:[#allocation3 + $0x2c0] sm:$0xff]
    %v2311 = vld [vmem:[#allocation3 + $0x2c8] sm:$0xff]
    %v2312 = vld [vmem:[#allocation3 + $0x2d0] sm:$0xff]
    %v2313 = vld [vmem:[#allocation3 + $0x2d8] sm:$0xff]
    %v2314 = vld [vmem:[#allocation3 + $0x2e0] sm:$0xff]
    %v2315 = vld [vmem:[#allocation3 + $0x2e8] sm:$0xff]
    %v2316 = vld [vmem:[#allocation3 + $0x2f0] sm:$0xff]
    %v2317 = vld [vmem:[#allocation3 + $0x2f8] sm:$0xff]
    %v2318 = vld [vmem:[#allocation3 + $0x300] sm:$0xff]
    %v2319 = vld [vmem:[#allocation3 + $0x308] sm:$0xff]
    %v2320 = vld [vmem:[#allocation3 + $0x310] sm:$0xff]
    %v2321 = vld [vmem:[#allocation3 + $0x318] sm:$0xff]
    %v2322 = vld [vmem:[#allocation3 + $0x320] sm:$0xff]
    %v2323 = vld [vmem:[#allocation3 + $0x328] sm:$0xff]
    %v2324 = vld [vmem:[#allocation3 + $0x330] sm:$0xff]
    %v2325 = vld [vmem:[#allocation3 + $0x338] sm:$0xff]
    %v2326 = vld [vmem:[#allocation3 + $0x340] sm:$0xff]
    %v2327 = vld [vmem:[#allocation3 + $0x348] sm:$0xff]
    %v2328 = vld [vmem:[#allocation3 + $0x350] sm:$0xff]
    %v2329 = vld [vmem:[#allocation3 + $0x358] sm:$0xff]
    %v2330 = vld [vmem:[#allocation3 + $0x360] sm:$0xff]
    %v2331 = vld [vmem:[#allocation3 + $0x368] sm:$0xff]
    %v2332 = vld [vmem:[#allocation3 + $0x370] sm:$0xff]
    %v2333 = vld [vmem:[#allocation3 + $0x378] sm:$0xff]
    %v2334 = vld [vmem:[#allocation3 + $0x380] sm:$0xff]
    %v2335 = vld [vmem:[#allocation3 + $0x388] sm:$0xff]
    %v2336 = vld [vmem:[#allocation3 + $0x390] sm:$0xff]
    %v2337 = vld [vmem:[#allocation3 + $0x398] sm:$0xff]
    %v2338 = vld [vmem:[#allocation3 + $0x3a0] sm:$0xff]
    %v2339 = vld [vmem:[#allocation3 + $0x3a8] sm:$0xff]
    %v2340 = vld [vmem:[#allocation3 + $0x3b0] sm:$0xff]
    %v2341 = vld [vmem:[#allocation3 + $0x3b8] sm:$0xff]
    %v2342 = vld [vmem:[#allocation3 + $0x3c0] sm:$0xff]
    %v2343 = vld [vmem:[#allocation3 + $0x3c8] sm:$0xff]
    %v2344 = vld [vmem:[#allocation3 + $0x3d0] sm:$0xff]
    %v2345 = vld [vmem:[#allocation3 + $0x3d8] sm:$0xff]
    %v2346 = vld [vmem:[#allocation3 + $0x3e0] sm:$0xff]
    %v2347 = vld [vmem:[#allocation3 + $0x3e8] sm:$0xff]
    %v2348 = vld [vmem:[#allocation3 + $0x3f0] sm:$0xff]
    %v2349 = vld [vmem:[#allocation3 + $0x3f8] sm:$0xff]
    %v2350 = vld [vmem:[#allocation2] sm:$0xff]
    %v2351 = vld [vmem:[#allocation2 + $0x8] sm:$0xff]
    %v2352 = vld [vmem:[#allocation2 + $0x10] sm:$0xff]
    %v2353 = vld [vmem:[#allocation2 + $0x18] sm:$0xff]
    %v2354 = vld [vmem:[#allocation2 + $0x20] sm:$0xff]
    %v2355 = vld [vmem:[#allocation2 + $0x28] sm:$0xff]
    %v2356 = vld [vmem:[#allocation2 + $0x30] sm:$0xff]
    %v2357 = vld [vmem:[#allocation2 + $0x38] sm:$0xff]
    %v2358 = vld [vmem:[#allocation2 + $0x40] sm:$0xff]
    %v2359 = vld [vmem:[#allocation2 + $0x48] sm:$0xff]
    %v2360 = vld [vmem:[#allocation2 + $0x50] sm:$0xff]
    %v2361 = vld [vmem:[#allocation2 + $0x58] sm:$0xff]
    %v2362 = vld [vmem:[#allocation2 + $0x60] sm:$0xff]
    %v2363 = vld [vmem:[#allocation2 + $0x68] sm:$0xff]
    %v2364 = vld [vmem:[#allocation2 + $0x70] sm:$0xff]
    %v2365 = vld [vmem:[#allocation2 + $0x78] sm:$0xff]
    %v2366 = vld [vmem:[#allocation2 + $0x80] sm:$0xff]
    %v2367 = vld [vmem:[#allocation2 + $0x88] sm:$0xff]
    %v2368 = vld [vmem:[#allocation2 + $0x90] sm:$0xff]
    %v2369 = vld [vmem:[#allocation2 + $0x98] sm:$0xff]
    %v2370 = vld [vmem:[#allocation2 + $0xa0] sm:$0xff]
    %v2371 = vld [vmem:[#allocation2 + $0xa8] sm:$0xff]
    %v2372 = vld [vmem:[#allocation2 + $0xb0] sm:$0xff]
    %v2373 = vld [vmem:[#allocation2 + $0xb8] sm:$0xff]
    %v2374 = vld [vmem:[#allocation2 + $0xc0] sm:$0xff]
    %v2375 = vld [vmem:[#allocation2 + $0xc8] sm:$0xff]
    %v2376 = vld [vmem:[#allocation2 + $0xd0] sm:$0xff]
    %v2377 = vld [vmem:[#allocation2 + $0xd8] sm:$0xff]
    %v2378 = vld [vmem:[#allocation2 + $0xe0] sm:$0xff]
    %v2379 = vld [vmem:[#allocation2 + $0xe8] sm:$0xff]
    %v2380 = vld [vmem:[#allocation2 + $0xf0] sm:$0xff]
    %v2381 = vld [vmem:[#allocation2 + $0xf8] sm:$0xff]
    %v2382 = vld [vmem:[#allocation2 + $0x100] sm:$0xff]
    %v2383 = vld [vmem:[#allocation2 + $0x108] sm:$0xff]
    %v2384 = vld [vmem:[#allocation2 + $0x110] sm:$0xff]
    %v2385 = vld [vmem:[#allocation2 + $0x118] sm:$0xff]
    %v2386 = vld [vmem:[#allocation2 + $0x120] sm:$0xff]
    %v2387 = vld [vmem:[#allocation2 + $0x128] sm:$0xff]
    %v2388 = vld [vmem:[#allocation2 + $0x130] sm:$0xff]
    %v2389 = vld [vmem:[#allocation2 + $0x138] sm:$0xff]
    %v2390 = vld [vmem:[#allocation2 + $0x140] sm:$0xff]
    %v2391 = vld [vmem:[#allocation2 + $0x148] sm:$0xff]
    %v2392 = vld [vmem:[#allocation2 + $0x150] sm:$0xff]
    %v2393 = vld [vmem:[#allocation2 + $0x158] sm:$0xff]
    %v2394 = vld [vmem:[#allocation2 + $0x160] sm:$0xff]
    %v2395 = vld [vmem:[#allocation2 + $0x168] sm:$0xff]
    %v2396 = vld [vmem:[#allocation2 + $0x170] sm:$0xff]
    %v2397 = vld [vmem:[#allocation2 + $0x178] sm:$0xff]
    %v2398 = vld [vmem:[#allocation2 + $0x180] sm:$0xff]
    %v2399 = vld [vmem:[#allocation2 + $0x188] sm:$0xff]
    %v2400 = vld [vmem:[#allocation2 + $0x190] sm:$0xff]
    %v2401 = vld [vmem:[#allocation2 + $0x198] sm:$0xff]
    %v2402 = vld [vmem:[#allocation2 + $0x1a0] sm:$0xff]
    %v2403 = vld [vmem:[#allocation2 + $0x1a8] sm:$0xff]
    %v2404 = vld [vmem:[#allocation2 + $0x1b0] sm:$0xff]
    %v2405 = vld [vmem:[#allocation2 + $0x1b8] sm:$0xff]
    %v2406 = vld [vmem:[#allocation2 + $0x1c0] sm:$0xff]
    %v2407 = vld [vmem:[#allocation2 + $0x1c8] sm:$0xff]
    %v2408 = vld [vmem:[#allocation2 + $0x1d0] sm:$0xff]
    %v2409 = vld [vmem:[#allocation2 + $0x1d8] sm:$0xff]
    %v2410 = vld [vmem:[#allocation2 + $0x1e0] sm:$0xff]
    %v2411 = vld [vmem:[#allocation2 + $0x1e8] sm:$0xff]
    %v2412 = vld [vmem:[#allocation2 + $0x1f0] sm:$0xff]
    %v2413 = vld [vmem:[#allocation2 + $0x1f8] sm:$0xff]
    %v2542 = vunpack.c.l.b16 %v2222
    %v2543 = vunpack.c.h.b16 %v2222
    %v2544 = vunpack.c.l.b16 %v2223
    %v2545 = vunpack.c.h.b16 %v2223
    %v2546 = vunpack.c.l.b16 %v2224
    %v2547 = vunpack.c.h.b16 %v2224
    %v2548 = vunpack.c.l.b16 %v2225
    %v2549 = vunpack.c.h.b16 %v2225
    %v2550 = vunpack.c.l.b16 %v2226
    %v2551 = vunpack.c.h.b16 %v2226
    %v2552 = vunpack.c.l.b16 %v2227
    %v2553 = vunpack.c.h.b16 %v2227
    %v2554 = vunpack.c.l.b16 %v2228
    %v2555 = vunpack.c.h.b16 %v2228
    %v2556 = vunpack.c.l.b16 %v2229
    %v2557 = vunpack.c.h.b16 %v2229
    %v2558 = vunpack.c.l.b16 %v2230
    %v2559 = vunpack.c.h.b16 %v2230
    %v2560 = vunpack.c.l.b16 %v2231
    %v2561 = vunpack.c.h.b16 %v2231
    %v2562 = vunpack.c.l.b16 %v2232
    %v2563 = vunpack.c.h.b16 %v2232
    %v2564 = vunpack.c.l.b16 %v2233
    %v2565 = vunpack.c.h.b16 %v2233
    %v2566 = vunpack.c.l.b16 %v2234
    %v2567 = vunpack.c.h.b16 %v2234
    %v2568 = vunpack.c.l.b16 %v2235
    %v2569 = vunpack.c.h.b16 %v2235
    %v2570 = vunpack.c.l.b16 %v2236
    %v2571 = vunpack.c.h.b16 %v2236
    %v2572 = vunpack.c.l.b16 %v2237
    %v2573 = vunpack.c.h.b16 %v2237
    %v2574 = vunpack.c.l.b16 %v2238
    %v2575 = vunpack.c.h.b16 %v2238
    %v2576 = vunpack.c.l.b16 %v2239
    %v2577 = vunpack.c.h.b16 %v2239
    %v2578 = vunpack.c.l.b16 %v2240
    %v2579 = vunpack.c.h.b16 %v2240
    %v2580 = vunpack.c.l.b16 %v2241
    %v2581 = vunpack.c.h.b16 %v2241
    %v2582 = vunpack.c.l.b16 %v2242
    %v2583 = vunpack.c.h.b16 %v2242
    %v2584 = vunpack.c.l.b16 %v2243
    %v2585 = vunpack.c.h.b16 %v2243
    %v2586 = vunpack.c.l.b16 %v2244
    %v2587 = vunpack.c.h.b16 %v2244
    %v2588 = vunpack.c.l.b16 %v2245
    %v2589 = vunpack.c.h.b16 %v2245
    %v2590 = vunpack.c.l.b16 %v2246
    %v2591 = vunpack.c.h.b16 %v2246
    %v2592 = vunpack.c.l.b16 %v2247
    %v2593 = vunpack.c.h.b16 %v2247
    %v2594 = vunpack.c.l.b16 %v2248
    %v2595 = vunpack.c.h.b16 %v2248
    %v2596 = vunpack.c.l.b16 %v2249
    %v2597 = vunpack.c.h.b16 %v2249
    %v2598 = vunpack.c.l.b16 %v2250
    %v2599 = vunpack.c.h.b16 %v2250
    %v2600 = vunpack.c.l.b16 %v2251
    %v2601 = vunpack.c.h.b16 %v2251
    %v2602 = vunpack.c.l.b16 %v2252
    %v2603 = vunpack.c.h.b16 %v2252
    %v2604 = vunpack.c.l.b16 %v2253
    %v2605 = vunpack.c.h.b16 %v2253
    %v2606 = vunpack.c.l.b16 %v2254
    %v2607 = vunpack.c.h.b16 %v2254
    %v2608 = vunpack.c.l.b16 %v2255
    %v2609 = vunpack.c.h.b16 %v2255
    %v2610 = vunpack.c.l.b16 %v2256
    %v2611 = vunpack.c.h.b16 %v2256
    %v2612 = vunpack.c.l.b16 %v2257
    %v2613 = vunpack.c.h.b16 %v2257
    %v2614 = vunpack.c.l.b16 %v2258
    %v2615 = vunpack.c.h.b16 %v2258
    %v2616 = vunpack.c.l.b16 %v2259
    %v2617 = vunpack.c.h.b16 %v2259
    %v2618 = vunpack.c.l.b16 %v2260
    %v2619 = vunpack.c.h.b16 %v2260
    %v2620 = vunpack.c.l.b16 %v2261
    %v2621 = vunpack.c.h.b16 %v2261
    %v2622 = vunpack.c.l.b16 %v2262
    %v2623 = vunpack.c.h.b16 %v2262
    %v2624 = vunpack.c.l.b16 %v2263
    %v2625 = vunpack.c.h.b16 %v2263
    %v2626 = vunpack.c.l.b16 %v2264
    %v2627 = vunpack.c.h.b16 %v2264
    %v2628 = vunpack.c.l.b16 %v2265
    %v2629 = vunpack.c.h.b16 %v2265
    %v2630 = vunpack.c.l.b16 %v2266
    %v2631 = vunpack.c.h.b16 %v2266
    %v2632 = vunpack.c.l.b16 %v2267
    %v2633 = vunpack.c.h.b16 %v2267
    %v2634 = vunpack.c.l.b16 %v2268
    %v2635 = vunpack.c.h.b16 %v2268
    %v2636 = vunpack.c.l.b16 %v2269
    %v2637 = vunpack.c.h.b16 %v2269
    %v2638 = vunpack.c.l.b16 %v2270
    %v2639 = vunpack.c.h.b16 %v2270
    %v2640 = vunpack.c.l.b16 %v2271
    %v2641 = vunpack.c.h.b16 %v2271
    %v2642 = vunpack.c.l.b16 %v2272
    %v2643 = vunpack.c.h.b16 %v2272
    %v2644 = vunpack.c.l.b16 %v2273
    %v2645 = vunpack.c.h.b16 %v2273
    %v2646 = vunpack.c.l.b16 %v2274
    %v2647 = vunpack.c.h.b16 %v2274
    %v2648 = vunpack.c.l.b16 %v2275
    %v2649 = vunpack.c.h.b16 %v2275
    %v2650 = vunpack.c.l.b16 %v2276
    %v2651 = vunpack.c.h.b16 %v2276
    %v2652 = vunpack.c.l.b16 %v2277
    %v2653 = vunpack.c.h.b16 %v2277
    %v2654 = vunpack.c.l.b16 %v2278
    %v2655 = vunpack.c.h.b16 %v2278
    %v2656 = vunpack.c.l.b16 %v2279
    %v2657 = vunpack.c.h.b16 %v2279
    %v2658 = vunpack.c.l.b16 %v2280
    %v2659 = vunpack.c.h.b16 %v2280
    %v2660 = vunpack.c.l.b16 %v2281
    %v2661 = vunpack.c.h.b16 %v2281
    %v2662 = vunpack.c.l.b16 %v2282
    %v2663 = vunpack.c.h.b16 %v2282
    %v2664 = vunpack.c.l.b16 %v2283
    %v2665 = vunpack.c.h.b16 %v2283
    %v2666 = vunpack.c.l.b16 %v2284
    %v2667 = vunpack.c.h.b16 %v2284
    %v2668 = vunpack.c.l.b16 %v2285
    %v2669 = vunpack.c.h.b16 %v2285
    %v2670 = vunpack.c.l.b16 %v2286
    %v2671 = vunpack.c.h.b16 %v2286
    %v2672 = vunpack.c.l.b16 %v2287
    %v2673 = vunpack.c.h.b16 %v2287
    %v2674 = vunpack.c.l.b16 %v2288
    %v2675 = vunpack.c.h.b16 %v2288
    %v2676 = vunpack.c.l.b16 %v2289
    %v2677 = vunpack.c.h.b16 %v2289
    %v2678 = vunpack.c.l.b16 %v2290
    %v2679 = vunpack.c.h.b16 %v2290
    %v2680 = vunpack.c.l.b16 %v2291
    %v2681 = vunpack.c.h.b16 %v2291
    %v2682 = vunpack.c.l.b16 %v2292
    %v2683 = vunpack.c.h.b16 %v2292
    %v2684 = vunpack.c.l.b16 %v2293
    %v2685 = vunpack.c.h.b16 %v2293
    %v2686 = vunpack.c.l.b16 %v2294
    %v2687 = vunpack.c.h.b16 %v2294
    %v2688 = vunpack.c.l.b16 %v2295
    %v2689 = vunpack.c.h.b16 %v2295
    %v2690 = vunpack.c.l.b16 %v2296
    %v2691 = vunpack.c.h.b16 %v2296
    %v2692 = vunpack.c.l.b16 %v2297
    %v2693 = vunpack.c.h.b16 %v2297
    %v2694 = vunpack.c.l.b16 %v2298
    %v2695 = vunpack.c.h.b16 %v2298
    %v2696 = vunpack.c.l.b16 %v2299
    %v2697 = vunpack.c.h.b16 %v2299
    %v2698 = vunpack.c.l.b16 %v2300
    %v2699 = vunpack.c.h.b16 %v2300
    %v2700 = vunpack.c.l.b16 %v2301
    %v2701 = vunpack.c.h.b16 %v2301
    %v2702 = vunpack.c.l.b16 %v2302
    %v2703 = vunpack.c.h.b16 %v2302
    %v2704 = vunpack.c.l.b16 %v2303
    %v2705 = vunpack.c.h.b16 %v2303
    %v2706 = vunpack.c.l.b16 %v2304
    %v2707 = vunpack.c.h.b16 %v2304
    %v2708 = vunpack.c.l.b16 %v2305
    %v2709 = vunpack.c.h.b16 %v2305
    %v2710 = vunpack.c.l.b16 %v2306
    %v2711 = vunpack.c.h.b16 %v2306
    %v2712 = vunpack.c.l.b16 %v2307
    %v2713 = vunpack.c.h.b16 %v2307
    %v2714 = vunpack.c.l.b16 %v2308
    %v2715 = vunpack.c.h.b16 %v2308
    %v2716 = vunpack.c.l.b16 %v2309
    %v2717 = vunpack.c.h.b16 %v2309
    %v2718 = vunpack.c.l.b16 %v2310
    %v2719 = vunpack.c.h.b16 %v2310
    %v2720 = vunpack.c.l.b16 %v2311
    %v2721 = vunpack.c.h.b16 %v2311
    %v2722 = vunpack.c.l.b16 %v2312
    %v2723 = vunpack.c.h.b16 %v2312
    %v2724 = vunpack.c.l.b16 %v2313
    %v2725 = vunpack.c.h.b16 %v2313
    %v2726 = vunpack.c.l.b16 %v2314
    %v2727 = vunpack.c.h.b16 %v2314
    %v2728 = vunpack.c.l.b16 %v2315
    %v2729 = vunpack.c.h.b16 %v2315
    %v2730 = vunpack.c.l.b16 %v2316
    %v2731 = vunpack.c.h.b16 %v2316
    %v2732 = vunpack.c.l.b16 %v2317
    %v2733 = vunpack.c.h.b16 %v2317
    %v2734 = vunpack.c.l.b16 %v2318
    %v2735 = vunpack.c.h.b16 %v2318
    %v2736 = vunpack.c.l.b16 %v2319
    %v2737 = vunpack.c.h.b16 %v2319
    %v2738 = vunpack.c.l.b16 %v2320
    %v2739 = vunpack.c.h.b16 %v2320
    %v2740 = vunpack.c.l.b16 %v2321
    %v2741 = vunpack.c.h.b16 %v2321
    %v2742 = vunpack.c.l.b16 %v2322
    %v2743 = vunpack.c.h.b16 %v2322
    %v2744 = vunpack.c.l.b16 %v2323
    %v2745 = vunpack.c.h.b16 %v2323
    %v2746 = vunpack.c.l.b16 %v2324
    %v2747 = vunpack.c.h.b16 %v2324
    %v2748 = vunpack.c.l.b16 %v2325
    %v2749 = vunpack.c.h.b16 %v2325
    %v2750 = vunpack.c.l.b16 %v2326
    %v2751 = vunpack.c.h.b16 %v2326
    %v2752 = vunpack.c.l.b16 %v2327
    %v2753 = vunpack.c.h.b16 %v2327
    %v2754 = vunpack.c.l.b16 %v2328
    %v2755 = vunpack.c.h.b16 %v2328
    %v2756 = vunpack.c.l.b16 %v2329
    %v2757 = vunpack.c.h.b16 %v2329
    %v2758 = vunpack.c.l.b16 %v2330
    %v2759 = vunpack.c.h.b16 %v2330
    %v2760 = vunpack.c.l.b16 %v2331
    %v2761 = vunpack.c.h.b16 %v2331
    %v2762 = vunpack.c.l.b16 %v2332
    %v2763 = vunpack.c.h.b16 %v2332
    %v2764 = vunpack.c.l.b16 %v2333
    %v2765 = vunpack.c.h.b16 %v2333
    %v2766 = vunpack.c.l.b16 %v2334
    %v2767 = vunpack.c.h.b16 %v2334
    %v2768 = vunpack.c.l.b16 %v2335
    %v2769 = vunpack.c.h.b16 %v2335
    %v2770 = vunpack.c.l.b16 %v2336
    %v2771 = vunpack.c.h.b16 %v2336
    %v2772 = vunpack.c.l.b16 %v2337
    %v2773 = vunpack.c.h.b16 %v2337
    %v2774 = vunpack.c.l.b16 %v2338
    %v2775 = vunpack.c.h.b16 %v2338
    %v2776 = vunpack.c.l.b16 %v2339
    %v2777 = vunpack.c.h.b16 %v2339
    %v2778 = vunpack.c.l.b16 %v2340
    %v2779 = vunpack.c.h.b16 %v2340
    %v2780 = vunpack.c.l.b16 %v2341
    %v2781 = vunpack.c.h.b16 %v2341
    %v2782 = vunpack.c.l.b16 %v2342
    %v2783 = vunpack.c.h.b16 %v2342
    %v2784 = vunpack.c.l.b16 %v2343
    %v2785 = vunpack.c.h.b16 %v2343
    %v2786 = vunpack.c.l.b16 %v2344
    %v2787 = vunpack.c.h.b16 %v2344
    %v2788 = vunpack.c.l.b16 %v2345
    %v2789 = vunpack.c.h.b16 %v2345
    %v2790 = vunpack.c.l.b16 %v2346
    %v2791 = vunpack.c.h.b16 %v2346
    %v2792 = vunpack.c.l.b16 %v2347
    %v2793 = vunpack.c.h.b16 %v2347
    %v2794 = vunpack.c.l.b16 %v2348
    %v2795 = vunpack.c.h.b16 %v2348
    %v2796 = vunpack.c.l.b16 %v2349
    %v2797 = vunpack.c.h.b16 %v2349
    %v2798 = vpack.c.b16 %v2546, %v2542
    %v2799 = vpack.c.b16 %v2547, %v2543
    %v2800 = vpack.c.b16 %v2548, %v2544
    %v2801 = vpack.c.b16 %v2549, %v2545
    %v2802 = vpack.c.b16 %v2554, %v2550
    %v2803 = vpack.c.b16 %v2555, %v2551
    %v2804 = vpack.c.b16 %v2556, %v2552
    %v2805 = vpack.c.b16 %v2557, %v2553
    %v2806 = vpack.c.b16 %v2562, %v2558
    %v2807 = vpack.c.b16 %v2563, %v2559
    %v2808 = vpack.c.b16 %v2564, %v2560
    %v2809 = vpack.c.b16 %v2565, %v2561
    %v2810 = vpack.c.b16 %v2570, %v2566
    %v2811 = vpack.c.b16 %v2571, %v2567
    %v2812 = vpack.c.b16 %v2572, %v2568
    %v2813 = vpack.c.b16 %v2573, %v2569
    %v2814 = vpack.c.b16 %v2578, %v2574
    %v2815 = vpack.c.b16 %v2579, %v2575
    %v2816 = vpack.c.b16 %v2580, %v2576
    %v2817 = vpack.c.b16 %v2581, %v2577
    %v2818 = vpack.c.b16 %v2586, %v2582
    %v2819 = vpack.c.b16 %v2587, %v2583
    %v2820 = vpack.c.b16 %v2588, %v2584
    %v2821 = vpack.c.b16 %v2589, %v2585
    %v2822 = vpack.c.b16 %v2594, %v2590
    %v2823 = vpack.c.b16 %v2595, %v2591
    %v2824 = vpack.c.b16 %v2596, %v2592
    %v2825 = vpack.c.b16 %v2597, %v2593
    %v2826 = vpack.c.b16 %v2602, %v2598
    %v2827 = vpack.c.b16 %v2603, %v2599
    %v2828 = vpack.c.b16 %v2604, %v2600
    %v2829 = vpack.c.b16 %v2605, %v2601
    %v2830 = vpack.c.b16 %v2610, %v2606
    %v2831 = vpack.c.b16 %v2611, %v2607
    %v2832 = vpack.c.b16 %v2612, %v2608
    %v2833 = vpack.c.b16 %v2613, %v2609
    %v2834 = vpack.c.b16 %v2618, %v2614
    %v2835 = vpack.c.b16 %v2619, %v2615
    %v2836 = vpack.c.b16 %v2620, %v2616
    %v2837 = vpack.c.b16 %v2621, %v2617
    %v2838 = vpack.c.b16 %v2626, %v2622
    %v2839 = vpack.c.b16 %v2627, %v2623
    %v2840 = vpack.c.b16 %v2628, %v2624
    %v2841 = vpack.c.b16 %v2629, %v2625
    %v2842 = vpack.c.b16 %v2634, %v2630
    %v2843 = vpack.c.b16 %v2635, %v2631
    %v2844 = vpack.c.b16 %v2636, %v2632
    %v2845 = vpack.c.b16 %v2637, %v2633
    %v2846 = vpack.c.b16 %v2642, %v2638
    %v2847 = vpack.c.b16 %v2643, %v2639
    %v2848 = vpack.c.b16 %v2644, %v2640
    %v2849 = vpack.c.b16 %v2645, %v2641
    %v2850 = vpack.c.b16 %v2650, %v2646
    %v2851 = vpack.c.b16 %v2651, %v2647
    %v2852 = vpack.c.b16 %v2652, %v2648
    %v2853 = vpack.c.b16 %v2653, %v2649
    %v2854 = vpack.c.b16 %v2658, %v2654
    %v2855 = vpack.c.b16 %v2659, %v2655
    %v2856 = vpack.c.b16 %v2660, %v2656
    %v2857 = vpack.c.b16 %v2661, %v2657
    %v2858 = vpack.c.b16 %v2666, %v2662
    %v2859 = vpack.c.b16 %v2667, %v2663
    %v2860 = vpack.c.b16 %v2668, %v2664
    %v2861 = vpack.c.b16 %v2669, %v2665
    %v2862 = vpack.c.b16 %v2674, %v2670
    %v2863 = vpack.c.b16 %v2675, %v2671
    %v2864 = vpack.c.b16 %v2676, %v2672
    %v2865 = vpack.c.b16 %v2677, %v2673
    %v2866 = vpack.c.b16 %v2682, %v2678
    %v2867 = vpack.c.b16 %v2683, %v2679
    %v2868 = vpack.c.b16 %v2684, %v2680
    %v2869 = vpack.c.b16 %v2685, %v2681
    %v2870 = vpack.c.b16 %v2690, %v2686
    %v2871 = vpack.c.b16 %v2691, %v2687
    %v2872 = vpack.c.b16 %v2692, %v2688
    %v2873 = vpack.c.b16 %v2693, %v2689
    %v2874 = vpack.c.b16 %v2698, %v2694
    %v2875 = vpack.c.b16 %v2699, %v2695
    %v2876 = vpack.c.b16 %v2700, %v2696
    %v2877 = vpack.c.b16 %v2701, %v2697
    %v2878 = vpack.c.b16 %v2706, %v2702
    %v2879 = vpack.c.b16 %v2707, %v2703
    %v2880 = vpack.c.b16 %v2708, %v2704
    %v2881 = vpack.c.b16 %v2709, %v2705
    %v2882 = vpack.c.b16 %v2714, %v2710
    %v2883 = vpack.c.b16 %v2715, %v2711
    %v2884 = vpack.c.b16 %v2716, %v2712
    %v2885 = vpack.c.b16 %v2717, %v2713
    %v2886 = vpack.c.b16 %v2722, %v2718
    %v2887 = vpack.c.b16 %v2723, %v2719
    %v2888 = vpack.c.b16 %v2724, %v2720
    %v2889 = vpack.c.b16 %v2725, %v2721
    %v2890 = vpack.c.b16 %v2730, %v2726
    %v2891 = vpack.c.b16 %v2731, %v2727
    %v2892 = vpack.c.b16 %v2732, %v2728
    %v2893 = vpack.c.b16 %v2733, %v2729
    %v2894 = vpack.c.b16 %v2738, %v2734
    %v2895 = vpack.c.b16 %v2739, %v2735
    %v2896 = vpack.c.b16 %v2740, %v2736
    %v2897 = vpack.c.b16 %v2741, %v2737
    %v2898 = vpack.c.b16 %v2746, %v2742
    %v2899 = vpack.c.b16 %v2747, %v2743
    %v2900 = vpack.c.b16 %v2748, %v2744
    %v2901 = vpack.c.b16 %v2749, %v2745
    %v2902 = vpack.c.b16 %v2754, %v2750
    %v2903 = vpack.c.b16 %v2755, %v2751
    %v2904 = vpack.c.b16 %v2756, %v2752
    %v2905 = vpack.c.b16 %v2757, %v2753
    %v2906 = vpack.c.b16 %v2762, %v2758
    %v2907 = vpack.c.b16 %v2763, %v2759
    %v2908 = vpack.c.b16 %v2764, %v2760
    %v2909 = vpack.c.b16 %v2765, %v2761
    %v2910 = vpack.c.b16 %v2770, %v2766
    %v2911 = vpack.c.b16 %v2771, %v2767
    %v2912 = vpack.c.b16 %v2772, %v2768
    %v2913 = vpack.c.b16 %v2773, %v2769
    %v2914 = vpack.c.b16 %v2778, %v2774
    %v2915 = vpack.c.b16 %v2779, %v2775
    %v2916 = vpack.c.b16 %v2780, %v2776
    %v2917 = vpack.c.b16 %v2781, %v2777
    %v2918 = vpack.c.b16 %v2786, %v2782
    %v2919 = vpack.c.b16 %v2787, %v2783
    %v2920 = vpack.c.b16 %v2788, %v2784
    %v2921 = vpack.c.b16 %v2789, %v2785
    %v2922 = vpack.c.b16 %v2794, %v2790
    %v2923 = vpack.c.b16 %v2795, %v2791
    %v2924 = vpack.c.b16 %v2796, %v2792
    %v2925 = vpack.c.b16 %v2797, %v2793
    %3054 = vmatpush.msra.mxu0 %v2365
    %3055 = vmatpush.msra.mxu0 %v2364
    %3056 = vmatpush.msra.mxu0 %v2363
    %3057 = vmatpush.msra.mxu0 %v2362
    %3058 = vmatpush.msra.mxu0 %v2361
    %3059 = vmatpush.msra.mxu0 %v2360
    %3060 = vmatpush.msra.mxu0 %v2359
    %3061 = vmatpush.msra.mxu0 %v2358
    %3062 = vmatpush.msra.mxu0 %v2357
    %3063 = vmatpush.msra.mxu0 %v2356
    %3064 = vmatpush.msra.mxu0 %v2355
    %3065 = vmatpush.msra.mxu0 %v2354
    %3066 = vmatpush.msra.mxu0 %v2353
    %3067 = vmatpush.msra.mxu0 %v2352
    %3068 = vmatpush.msra.mxu0 %v2351
    %3069 = vmatpush.msra.mxu0 %v2350
    %3070 = vmatmul.bf16.gmra.mxu0 %v2798
    %v3071 = vpop.f32.mrf.mxu0
    %v3072 = vadd.f32 0.0, %v3071
    %v3073 = vpop.f32.mrf.mxu0
    %v3074 = vadd.f32 0.0, %v3073
    %3075 = vmatmul.bf16.gmra.mxu0 %v2802
    %v3076 = vpop.f32.mrf.mxu0
    %v3077 = vadd.f32 0.0, %v3076
    %v3078 = vpop.f32.mrf.mxu0
    %v3079 = vadd.f32 0.0, %v3078
    %3080 = vmatmul.bf16.gmra.mxu0 %v2806
    %v3081 = vpop.f32.mrf.mxu0
    %v3082 = vadd.f32 0.0, %v3081
    %v3083 = vpop.f32.mrf.mxu0
    %v3084 = vadd.f32 0.0, %v3083
    %3085 = vmatmul.bf16.gmra.mxu0 %v2810
    %v3086 = vpop.f32.mrf.mxu0
    %v3087 = vadd.f32 0.0, %v3086
    %v3088 = vpop.f32.mrf.mxu0
    %v3089 = vadd.f32 0.0, %v3088
    %3090 = vmatmul.bf16.gmra.mxu0 %v2814
    %v3091 = vpop.f32.mrf.mxu0
    %v3092 = vadd.f32 0.0, %v3091
    %v3093 = vpop.f32.mrf.mxu0
    %v3094 = vadd.f32 0.0, %v3093
    %3095 = vmatmul.bf16.gmra.mxu0 %v2818
    %v3096 = vpop.f32.mrf.mxu0
    %v3097 = vadd.f32 0.0, %v3096
    %v3098 = vpop.f32.mrf.mxu0
    %v3099 = vadd.f32 0.0, %v3098
    %3100 = vmatmul.bf16.gmra.mxu0 %v2822
    %v3101 = vpop.f32.mrf.mxu0
    %v3102 = vadd.f32 0.0, %v3101
    %v3103 = vpop.f32.mrf.mxu0
    %v3104 = vadd.f32 0.0, %v3103
    %3105 = vmatmul.bf16.gmra.mxu0 %v2826
    %v3106 = vpop.f32.mrf.mxu0
    %v3107 = vadd.f32 0.0, %v3106
    %v3108 = vpop.f32.mrf.mxu0
    %v3109 = vadd.f32 0.0, %v3108
    %3110 = vmatmul.bf16.gmra.mxu0 %v2830
    %v3111 = vpop.f32.mrf.mxu0
    %v3112 = vadd.f32 0.0, %v3111
    %v3113 = vpop.f32.mrf.mxu0
    %v3114 = vadd.f32 0.0, %v3113
    %3115 = vmatmul.bf16.gmra.mxu0 %v2834
    %v3116 = vpop.f32.mrf.mxu0
    %v3117 = vadd.f32 0.0, %v3116
    %v3118 = vpop.f32.mrf.mxu0
    %v3119 = vadd.f32 0.0, %v3118
    %3120 = vmatmul.bf16.gmra.mxu0 %v2838
    %v3121 = vpop.f32.mrf.mxu0
    %v3122 = vadd.f32 0.0, %v3121
    %v3123 = vpop.f32.mrf.mxu0
    %v3124 = vadd.f32 0.0, %v3123
    %3125 = vmatmul.bf16.gmra.mxu0 %v2842
    %v3126 = vpop.f32.mrf.mxu0
    %v3127 = vadd.f32 0.0, %v3126
    %v3128 = vpop.f32.mrf.mxu0
    %v3129 = vadd.f32 0.0, %v3128
    %3130 = vmatmul.bf16.gmra.mxu0 %v2846
    %v3131 = vpop.f32.mrf.mxu0
    %v3132 = vadd.f32 0.0, %v3131
    %v3133 = vpop.f32.mrf.mxu0
    %v3134 = vadd.f32 0.0, %v3133
    %3135 = vmatmul.bf16.gmra.mxu0 %v2850
    %v3136 = vpop.f32.mrf.mxu0
    %v3137 = vadd.f32 0.0, %v3136
    %v3138 = vpop.f32.mrf.mxu0
    %v3139 = vadd.f32 0.0, %v3138
    %3140 = vmatmul.bf16.gmra.mxu0 %v2854
    %v3141 = vpop.f32.mrf.mxu0
    %v3142 = vadd.f32 0.0, %v3141
    %v3143 = vpop.f32.mrf.mxu0
    %v3144 = vadd.f32 0.0, %v3143
    %3145 = vmatmul.bf16.gmra.mxu0 %v2858
    %v3146 = vpop.f32.mrf.mxu0
    %v3147 = vadd.f32 0.0, %v3146
    %v3148 = vpop.f32.mrf.mxu0
    %v3149 = vadd.f32 0.0, %v3148
    %3150 = vmatmul.bf16.gmra.mxu0 %v2862
    %v3151 = vpop.f32.mrf.mxu0
    %v3152 = vadd.f32 0.0, %v3151
    %v3153 = vpop.f32.mrf.mxu0
    %v3154 = vadd.f32 0.0, %v3153
    %3155 = vmatmul.bf16.gmra.mxu0 %v2866
    %v3156 = vpop.f32.mrf.mxu0
    %v3157 = vadd.f32 0.0, %v3156
    %v3158 = vpop.f32.mrf.mxu0
    %v3159 = vadd.f32 0.0, %v3158
    %3160 = vmatmul.bf16.gmra.mxu0 %v2870
    %v3161 = vpop.f32.mrf.mxu0
    %v3162 = vadd.f32 0.0, %v3161
    %v3163 = vpop.f32.mrf.mxu0
    %v3164 = vadd.f32 0.0, %v3163
    %3165 = vmatmul.bf16.gmra.mxu0 %v2874
    %v3166 = vpop.f32.mrf.mxu0
    %v3167 = vadd.f32 0.0, %v3166
    %v3168 = vpop.f32.mrf.mxu0
    %v3169 = vadd.f32 0.0, %v3168
    %3170 = vmatmul.bf16.gmra.mxu0 %v2878
    %v3171 = vpop.f32.mrf.mxu0
    %v3172 = vadd.f32 0.0, %v3171
    %v3173 = vpop.f32.mrf.mxu0
    %v3174 = vadd.f32 0.0, %v3173
    %3175 = vmatmul.bf16.gmra.mxu0 %v2882
    %v3176 = vpop.f32.mrf.mxu0
    %v3177 = vadd.f32 0.0, %v3176
    %v3178 = vpop.f32.mrf.mxu0
    %v3179 = vadd.f32 0.0, %v3178
    %3180 = vmatmul.bf16.gmra.mxu0 %v2886
    %v3181 = vpop.f32.mrf.mxu0
    %v3182 = vadd.f32 0.0, %v3181
    %v3183 = vpop.f32.mrf.mxu0
    %v3184 = vadd.f32 0.0, %v3183
    %3185 = vmatmul.bf16.gmra.mxu0 %v2890
    %v3186 = vpop.f32.mrf.mxu0
    %v3187 = vadd.f32 0.0, %v3186
    %v3188 = vpop.f32.mrf.mxu0
    %v3189 = vadd.f32 0.0, %v3188
    %3190 = vmatmul.bf16.gmra.mxu0 %v2894
    %v3191 = vpop.f32.mrf.mxu0
    %v3192 = vadd.f32 0.0, %v3191
    %v3193 = vpop.f32.mrf.mxu0
    %v3194 = vadd.f32 0.0, %v3193
    %3195 = vmatmul.bf16.gmra.mxu0 %v2898
    %v3196 = vpop.f32.mrf.mxu0
    %v3197 = vadd.f32 0.0, %v3196
    %v3198 = vpop.f32.mrf.mxu0
    %v3199 = vadd.f32 0.0, %v3198
    %3200 = vmatmul.bf16.gmra.mxu0 %v2902
    %v3201 = vpop.f32.mrf.mxu0
    %v3202 = vadd.f32 0.0, %v3201
    %v3203 = vpop.f32.mrf.mxu0
    %v3204 = vadd.f32 0.0, %v3203
    %3205 = vmatmul.bf16.gmra.mxu0 %v2906
    %v3206 = vpop.f32.mrf.mxu0
    %v3207 = vadd.f32 0.0, %v3206
    %v3208 = vpop.f32.mrf.mxu0
    %v3209 = vadd.f32 0.0, %v3208
    %3210 = vmatmul.bf16.gmra.mxu0 %v2910
    %v3211 = vpop.f32.mrf.mxu0
    %v3212 = vadd.f32 0.0, %v3211
    %v3213 = vpop.f32.mrf.mxu0
    %v3214 = vadd.f32 0.0, %v3213
    %3215 = vmatmul.bf16.gmra.mxu0 %v2914
    %v3216 = vpop.f32.mrf.mxu0
    %v3217 = vadd.f32 0.0, %v3216
    %v3218 = vpop.f32.mrf.mxu0
    %v3219 = vadd.f32 0.0, %v3218
    %3220 = vmatmul.bf16.gmra.mxu0 %v2918
    %v3221 = vpop.f32.mrf.mxu0
    %v3222 = vadd.f32 0.0, %v3221
    %v3223 = vpop.f32.mrf.mxu0
    %v3224 = vadd.f32 0.0, %v3223
    %3225 = vmatmul.bf16.gmra.mxu0 %v2922
    %v3226 = vpop.f32.mrf.mxu0
    %v3227 = vadd.f32 0.0, %v3226
    %v3228 = vpop.f32.mrf.mxu0
    %v3229 = vadd.f32 0.0, %v3228
    %3230 = vdwg.mxu0
    %3231 = vmatpush.msra.mxu0 %v2381
    %3232 = vmatpush.msra.mxu0 %v2380
    %3233 = vmatpush.msra.mxu0 %v2379
    %3234 = vmatpush.msra.mxu0 %v2378
    %3235 = vmatpush.msra.mxu0 %v2377
    %3236 = vmatpush.msra.mxu0 %v2376
    %3237 = vmatpush.msra.mxu0 %v2375
    %3238 = vmatpush.msra.mxu0 %v2374
    %3239 = vmatpush.msra.mxu0 %v2373
    %3240 = vmatpush.msra.mxu0 %v2372
    %3241 = vmatpush.msra.mxu0 %v2371
    %3242 = vmatpush.msra.mxu0 %v2370
    %3243 = vmatpush.msra.mxu0 %v2369
    %3244 = vmatpush.msra.mxu0 %v2368
    %3245 = vmatpush.msra.mxu0 %v2367
    %3246 = vmatpush.msra.mxu0 %v2366
    %3247 = vmatmul.bf16.gmra.mxu0 %v2799
    %v3248 = vpop.f32.mrf.mxu0
    %v3249 = vadd.f32 %v3072, %v3248
    %v3250 = vpop.f32.mrf.mxu0
    %v3251 = vadd.f32 %v3074, %v3250
    %3252 = vmatmul.bf16.gmra.mxu0 %v2803
    %v3253 = vpop.f32.mrf.mxu0
    %v3254 = vadd.f32 %v3077, %v3253
    %v3255 = vpop.f32.mrf.mxu0
    %v3256 = vadd.f32 %v3079, %v3255
    %3257 = vmatmul.bf16.gmra.mxu0 %v2807
    %v3258 = vpop.f32.mrf.mxu0
    %v3259 = vadd.f32 %v3082, %v3258
    %v3260 = vpop.f32.mrf.mxu0
    %v3261 = vadd.f32 %v3084, %v3260
    %3262 = vmatmul.bf16.gmra.mxu0 %v2811
    %v3263 = vpop.f32.mrf.mxu0
    %v3264 = vadd.f32 %v3087, %v3263
    %v3265 = vpop.f32.mrf.mxu0
    %v3266 = vadd.f32 %v3089, %v3265
    %3267 = vmatmul.bf16.gmra.mxu0 %v2815
    %v3268 = vpop.f32.mrf.mxu0
    %v3269 = vadd.f32 %v3092, %v3268
    %v3270 = vpop.f32.mrf.mxu0
    %v3271 = vadd.f32 %v3094, %v3270
    %3272 = vmatmul.bf16.gmra.mxu0 %v2819
    %v3273 = vpop.f32.mrf.mxu0
    %v3274 = vadd.f32 %v3097, %v3273
    %v3275 = vpop.f32.mrf.mxu0
    %v3276 = vadd.f32 %v3099, %v3275
    %3277 = vmatmul.bf16.gmra.mxu0 %v2823
    %v3278 = vpop.f32.mrf.mxu0
    %v3279 = vadd.f32 %v3102, %v3278
    %v3280 = vpop.f32.mrf.mxu0
    %v3281 = vadd.f32 %v3104, %v3280
    %3282 = vmatmul.bf16.gmra.mxu0 %v2827
    %v3283 = vpop.f32.mrf.mxu0
    %v3284 = vadd.f32 %v3107, %v3283
    %v3285 = vpop.f32.mrf.mxu0
    %v3286 = vadd.f32 %v3109, %v3285
    %3287 = vmatmul.bf16.gmra.mxu0 %v2831
    %v3288 = vpop.f32.mrf.mxu0
    %v3289 = vadd.f32 %v3112, %v3288
    %v3290 = vpop.f32.mrf.mxu0
    %v3291 = vadd.f32 %v3114, %v3290
    %3292 = vmatmul.bf16.gmra.mxu0 %v2835
    %v3293 = vpop.f32.mrf.mxu0
    %v3294 = vadd.f32 %v3117, %v3293
    %v3295 = vpop.f32.mrf.mxu0
    %v3296 = vadd.f32 %v3119, %v3295
    %3297 = vmatmul.bf16.gmra.mxu0 %v2839
    %v3298 = vpop.f32.mrf.mxu0
    %v3299 = vadd.f32 %v3122, %v3298
    %v3300 = vpop.f32.mrf.mxu0
    %v3301 = vadd.f32 %v3124, %v3300
    %3302 = vmatmul.bf16.gmra.mxu0 %v2843
    %v3303 = vpop.f32.mrf.mxu0
    %v3304 = vadd.f32 %v3127, %v3303
    %v3305 = vpop.f32.mrf.mxu0
    %v3306 = vadd.f32 %v3129, %v3305
    %3307 = vmatmul.bf16.gmra.mxu0 %v2847
    %v3308 = vpop.f32.mrf.mxu0
    %v3309 = vadd.f32 %v3132, %v3308
    %v3310 = vpop.f32.mrf.mxu0
    %v3311 = vadd.f32 %v3134, %v3310
    %3312 = vmatmul.bf16.gmra.mxu0 %v2851
    %v3313 = vpop.f32.mrf.mxu0
    %v3314 = vadd.f32 %v3137, %v3313
    %v3315 = vpop.f32.mrf.mxu0
    %v3316 = vadd.f32 %v3139, %v3315
    %3317 = vmatmul.bf16.gmra.mxu0 %v2855
    %v3318 = vpop.f32.mrf.mxu0
    %v3319 = vadd.f32 %v3142, %v3318
    %v3320 = vpop.f32.mrf.mxu0
    %v3321 = vadd.f32 %v3144, %v3320
    %3322 = vmatmul.bf16.gmra.mxu0 %v2859
    %v3323 = vpop.f32.mrf.mxu0
    %v3324 = vadd.f32 %v3147, %v3323
    %v3325 = vpop.f32.mrf.mxu0
    %v3326 = vadd.f32 %v3149, %v3325
    %3327 = vmatmul.bf16.gmra.mxu0 %v2863
    %v3328 = vpop.f32.mrf.mxu0
    %v3329 = vadd.f32 %v3152, %v3328
    %v3330 = vpop.f32.mrf.mxu0
    %v3331 = vadd.f32 %v3154, %v3330
    %3332 = vmatmul.bf16.gmra.mxu0 %v2867
    %v3333 = vpop.f32.mrf.mxu0
    %v3334 = vadd.f32 %v3157, %v3333
    %v3335 = vpop.f32.mrf.mxu0
    %v3336 = vadd.f32 %v3159, %v3335
    %3337 = vmatmul.bf16.gmra.mxu0 %v2871
    %v3338 = vpop.f32.mrf.mxu0
    %v3339 = vadd.f32 %v3162, %v3338
    %v3340 = vpop.f32.mrf.mxu0
    %v3341 = vadd.f32 %v3164, %v3340
    %3342 = vmatmul.bf16.gmra.mxu0 %v2875
    %v3343 = vpop.f32.mrf.mxu0
    %v3344 = vadd.f32 %v3167, %v3343
    %v3345 = vpop.f32.mrf.mxu0
    %v3346 = vadd.f32 %v3169, %v3345
    %3347 = vmatmul.bf16.gmra.mxu0 %v2879
    %v3348 = vpop.f32.mrf.mxu0
    %v3349 = vadd.f32 %v3172, %v3348
    %v3350 = vpop.f32.mrf.mxu0
    %v3351 = vadd.f32 %v3174, %v3350
    %3352 = vmatmul.bf16.gmra.mxu0 %v2883
    %v3353 = vpop.f32.mrf.mxu0
    %v3354 = vadd.f32 %v3177, %v3353
    %v3355 = vpop.f32.mrf.mxu0
    %v3356 = vadd.f32 %v3179, %v3355
    %3357 = vmatmul.bf16.gmra.mxu0 %v2887
    %v3358 = vpop.f32.mrf.mxu0
    %v3359 = vadd.f32 %v3182, %v3358
    %v3360 = vpop.f32.mrf.mxu0
    %v3361 = vadd.f32 %v3184, %v3360
    %3362 = vmatmul.bf16.gmra.mxu0 %v2891
    %v3363 = vpop.f32.mrf.mxu0
    %v3364 = vadd.f32 %v3187, %v3363
    %v3365 = vpop.f32.mrf.mxu0
    %v3366 = vadd.f32 %v3189, %v3365
    %3367 = vmatmul.bf16.gmra.mxu0 %v2895
    %v3368 = vpop.f32.mrf.mxu0
    %v3369 = vadd.f32 %v3192, %v3368
    %v3370 = vpop.f32.mrf.mxu0
    %v3371 = vadd.f32 %v3194, %v3370
    %3372 = vmatmul.bf16.gmra.mxu0 %v2899
    %v3373 = vpop.f32.mrf.mxu0
    %v3374 = vadd.f32 %v3197, %v3373
    %v3375 = vpop.f32.mrf.mxu0
    %v3376 = vadd.f32 %v3199, %v3375
    %3377 = vmatmul.bf16.gmra.mxu0 %v2903
    %v3378 = vpop.f32.mrf.mxu0
    %v3379 = vadd.f32 %v3202, %v3378
    %v3380 = vpop.f32.mrf.mxu0
    %v3381 = vadd.f32 %v3204, %v3380
    %3382 = vmatmul.bf16.gmra.mxu0 %v2907
    %v3383 = vpop.f32.mrf.mxu0
    %v3384 = vadd.f32 %v3207, %v3383
    %v3385 = vpop.f32.mrf.mxu0
    %v3386 = vadd.f32 %v3209, %v3385
    %3387 = vmatmul.bf16.gmra.mxu0 %v2911
    %v3388 = vpop.f32.mrf.mxu0
    %v3389 = vadd.f32 %v3212, %v3388
    %v3390 = vpop.f32.mrf.mxu0
    %v3391 = vadd.f32 %v3214, %v3390
    %3392 = vmatmul.bf16.gmra.mxu0 %v2915
    %v3393 = vpop.f32.mrf.mxu0
    %v3394 = vadd.f32 %v3217, %v3393
    %v3395 = vpop.f32.mrf.mxu0
    %v3396 = vadd.f32 %v3219, %v3395
    %3397 = vmatmul.bf16.gmra.mxu0 %v2919
    %v3398 = vpop.f32.mrf.mxu0
    %v3399 = vadd.f32 %v3222, %v3398
    %v3400 = vpop.f32.mrf.mxu0
    %v3401 = vadd.f32 %v3224, %v3400
    %3402 = vmatmul.bf16.gmra.mxu0 %v2923
    %v3403 = vpop.f32.mrf.mxu0
    %v3404 = vadd.f32 %v3227, %v3403
    %v3405 = vpop.f32.mrf.mxu0
    %v3406 = vadd.f32 %v3229, %v3405
    %3407 = vdwg.mxu0
    %3408 = vmatpush.msra.mxu0 %v2397
    %3409 = vmatpush.msra.mxu0 %v2396
    %3410 = vmatpush.msra.mxu0 %v2395
    %3411 = vmatpush.msra.mxu0 %v2394
    %3412 = vmatpush.msra.mxu0 %v2393
    %3413 = vmatpush.msra.mxu0 %v2392
    %3414 = vmatpush.msra.mxu0 %v2391
    %3415 = vmatpush.msra.mxu0 %v2390
    %3416 = vmatpush.msra.mxu0 %v2389
    %3417 = vmatpush.msra.mxu0 %v2388
    %3418 = vmatpush.msra.mxu0 %v2387
    %3419 = vmatpush.msra.mxu0 %v2386
    %3420 = vmatpush.msra.mxu0 %v2385
    %3421 = vmatpush.msra.mxu0 %v2384
    %3422 = vmatpush.msra.mxu0 %v2383
    %3423 = vmatpush.msra.mxu0 %v2382
    %3424 = vmatmul.bf16.gmra.mxu0 %v2800
    %v3425 = vpop.f32.mrf.mxu0
    %v3426 = vadd.f32 %v3249, %v3425
    %v3427 = vpop.f32.mrf.mxu0
    %v3428 = vadd.f32 %v3251, %v3427
    %3429 = vmatmul.bf16.gmra.mxu0 %v2804
    %v3430 = vpop.f32.mrf.mxu0
    %v3431 = vadd.f32 %v3254, %v3430
    %v3432 = vpop.f32.mrf.mxu0
    %v3433 = vadd.f32 %v3256, %v3432
    %3434 = vmatmul.bf16.gmra.mxu0 %v2808
    %v3435 = vpop.f32.mrf.mxu0
    %v3436 = vadd.f32 %v3259, %v3435
    %v3437 = vpop.f32.mrf.mxu0
    %v3438 = vadd.f32 %v3261, %v3437
    %3439 = vmatmul.bf16.gmra.mxu0 %v2812
    %v3440 = vpop.f32.mrf.mxu0
    %v3441 = vadd.f32 %v3264, %v3440
    %v3442 = vpop.f32.mrf.mxu0
    %v3443 = vadd.f32 %v3266, %v3442
    %3444 = vmatmul.bf16.gmra.mxu0 %v2816
    %v3445 = vpop.f32.mrf.mxu0
    %v3446 = vadd.f32 %v3269, %v3445
    %v3447 = vpop.f32.mrf.mxu0
    %v3448 = vadd.f32 %v3271, %v3447
    %3449 = vmatmul.bf16.gmra.mxu0 %v2820
    %v3450 = vpop.f32.mrf.mxu0
    %v3451 = vadd.f32 %v3274, %v3450
    %v3452 = vpop.f32.mrf.mxu0
    %v3453 = vadd.f32 %v3276, %v3452
    %3454 = vmatmul.bf16.gmra.mxu0 %v2824
    %v3455 = vpop.f32.mrf.mxu0
    %v3456 = vadd.f32 %v3279, %v3455
    %v3457 = vpop.f32.mrf.mxu0
    %v3458 = vadd.f32 %v3281, %v3457
    %3459 = vmatmul.bf16.gmra.mxu0 %v2828
    %v3460 = vpop.f32.mrf.mxu0
    %v3461 = vadd.f32 %v3284, %v3460
    %v3462 = vpop.f32.mrf.mxu0
    %v3463 = vadd.f32 %v3286, %v3462
    %3464 = vmatmul.bf16.gmra.mxu0 %v2832
    %v3465 = vpop.f32.mrf.mxu0
    %v3466 = vadd.f32 %v3289, %v3465
    %v3467 = vpop.f32.mrf.mxu0
    %v3468 = vadd.f32 %v3291, %v3467
    %3469 = vmatmul.bf16.gmra.mxu0 %v2836
    %v3470 = vpop.f32.mrf.mxu0
    %v3471 = vadd.f32 %v3294, %v3470
    %v3472 = vpop.f32.mrf.mxu0
    %v3473 = vadd.f32 %v3296, %v3472
    %3474 = vmatmul.bf16.gmra.mxu0 %v2840
    %v3475 = vpop.f32.mrf.mxu0
    %v3476 = vadd.f32 %v3299, %v3475
    %v3477 = vpop.f32.mrf.mxu0
    %v3478 = vadd.f32 %v3301, %v3477
    %3479 = vmatmul.bf16.gmra.mxu0 %v2844
    %v3480 = vpop.f32.mrf.mxu0
    %v3481 = vadd.f32 %v3304, %v3480
    %v3482 = vpop.f32.mrf.mxu0
    %v3483 = vadd.f32 %v3306, %v3482
    %3484 = vmatmul.bf16.gmra.mxu0 %v2848
    %v3485 = vpop.f32.mrf.mxu0
    %v3486 = vadd.f32 %v3309, %v3485
    %v3487 = vpop.f32.mrf.mxu0
    %v3488 = vadd.f32 %v3311, %v3487
    %3489 = vmatmul.bf16.gmra.mxu0 %v2852
    %v3490 = vpop.f32.mrf.mxu0
    %v3491 = vadd.f32 %v3314, %v3490
    %v3492 = vpop.f32.mrf.mxu0
    %v3493 = vadd.f32 %v3316, %v3492
    %3494 = vmatmul.bf16.gmra.mxu0 %v2856
    %v3495 = vpop.f32.mrf.mxu0
    %v3496 = vadd.f32 %v3319, %v3495
    %v3497 = vpop.f32.mrf.mxu0
    %v3498 = vadd.f32 %v3321, %v3497
    %3499 = vmatmul.bf16.gmra.mxu0 %v2860
    %v3500 = vpop.f32.mrf.mxu0
    %v3501 = vadd.f32 %v3324, %v3500
    %v3502 = vpop.f32.mrf.mxu0
    %v3503 = vadd.f32 %v3326, %v3502
    %3504 = vmatmul.bf16.gmra.mxu0 %v2864
    %v3505 = vpop.f32.mrf.mxu0
    %v3506 = vadd.f32 %v3329, %v3505
    %v3507 = vpop.f32.mrf.mxu0
    %v3508 = vadd.f32 %v3331, %v3507
    %3509 = vmatmul.bf16.gmra.mxu0 %v2868
    %v3510 = vpop.f32.mrf.mxu0
    %v3511 = vadd.f32 %v3334, %v3510
    %v3512 = vpop.f32.mrf.mxu0
    %v3513 = vadd.f32 %v3336, %v3512
    %3514 = vmatmul.bf16.gmra.mxu0 %v2872
    %v3515 = vpop.f32.mrf.mxu0
    %v3516 = vadd.f32 %v3339, %v3515
    %v3517 = vpop.f32.mrf.mxu0
    %v3518 = vadd.f32 %v3341, %v3517
    %3519 = vmatmul.bf16.gmra.mxu0 %v2876
    %v3520 = vpop.f32.mrf.mxu0
    %v3521 = vadd.f32 %v3344, %v3520
    %v3522 = vpop.f32.mrf.mxu0
    %v3523 = vadd.f32 %v3346, %v3522
    %3524 = vmatmul.bf16.gmra.mxu0 %v2880
    %v3525 = vpop.f32.mrf.mxu0
    %v3526 = vadd.f32 %v3349, %v3525
    %v3527 = vpop.f32.mrf.mxu0
    %v3528 = vadd.f32 %v3351, %v3527
    %3529 = vmatmul.bf16.gmra.mxu0 %v2884
    %v3530 = vpop.f32.mrf.mxu0
    %v3531 = vadd.f32 %v3354, %v3530
    %v3532 = vpop.f32.mrf.mxu0
    %v3533 = vadd.f32 %v3356, %v3532
    %3534 = vmatmul.bf16.gmra.mxu0 %v2888
    %v3535 = vpop.f32.mrf.mxu0
    %v3536 = vadd.f32 %v3359, %v3535
    %v3537 = vpop.f32.mrf.mxu0
    %v3538 = vadd.f32 %v3361, %v3537
    %3539 = vmatmul.bf16.gmra.mxu0 %v2892
    %v3540 = vpop.f32.mrf.mxu0
    %v3541 = vadd.f32 %v3364, %v3540
    %v3542 = vpop.f32.mrf.mxu0
    %v3543 = vadd.f32 %v3366, %v3542
    %3544 = vmatmul.bf16.gmra.mxu0 %v2896
    %v3545 = vpop.f32.mrf.mxu0
    %v3546 = vadd.f32 %v3369, %v3545
    %v3547 = vpop.f32.mrf.mxu0
    %v3548 = vadd.f32 %v3371, %v3547
    %3549 = vmatmul.bf16.gmra.mxu0 %v2900
    %v3550 = vpop.f32.mrf.mxu0
    %v3551 = vadd.f32 %v3374, %v3550
    %v3552 = vpop.f32.mrf.mxu0
    %v3553 = vadd.f32 %v3376, %v3552
    %3554 = vmatmul.bf16.gmra.mxu0 %v2904
    %v3555 = vpop.f32.mrf.mxu0
    %v3556 = vadd.f32 %v3379, %v3555
    %v3557 = vpop.f32.mrf.mxu0
    %v3558 = vadd.f32 %v3381, %v3557
    %3559 = vmatmul.bf16.gmra.mxu0 %v2908
    %v3560 = vpop.f32.mrf.mxu0
    %v3561 = vadd.f32 %v3384, %v3560
    %v3562 = vpop.f32.mrf.mxu0
    %v3563 = vadd.f32 %v3386, %v3562
    %3564 = vmatmul.bf16.gmra.mxu0 %v2912
    %v3565 = vpop.f32.mrf.mxu0
    %v3566 = vadd.f32 %v3389, %v3565
    %v3567 = vpop.f32.mrf.mxu0
    %v3568 = vadd.f32 %v3391, %v3567
    %3569 = vmatmul.bf16.gmra.mxu0 %v2916
    %v3570 = vpop.f32.mrf.mxu0
    %v3571 = vadd.f32 %v3394, %v3570
    %v3572 = vpop.f32.mrf.mxu0
    %v3573 = vadd.f32 %v3396, %v3572
    %3574 = vmatmul.bf16.gmra.mxu0 %v2920
    %v3575 = vpop.f32.mrf.mxu0
    %v3576 = vadd.f32 %v3399, %v3575
    %v3577 = vpop.f32.mrf.mxu0
    %v3578 = vadd.f32 %v3401, %v3577
    %3579 = vmatmul.bf16.gmra.mxu0 %v2924
    %v3580 = vpop.f32.mrf.mxu0
    %v3581 = vadd.f32 %v3404, %v3580
    %v3582 = vpop.f32.mrf.mxu0
    %v3583 = vadd.f32 %v3406, %v3582
    %3584 = vdwg.mxu0
    %3585 = vmatpush.msra.mxu0 %v2413
    %3586 = vmatpush.msra.mxu0 %v2412
    %3587 = vmatpush.msra.mxu0 %v2411
    %3588 = vmatpush.msra.mxu0 %v2410
    %3589 = vmatpush.msra.mxu0 %v2409
    %3590 = vmatpush.msra.mxu0 %v2408
    %3591 = vmatpush.msra.mxu0 %v2407
    %3592 = vmatpush.msra.mxu0 %v2406
    %3593 = vmatpush.msra.mxu0 %v2405
    %3594 = vmatpush.msra.mxu0 %v2404
    %3595 = vmatpush.msra.mxu0 %v2403
    %3596 = vmatpush.msra.mxu0 %v2402
    %3597 = vmatpush.msra.mxu0 %v2401
    %3598 = vmatpush.msra.mxu0 %v2400
    %3599 = vmatpush.msra.mxu0 %v2399
    %3600 = vmatpush.msra.mxu0 %v2398
    %3601 = vmatmul.bf16.gmra.mxu0 %v2801
    %v3602 = vpop.f32.mrf.mxu0
    %v3603 = vadd.f32 %v3426, %v3602
    %v3604 = vpop.f32.mrf.mxu0
    %v3605 = vadd.f32 %v3428, %v3604
    %3606 = vmatmul.bf16.gmra.mxu0 %v2805
    %v3607 = vpop.f32.mrf.mxu0
    %v3608 = vadd.f32 %v3431, %v3607
    %v3609 = vpop.f32.mrf.mxu0
    %v3610 = vadd.f32 %v3433, %v3609
    %3611 = vmatmul.bf16.gmra.mxu0 %v2809
    %v3612 = vpop.f32.mrf.mxu0
    %v3613 = vadd.f32 %v3436, %v3612
    %v3614 = vpop.f32.mrf.mxu0
    %v3615 = vadd.f32 %v3438, %v3614
    %3616 = vmatmul.bf16.gmra.mxu0 %v2813
    %v3617 = vpop.f32.mrf.mxu0
    %v3618 = vadd.f32 %v3441, %v3617
    %v3619 = vpop.f32.mrf.mxu0
    %v3620 = vadd.f32 %v3443, %v3619
    %3621 = vmatmul.bf16.gmra.mxu0 %v2817
    %v3622 = vpop.f32.mrf.mxu0
    %v3623 = vadd.f32 %v3446, %v3622
    %v3624 = vpop.f32.mrf.mxu0
    %v3625 = vadd.f32 %v3448, %v3624
    %3626 = vmatmul.bf16.gmra.mxu0 %v2821
    %v3627 = vpop.f32.mrf.mxu0
    %v3628 = vadd.f32 %v3451, %v3627
    %v3629 = vpop.f32.mrf.mxu0
    %v3630 = vadd.f32 %v3453, %v3629
    %3631 = vmatmul.bf16.gmra.mxu0 %v2825
    %v3632 = vpop.f32.mrf.mxu0
    %v3633 = vadd.f32 %v3456, %v3632
    %v3634 = vpop.f32.mrf.mxu0
    %v3635 = vadd.f32 %v3458, %v3634
    %3636 = vmatmul.bf16.gmra.mxu0 %v2829
    %v3637 = vpop.f32.mrf.mxu0
    %v3638 = vadd.f32 %v3461, %v3637
    %v3639 = vpop.f32.mrf.mxu0
    %v3640 = vadd.f32 %v3463, %v3639
    %3641 = vmatmul.bf16.gmra.mxu0 %v2833
    %v3642 = vpop.f32.mrf.mxu0
    %v3643 = vadd.f32 %v3466, %v3642
    %v3644 = vpop.f32.mrf.mxu0
    %v3645 = vadd.f32 %v3468, %v3644
    %3646 = vmatmul.bf16.gmra.mxu0 %v2837
    %v3647 = vpop.f32.mrf.mxu0
    %v3648 = vadd.f32 %v3471, %v3647
    %v3649 = vpop.f32.mrf.mxu0
    %v3650 = vadd.f32 %v3473, %v3649
    %3651 = vmatmul.bf16.gmra.mxu0 %v2841
    %v3652 = vpop.f32.mrf.mxu0
    %v3653 = vadd.f32 %v3476, %v3652
    %v3654 = vpop.f32.mrf.mxu0
    %v3655 = vadd.f32 %v3478, %v3654
    %3656 = vmatmul.bf16.gmra.mxu0 %v2845
    %v3657 = vpop.f32.mrf.mxu0
    %v3658 = vadd.f32 %v3481, %v3657
    %v3659 = vpop.f32.mrf.mxu0
    %v3660 = vadd.f32 %v3483, %v3659
    %3661 = vmatmul.bf16.gmra.mxu0 %v2849
    %v3662 = vpop.f32.mrf.mxu0
    %v3663 = vadd.f32 %v3486, %v3662
    %v3664 = vpop.f32.mrf.mxu0
    %v3665 = vadd.f32 %v3488, %v3664
    %3666 = vmatmul.bf16.gmra.mxu0 %v2853
    %v3667 = vpop.f32.mrf.mxu0
    %v3668 = vadd.f32 %v3491, %v3667
    %v3669 = vpop.f32.mrf.mxu0
    %v3670 = vadd.f32 %v3493, %v3669
    %3671 = vmatmul.bf16.gmra.mxu0 %v2857
    %v3672 = vpop.f32.mrf.mxu0
    %v3673 = vadd.f32 %v3496, %v3672
    %v3674 = vpop.f32.mrf.mxu0
    %v3675 = vadd.f32 %v3498, %v3674
    %3676 = vmatmul.bf16.gmra.mxu0 %v2861
    %v3677 = vpop.f32.mrf.mxu0
    %v3678 = vadd.f32 %v3501, %v3677
    %v3679 = vpop.f32.mrf.mxu0
    %v3680 = vadd.f32 %v3503, %v3679
    %3681 = vmatmul.bf16.gmra.mxu0 %v2865
    %v3682 = vpop.f32.mrf.mxu0
    %v3683 = vadd.f32 %v3506, %v3682
    %v3684 = vpop.f32.mrf.mxu0
    %v3685 = vadd.f32 %v3508, %v3684
    %3686 = vmatmul.bf16.gmra.mxu0 %v2869
    %v3687 = vpop.f32.mrf.mxu0
    %v3688 = vadd.f32 %v3511, %v3687
    %v3689 = vpop.f32.mrf.mxu0
    %v3690 = vadd.f32 %v3513, %v3689
    %3691 = vmatmul.bf16.gmra.mxu0 %v2873
    %v3692 = vpop.f32.mrf.mxu0
    %v3693 = vadd.f32 %v3516, %v3692
    %v3694 = vpop.f32.mrf.mxu0
    %v3695 = vadd.f32 %v3518, %v3694
    %3696 = vmatmul.bf16.gmra.mxu0 %v2877
    %v3697 = vpop.f32.mrf.mxu0
    %v3698 = vadd.f32 %v3521, %v3697
    %v3699 = vpop.f32.mrf.mxu0
    %v3700 = vadd.f32 %v3523, %v3699
    %3701 = vmatmul.bf16.gmra.mxu0 %v2881
    %v3702 = vpop.f32.mrf.mxu0
    %v3703 = vadd.f32 %v3526, %v3702
    %v3704 = vpop.f32.mrf.mxu0
    %v3705 = vadd.f32 %v3528, %v3704
    %3706 = vmatmul.bf16.gmra.mxu0 %v2885
    %v3707 = vpop.f32.mrf.mxu0
    %v3708 = vadd.f32 %v3531, %v3707
    %v3709 = vpop.f32.mrf.mxu0
    %v3710 = vadd.f32 %v3533, %v3709
    %3711 = vmatmul.bf16.gmra.mxu0 %v2889
    %v3712 = vpop.f32.mrf.mxu0
    %v3713 = vadd.f32 %v3536, %v3712
    %v3714 = vpop.f32.mrf.mxu0
    %v3715 = vadd.f32 %v3538, %v3714
    %3716 = vmatmul.bf16.gmra.mxu0 %v2893
    %v3717 = vpop.f32.mrf.mxu0
    %v3718 = vadd.f32 %v3541, %v3717
    %v3719 = vpop.f32.mrf.mxu0
    %v3720 = vadd.f32 %v3543, %v3719
    %3721 = vmatmul.bf16.gmra.mxu0 %v2897
    %v3722 = vpop.f32.mrf.mxu0
    %v3723 = vadd.f32 %v3546, %v3722
    %v3724 = vpop.f32.mrf.mxu0
    %v3725 = vadd.f32 %v3548, %v3724
    %3726 = vmatmul.bf16.gmra.mxu0 %v2901
    %v3727 = vpop.f32.mrf.mxu0
    %v3728 = vadd.f32 %v3551, %v3727
    %v3729 = vpop.f32.mrf.mxu0
    %v3730 = vadd.f32 %v3553, %v3729
    %3731 = vmatmul.bf16.gmra.mxu0 %v2905
    %v3732 = vpop.f32.mrf.mxu0
    %v3733 = vadd.f32 %v3556, %v3732
    %v3734 = vpop.f32.mrf.mxu0
    %v3735 = vadd.f32 %v3558, %v3734
    %3736 = vmatmul.bf16.gmra.mxu0 %v2909
    %v3737 = vpop.f32.mrf.mxu0
    %v3738 = vadd.f32 %v3561, %v3737
    %v3739 = vpop.f32.mrf.mxu0
    %v3740 = vadd.f32 %v3563, %v3739
    %3741 = vmatmul.bf16.gmra.mxu0 %v2913
    %v3742 = vpop.f32.mrf.mxu0
    %v3743 = vadd.f32 %v3566, %v3742
    %v3744 = vpop.f32.mrf.mxu0
    %v3745 = vadd.f32 %v3568, %v3744
    %3746 = vmatmul.bf16.gmra.mxu0 %v2917
    %v3747 = vpop.f32.mrf.mxu0
    %v3748 = vadd.f32 %v3571, %v3747
    %v3749 = vpop.f32.mrf.mxu0
    %v3750 = vadd.f32 %v3573, %v3749
    %3751 = vmatmul.bf16.gmra.mxu0 %v2921
    %v3752 = vpop.f32.mrf.mxu0
    %v3753 = vadd.f32 %v3576, %v3752
    %v3754 = vpop.f32.mrf.mxu0
    %v3755 = vadd.f32 %v3578, %v3754
    %3756 = vmatmul.bf16.gmra.mxu0 %v2925
    %v3757 = vpop.f32.mrf.mxu0
    %v3758 = vadd.f32 %v3581, %v3757
    %v3759 = vpop.f32.mrf.mxu0
    %v3760 = vadd.f32 %v3583, %v3759
    %3761 = vdwg.mxu0
    %3762 = vst [vmem:[#allocation2] sm:$0xff] %v3603
    %3763 = vst [vmem:[#allocation2 + $0x8] sm:$0xff] %v3605
    %3764 = vst [vmem:[#allocation2 + $0x10] sm:$0xff] %v3608
    %3765 = vst [vmem:[#allocation2 + $0x18] sm:$0xff] %v3610
    %3766 = vst [vmem:[#allocation2 + $0x20] sm:$0xff] %v3613
    %3767 = vst [vmem:[#allocation2 + $0x28] sm:$0xff] %v3615
    %3768 = vst [vmem:[#allocation2 + $0x30] sm:$0xff] %v3618
    %3769 = vst [vmem:[#allocation2 + $0x38] sm:$0xff] %v3620
    %3770 = vst [vmem:[#allocation2 + $0x40] sm:$0xff] %v3623
    %3771 = vst [vmem:[#allocation2 + $0x48] sm:$0xff] %v3625
    %3772 = vst [vmem:[#allocation2 + $0x50] sm:$0xff] %v3628
    %3773 = vst [vmem:[#allocation2 + $0x58] sm:$0xff] %v3630
    %3774 = vst [vmem:[#allocation2 + $0x60] sm:$0xff] %v3633
    %3775 = vst [vmem:[#allocation2 + $0x68] sm:$0xff] %v3635
    %3776 = vst [vmem:[#allocation2 + $0x70] sm:$0xff] %v3638
    %3777 = vst [vmem:[#allocation2 + $0x78] sm:$0xff] %v3640
    %3778 = vst [vmem:[#allocation2 + $0x80] sm:$0xff] %v3643
    %3779 = vst [vmem:[#allocation2 + $0x88] sm:$0xff] %v3645
    %3780 = vst [vmem:[#allocation2 + $0x90] sm:$0xff] %v3648
    %3781 = vst [vmem:[#allocation2 + $0x98] sm:$0xff] %v3650
    %3782 = vst [vmem:[#allocation2 + $0xa0] sm:$0xff] %v3653
    %3783 = vst [vmem:[#allocation2 + $0xa8] sm:$0xff] %v3655
    %3784 = vst [vmem:[#allocation2 + $0xb0] sm:$0xff] %v3658
    %3785 = vst [vmem:[#allocation2 + $0xb8] sm:$0xff] %v3660
    %3786 = vst [vmem:[#allocation2 + $0xc0] sm:$0xff] %v3663
    %3787 = vst [vmem:[#allocation2 + $0xc8] sm:$0xff] %v3665
    %3788 = vst [vmem:[#allocation2 + $0xd0] sm:$0xff] %v3668
    %3789 = vst [vmem:[#allocation2 + $0xd8] sm:$0xff] %v3670
    %3790 = vst [vmem:[#allocation2 + $0xe0] sm:$0xff] %v3673
    %3791 = vst [vmem:[#allocation2 + $0xe8] sm:$0xff] %v3675
    %3792 = vst [vmem:[#allocation2 + $0xf0] sm:$0xff] %v3678
    %3793 = vst [vmem:[#allocation2 + $0xf8] sm:$0xff] %v3680
    %3794 = vst [vmem:[#allocation2 + $0x100] sm:$0xff] %v3683
    %3795 = vst [vmem:[#allocation2 + $0x108] sm:$0xff] %v3685
    %3796 = vst [vmem:[#allocation2 + $0x110] sm:$0xff] %v3688
    %3797 = vst [vmem:[#allocation2 + $0x118] sm:$0xff] %v3690
    %3798 = vst [vmem:[#allocation2 + $0x120] sm:$0xff] %v3693
    %3799 = vst [vmem:[#allocation2 + $0x128] sm:$0xff] %v3695
    %3800 = vst [vmem:[#allocation2 + $0x130] sm:$0xff] %v3698
    %3801 = vst [vmem:[#allocation2 + $0x138] sm:$0xff] %v3700
    %3802 = vst [vmem:[#allocation2 + $0x140] sm:$0xff] %v3703
    %3803 = vst [vmem:[#allocation2 + $0x148] sm:$0xff] %v3705
    %3804 = vst [vmem:[#allocation2 + $0x150] sm:$0xff] %v3708
    %3805 = vst [vmem:[#allocation2 + $0x158] sm:$0xff] %v3710
    %3806 = vst [vmem:[#allocation2 + $0x160] sm:$0xff] %v3713
    %3807 = vst [vmem:[#allocation2 + $0x168] sm:$0xff] %v3715
    %3808 = vst [vmem:[#allocation2 + $0x170] sm:$0xff] %v3718
    %3809 = vst [vmem:[#allocation2 + $0x178] sm:$0xff] %v3720
    %3810 = vst [vmem:[#allocation2 + $0x180] sm:$0xff] %v3723
    %3811 = vst [vmem:[#allocation2 + $0x188] sm:$0xff] %v3725
    %3812 = vst [vmem:[#allocation2 + $0x190] sm:$0xff] %v3728
    %3813 = vst [vmem:[#allocation2 + $0x198] sm:$0xff] %v3730
    %3814 = vst [vmem:[#allocation2 + $0x1a0] sm:$0xff] %v3733
    %3815 = vst [vmem:[#allocation2 + $0x1a8] sm:$0xff] %v3735
    %3816 = vst [vmem:[#allocation2 + $0x1b0] sm:$0xff] %v3738
    %3817 = vst [vmem:[#allocation2 + $0x1b8] sm:$0xff] %v3740
    %3818 = vst [vmem:[#allocation2 + $0x1c0] sm:$0xff] %v3743
    %3819 = vst [vmem:[#allocation2 + $0x1c8] sm:$0xff] %v3745
    %3820 = vst [vmem:[#allocation2 + $0x1d0] sm:$0xff] %v3748
    %3821 = vst [vmem:[#allocation2 + $0x1d8] sm:$0xff] %v3750
    %3822 = vst [vmem:[#allocation2 + $0x1e0] sm:$0xff] %v3753
    %3823 = vst [vmem:[#allocation2 + $0x1e8] sm:$0xff] %v3755
    %3824 = vst [vmem:[#allocation2 + $0x1f0] sm:$0xff] %v3758
    %3825 = vst [vmem:[#allocation2 + $0x1f8] sm:$0xff] %v3760
    %v3826 = vld [vmem:[#allocation2] sm:$0xff]
    %v3827 = vld [vmem:[#allocation2 + $0x8] sm:$0xff]
    %v3828 = vld [vmem:[#allocation2 + $0x10] sm:$0xff]
    %v3829 = vld [vmem:[#allocation2 + $0x18] sm:$0xff]
    %v3830 = vld [vmem:[#allocation2 + $0x20] sm:$0xff]
    %v3831 = vld [vmem:[#allocation2 + $0x28] sm:$0xff]
    %v3832 = vld [vmem:[#allocation2 + $0x30] sm:$0xff]
    %v3833 = vld [vmem:[#allocation2 + $0x38] sm:$0xff]
    %v3834 = vld [vmem:[#allocation2 + $0x40] sm:$0xff]
    %v3835 = vld [vmem:[#allocation2 + $0x48] sm:$0xff]
    %v3836 = vld [vmem:[#allocation2 + $0x50] sm:$0xff]
    %v3837 = vld [vmem:[#allocation2 + $0x58] sm:$0xff]
    %v3838 = vld [vmem:[#allocation2 + $0x60] sm:$0xff]
    %v3839 = vld [vmem:[#allocation2 + $0x68] sm:$0xff]
    %v3840 = vld [vmem:[#allocation2 + $0x70] sm:$0xff]
    %v3841 = vld [vmem:[#allocation2 + $0x78] sm:$0xff]
    %v3842 = vld [vmem:[#allocation2 + $0x80] sm:$0xff]
    %v3843 = vld [vmem:[#allocation2 + $0x88] sm:$0xff]
    %v3844 = vld [vmem:[#allocation2 + $0x90] sm:$0xff]
    %v3845 = vld [vmem:[#allocation2 + $0x98] sm:$0xff]
    %v3846 = vld [vmem:[#allocation2 + $0xa0] sm:$0xff]
    %v3847 = vld [vmem:[#allocation2 + $0xa8] sm:$0xff]
    %v3848 = vld [vmem:[#allocation2 + $0xb0] sm:$0xff]
    %v3849 = vld [vmem:[#allocation2 + $0xb8] sm:$0xff]
    %v3850 = vld [vmem:[#allocation2 + $0xc0] sm:$0xff]
    %v3851 = vld [vmem:[#allocation2 + $0xc8] sm:$0xff]
    %v3852 = vld [vmem:[#allocation2 + $0xd0] sm:$0xff]
    %v3853 = vld [vmem:[#allocation2 + $0xd8] sm:$0xff]
    %v3854 = vld [vmem:[#allocation2 + $0xe0] sm:$0xff]
    %v3855 = vld [vmem:[#allocation2 + $0xe8] sm:$0xff]
    %v3856 = vld [vmem:[#allocation2 + $0xf0] sm:$0xff]
    %v3857 = vld [vmem:[#allocation2 + $0xf8] sm:$0xff]
    %v3858 = vld [vmem:[#allocation2 + $0x100] sm:$0xff]
    %v3859 = vld [vmem:[#allocation2 + $0x108] sm:$0xff]
    %v3860 = vld [vmem:[#allocation2 + $0x110] sm:$0xff]
    %v3861 = vld [vmem:[#allocation2 + $0x118] sm:$0xff]
    %v3862 = vld [vmem:[#allocation2 + $0x120] sm:$0xff]
    %v3863 = vld [vmem:[#allocation2 + $0x128] sm:$0xff]
    %v3864 = vld [vmem:[#allocation2 + $0x130] sm:$0xff]
    %v3865 = vld [vmem:[#allocation2 + $0x138] sm:$0xff]
    %v3866 = vld [vmem:[#allocation2 + $0x140] sm:$0xff]
    %v3867 = vld [vmem:[#allocation2 + $0x148] sm:$0xff]
    %v3868 = vld [vmem:[#allocation2 + $0x150] sm:$0xff]
    %v3869 = vld [vmem:[#allocation2 + $0x158] sm:$0xff]
    %v3870 = vld [vmem:[#allocation2 + $0x160] sm:$0xff]
    %v3871 = vld [vmem:[#allocation2 + $0x168] sm:$0xff]
    %v3872 = vld [vmem:[#allocation2 + $0x170] sm:$0xff]
    %v3873 = vld [vmem:[#allocation2 + $0x178] sm:$0xff]
    %v3874 = vld [vmem:[#allocation2 + $0x180] sm:$0xff]
    %v3875 = vld [vmem:[#allocation2 + $0x188] sm:$0xff]
    %v3876 = vld [vmem:[#allocation2 + $0x190] sm:$0xff]
    %v3877 = vld [vmem:[#allocation2 + $0x198] sm:$0xff]
    %v3878 = vld [vmem:[#allocation2 + $0x1a0] sm:$0xff]
    %v3879 = vld [vmem:[#allocation2 + $0x1a8] sm:$0xff]
    %v3880 = vld [vmem:[#allocation2 + $0x1b0] sm:$0xff]
    %v3881 = vld [vmem:[#allocation2 + $0x1b8] sm:$0xff]
    %v3882 = vld [vmem:[#allocation2 + $0x1c0] sm:$0xff]
    %v3883 = vld [vmem:[#allocation2 + $0x1c8] sm:$0xff]
    %v3884 = vld [vmem:[#allocation2 + $0x1d0] sm:$0xff]
    %v3885 = vld [vmem:[#allocation2 + $0x1d8] sm:$0xff]
    %v3886 = vld [vmem:[#allocation2 + $0x1e0] sm:$0xff]
    %v3887 = vld [vmem:[#allocation2 + $0x1e8] sm:$0xff]
    %v3888 = vld [vmem:[#allocation2 + $0x1f0] sm:$0xff]
    %v3889 = vld [vmem:[#allocation2 + $0x1f8] sm:$0xff]
    %v3890 = vld [vmem:[%s3] sm:$0x1]
    %v3892 = vperm.slane %v3890, 0
    %v3894 = vadd.f32 %v3826, %v3892
    %v3895 = vadd.f32 %v3827, %v3892
    %v3896 = vadd.f32 %v3828, %v3892
    %v3897 = vadd.f32 %v3829, %v3892
    %v3898 = vadd.f32 %v3830, %v3892
    %v3899 = vadd.f32 %v3831, %v3892
    %v3900 = vadd.f32 %v3832, %v3892
    %v3901 = vadd.f32 %v3833, %v3892
    %v3902 = vadd.f32 %v3834, %v3892
    %v3903 = vadd.f32 %v3835, %v3892
    %v3904 = vadd.f32 %v3836, %v3892
    %v3905 = vadd.f32 %v3837, %v3892
    %v3906 = vadd.f32 %v3838, %v3892
    %v3907 = vadd.f32 %v3839, %v3892
    %v3908 = vadd.f32 %v3840, %v3892
    %v3909 = vadd.f32 %v3841, %v3892
    %v3910 = vadd.f32 %v3842, %v3892
    %v3911 = vadd.f32 %v3843, %v3892
    %v3912 = vadd.f32 %v3844, %v3892
    %v3913 = vadd.f32 %v3845, %v3892
    %v3914 = vadd.f32 %v3846, %v3892
    %v3915 = vadd.f32 %v3847, %v3892
    %v3916 = vadd.f32 %v3848, %v3892
    %v3917 = vadd.f32 %v3849, %v3892
    %v3918 = vadd.f32 %v3850, %v3892
    %v3919 = vadd.f32 %v3851, %v3892
    %v3920 = vadd.f32 %v3852, %v3892
    %v3921 = vadd.f32 %v3853, %v3892
    %v3922 = vadd.f32 %v3854, %v3892
    %v3923 = vadd.f32 %v3855, %v3892
    %v3924 = vadd.f32 %v3856, %v3892
    %v3925 = vadd.f32 %v3857, %v3892
    %v3926 = vadd.f32 %v3858, %v3892
    %v3927 = vadd.f32 %v3859, %v3892
    %v3928 = vadd.f32 %v3860, %v3892
    %v3929 = vadd.f32 %v3861, %v3892
    %v3930 = vadd.f32 %v3862, %v3892
    %v3931 = vadd.f32 %v3863, %v3892
    %v3932 = vadd.f32 %v3864, %v3892
    %v3933 = vadd.f32 %v3865, %v3892
    %v3934 = vadd.f32 %v3866, %v3892
    %v3935 = vadd.f32 %v3867, %v3892
    %v3936 = vadd.f32 %v3868, %v3892
    %v3937 = vadd.f32 %v3869, %v3892
    %v3938 = vadd.f32 %v3870, %v3892
    %v3939 = vadd.f32 %v3871, %v3892
    %v3940 = vadd.f32 %v3872, %v3892
    %v3941 = vadd.f32 %v3873, %v3892
    %v3942 = vadd.f32 %v3874, %v3892
    %v3943 = vadd.f32 %v3875, %v3892
    %v3944 = vadd.f32 %v3876, %v3892
    %v3945 = vadd.f32 %v3877, %v3892
    %v3946 = vadd.f32 %v3878, %v3892
    %v3947 = vadd.f32 %v3879, %v3892
    %v3948 = vadd.f32 %v3880, %v3892
    %v3949 = vadd.f32 %v3881, %v3892
    %v3950 = vadd.f32 %v3882, %v3892
    %v3951 = vadd.f32 %v3883, %v3892
    %v3952 = vadd.f32 %v3884, %v3892
    %v3953 = vadd.f32 %v3885, %v3892
    %v3954 = vadd.f32 %v3886, %v3892
    %v3955 = vadd.f32 %v3887, %v3892
    %v3956 = vadd.f32 %v3888, %v3892
    %v3957 = vadd.f32 %v3889, %v3892
    %3958 = vst [vmem:[#allocation9] sm:$0xff] %v3894
    %3959 = vst [vmem:[#allocation9 + $0x8] sm:$0xff] %v3895
    %3960 = vst [vmem:[#allocation9 + $0x10] sm:$0xff] %v3896
    %3961 = vst [vmem:[#allocation9 + $0x18] sm:$0xff] %v3897
    %3962 = vst [vmem:[#allocation9 + $0x20] sm:$0xff] %v3898
    %3963 = vst [vmem:[#allocation9 + $0x28] sm:$0xff] %v3899
    %3964 = vst [vmem:[#allocation9 + $0x30] sm:$0xff] %v3900
    %3965 = vst [vmem:[#allocation9 + $0x38] sm:$0xff] %v3901
    %3966 = vst [vmem:[#allocation9 + $0x40] sm:$0xff] %v3902
    %3967 = vst [vmem:[#allocation9 + $0x48] sm:$0xff] %v3903
    %3968 = vst [vmem:[#allocation9 + $0x50] sm:$0xff] %v3904
    %3969 = vst [vmem:[#allocation9 + $0x58] sm:$0xff] %v3905
    %3970 = vst [vmem:[#allocation9 + $0x60] sm:$0xff] %v3906
    %3971 = vst [vmem:[#allocation9 + $0x68] sm:$0xff] %v3907
    %3972 = vst [vmem:[#allocation9 + $0x70] sm:$0xff] %v3908
    %3973 = vst [vmem:[#allocation9 + $0x78] sm:$0xff] %v3909
    %3974 = vst [vmem:[#allocation9 + $0x80] sm:$0xff] %v3910
    %3975 = vst [vmem:[#allocation9 + $0x88] sm:$0xff] %v3911
    %3976 = vst [vmem:[#allocation9 + $0x90] sm:$0xff] %v3912
    %3977 = vst [vmem:[#allocation9 + $0x98] sm:$0xff] %v3913
    %3978 = vst [vmem:[#allocation9 + $0xa0] sm:$0xff] %v3914
    %3979 = vst [vmem:[#allocation9 + $0xa8] sm:$0xff] %v3915
    %3980 = vst [vmem:[#allocation9 + $0xb0] sm:$0xff] %v3916
    %3981 = vst [vmem:[#allocation9 + $0xb8] sm:$0xff] %v3917
    %3982 = vst [vmem:[#allocation9 + $0xc0] sm:$0xff] %v3918
    %3983 = vst [vmem:[#allocation9 + $0xc8] sm:$0xff] %v3919
    %3984 = vst [vmem:[#allocation9 + $0xd0] sm:$0xff] %v3920
    %3985 = vst [vmem:[#allocation9 + $0xd8] sm:$0xff] %v3921
    %3986 = vst [vmem:[#allocation9 + $0xe0] sm:$0xff] %v3922
    %3987 = vst [vmem:[#allocation9 + $0xe8] sm:$0xff] %v3923
    %3988 = vst [vmem:[#allocation9 + $0xf0] sm:$0xff] %v3924
    %3989 = vst [vmem:[#allocation9 + $0xf8] sm:$0xff] %v3925
    %3990 = vst [vmem:[#allocation9 + $0x100] sm:$0xff] %v3926
    %3991 = vst [vmem:[#allocation9 + $0x108] sm:$0xff] %v3927
    %3992 = vst [vmem:[#allocation9 + $0x110] sm:$0xff] %v3928
    %3993 = vst [vmem:[#allocation9 + $0x118] sm:$0xff] %v3929
    %3994 = vst [vmem:[#allocation9 + $0x120] sm:$0xff] %v3930
    %3995 = vst [vmem:[#allocation9 + $0x128] sm:$0xff] %v3931
    %3996 = vst [vmem:[#allocation9 + $0x130] sm:$0xff] %v3932
    %3997 = vst [vmem:[#allocation9 + $0x138] sm:$0xff] %v3933
    %3998 = vst [vmem:[#allocation9 + $0x140] sm:$0xff] %v3934
    %3999 = vst [vmem:[#allocation9 + $0x148] sm:$0xff] %v3935
    %4000 = vst [vmem:[#allocation9 + $0x150] sm:$0xff] %v3936
    %4001 = vst [vmem:[#allocation9 + $0x158] sm:$0xff] %v3937
    %4002 = vst [vmem:[#allocation9 + $0x160] sm:$0xff] %v3938
    %4003 = vst [vmem:[#allocation9 + $0x168] sm:$0xff] %v3939
    %4004 = vst [vmem:[#allocation9 + $0x170] sm:$0xff] %v3940
    %4005 = vst [vmem:[#allocation9 + $0x178] sm:$0xff] %v3941
    %4006 = vst [vmem:[#allocation9 + $0x180] sm:$0xff] %v3942
    %4007 = vst [vmem:[#allocation9 + $0x188] sm:$0xff] %v3943
    %4008 = vst [vmem:[#allocation9 + $0x190] sm:$0xff] %v3944
    %4009 = vst [vmem:[#allocation9 + $0x198] sm:$0xff] %v3945
    %4010 = vst [vmem:[#allocation9 + $0x1a0] sm:$0xff] %v3946
    %4011 = vst [vmem:[#allocation9 + $0x1a8] sm:$0xff] %v3947
    %4012 = vst [vmem:[#allocation9 + $0x1b0] sm:$0xff] %v3948
    %4013 = vst [vmem:[#allocation9 + $0x1b8] sm:$0xff] %v3949
    %4014 = vst [vmem:[#allocation9 + $0x1c0] sm:$0xff] %v3950
    %4015 = vst [vmem:[#allocation9 + $0x1c8] sm:$0xff] %v3951
    %4016 = vst [vmem:[#allocation9 + $0x1d0] sm:$0xff] %v3952
    %4017 = vst [vmem:[#allocation9 + $0x1d8] sm:$0xff] %v3953
    %4018 = vst [vmem:[#allocation9 + $0x1e0] sm:$0xff] %v3954
    %4019 = vst [vmem:[#allocation9 + $0x1e8] sm:$0xff] %v3955
    %4020 = vst [vmem:[#allocation9 + $0x1f0] sm:$0xff] %v3956
    %4021 = vst [vmem:[#allocation9 + $0x1f8] sm:$0xff] %v3957
    // Predicated region
    $region30: #{tpu_custom_call.1} parent=1 // pred_check
      _
    $region31: #{tpu_custom_call.1} parent=1 // pred_check_branch
      %4023 = sbr.rel (0) target = $region33
    $region32: #{tpu_custom_call.1} parent=1 // pred_region
      %4025 = vsyncadd [#allocation5], 0
      %s4026 = sshll.u32 [#allocation9], 4
      %s4027 = int_to_ptr.vmem [resolvable:$true] %s4026
      %s4028 = sshll.u32 %s4, 4
      %s4029 = int_to_ptr.hbm [resolvable:$true] %s4028
      %4034 = dma.vmem_to_hbm [thread:$0]  %s4027, 8192, %s4029, [#allocation5], 128, 128, 8
    $region33: #{tpu_custom_call.1} parent=1 // pred_fallthru
      _
    // Predicated region
    $region34: #{tpu_custom_call.1} parent=1 // pred_check
      _
    $region35: #{tpu_custom_call.1} parent=1 // pred_check_branch
      %4036 = sbr.rel (0) target = $region37
    $region36: #{tpu_custom_call.1} parent=1 // pred_region
      %4038 = dma.done [#allocation5], 8192
    $region37: #{tpu_custom_call.1} parent=1 // pred_fallthru
      _
    %4039 = vsyncpa [#allocation4], 1
    %4040 = vsyncpa [#allocation7], 1
    %4041 = vsyncpa [#allocation5], 1

</llo_original>
